<compile_context>
chip_gen: v5e
topology: v5e:2x2
jax: 0.10.0
libtpu: 0.0.40
codegen_flags: <defaults>
</compile_context>

<pallas_src>
import functools

import jax
import jax.numpy as jnp
from jax.experimental import pallas as pl
from jax.experimental.pallas import tpu as pltpu

EPS = 1e-5


# ----------------------------------------------------------------------------
# Small helpers
# ----------------------------------------------------------------------------
def _round_up(x, m):
    return (x + m - 1) // m * m


def _pad_axis(x, axis, target):
    if x.shape[axis] == target:
        return x
    widths = [(0, 0)] * x.ndim
    widths[axis] = (0, target - x.shape[axis])
    return jnp.pad(x, widths)


def _pick_depth_tile(D, HW, max_tile_elems):
    """Largest depth-slab tile (TD*HW elements) that divides D, keeps the lane
    axis a multiple of 128 (lane-dense stores) and fits the element budget."""
    best = None
    for td in range(1, D + 1):
        if D % td:
            continue
        tile = td * HW
        if tile % 128 == 0 and tile <= max_tile_elems:
            best = td
    if best is None:                       # smallest 128-aligned slab
        for td in range(1, D + 1):
            if D % td == 0 and (td * HW) % 128 == 0:
                best = td
                break
    if best is None:                       # last resort: whole volume (full-dim block)
        best = D
    return best


def _vmem_limit(nbytes):
    # Explicit scoped-VMEM budget derived from the tile footprint (review item):
    # generous headroom, floored above the v5e default, capped below physical.
    return int(min(96 * 2**20, max(32 * 2**20, 4 * nbytes)))


def _conv_footprint(cin_p, dhwp, cout, tile, win, in_bytes, out_bytes):
    return (2 * cin_p * dhwp * in_bytes      # double-buffered resident input
            + 2 * 27 * cin_p * cout * 2      # bf16 weights (double-buffered)
            + 2 * cout * tile * out_bytes    # output tile
            + cin_p * win * 4                # activated halo window (f32)
            + 9 * cin_p * tile * 2           # per-kd bf16 tap slab
            + cout * tile * 4)               # f32 accumulator


# ----------------------------------------------------------------------------
# Shared tile body: 27-tap gather from a halo'd window (static slices, in-kernel
# boundary masks) -> 3 matmuls (one per kd, K = 9*Cin_pad) accumulated in f32.
# ----------------------------------------------------------------------------
def _conv_tile(a_win, w_ref, c_ref, d0, *, D, H, W, TILE, HALO):
    HW = H * W
    Cout = w_ref.shape[1]

    d_loc = c_ref[0:1, :]                  # (1, TILE) int32: depth within tile
    h_pos = c_ref[1:2, :]
    w_pos = c_ref[2:3, :]
    d_pos = d_loc + d0                     # global depth index of output voxel

    acc = jnp.zeros((Cout, TILE), jnp.float32)
    for kd in range(3):
        taps = []
        for kh in range(3):
            for kw in range(3):
                dd, dh, dw = kd - 1, kh - 1, kw - 1
                start = HALO + dd * HW + dh * W + dw          # static offset
                sl = a_win[:, start:start + TILE]             # (Cin_p, TILE) f32
                conds = []
                if dd == -1:
                    conds.append(d_pos >= 1)
                elif dd == 1:
                    conds.append(d_pos < D - 1)
                if dh == -1:
                    conds.append(h_pos >= 1)
                elif dh == 1:
                    conds.append(h_pos < H - 1)
                if dw == -1:
                    conds.append(w_pos >= 1)
                elif dw == 1:
                    conds.append(w_pos < W - 1)
                if conds:
                    ok = conds[0]
                    for c in conds[1:]:
                        ok = ok & c
                    sl = jnp.where(ok, sl, 0.0)               # zero halo taps
                taps.append(sl.astype(jnp.bfloat16))          # per-tap bf16 cast
        grp = jnp.concatenate(taps, axis=0)                   # (9*Cin_p, TILE) bf16
        acc = acc + jnp.dot(w_ref[kd], grp,
                            preferred_element_type=jnp.float32)
    return acc


# ----------------------------------------------------------------------------
# Kernel 1: Conv3d(3x3x3, pad=1) + per-tile partial BN stats.
# ----------------------------------------------------------------------------
def _conv3d_stats(x_pad, w_r, coords, *, D, H, W, TILE, HALO, out_dtype):
    N, Cin_p, DHWp = x_pad.shape
    Cout = w_r.shape[1]
    HW, DHW = H * W, D * H * W
    WIN = TILE + 2 * HALO
    TD = TILE // HW
    Tj = DHW // TILE

    def kernel(x_ref, w_ref, c_ref, y_ref, st_ref):
        j = pl.program_id(1)
        start = pl.multiple_of(j * TILE, TILE)
        a_win = x_ref[:, pl.ds(start, WIN)]                   # (Cin_p, WIN) f32
        acc = _conv_tile(a_win, w_ref, c_ref, j * TD,
                         D=D, H=H, W=W, TILE=TILE, HALO=HALO)
        y_ref[...] = acc.astype(y_ref.dtype)                  # bf16 intermediate
        st_ref[:, 0:1] = jnp.sum(acc, axis=1, keepdims=True)
        st_ref[:, 1:2] = jnp.sum(acc * acc, axis=1, keepdims=True)

    fp = _conv_footprint(Cin_p, DHWp, Cout, TILE, WIN, 4,
                         jnp.dtype(out_dtype).itemsize)
    return pl.pallas_call(
        kernel,
        out_shape=(jax.ShapeDtypeStruct((N, Cout, DHW), out_dtype),
                   jax.ShapeDtypeStruct((N, Tj, Cout, 2), jnp.float32)),
        grid=(N, Tj),
        in_specs=[
            pl.BlockSpec((None, Cin_p, DHWp), lambda n, j: (n, 0, 0)),
            pl.BlockSpec(w_r.shape, lambda n, j: (0, 0, 0)),
            pl.BlockSpec(coords.shape, lambda n, j: (0, 0)),
        ],
        out_specs=(
            pl.BlockSpec((None, Cout, TILE), lambda n, j: (n, 0, j)),
            pl.BlockSpec((None, None, Cout, 2), lambda n, j: (n, j, 0, 0)),
        ),
        compiler_params=pltpu.CompilerParams(
            dimension_semantics=("parallel", "parallel"),
            vmem_limit_bytes=_vmem_limit(fp)),
    )(x_pad, w_r, coords)


# ----------------------------------------------------------------------------
# Kernel 2: fused (BN apply + ReLU of the previous layer) -> Conv3d -> stats.
# ----------------------------------------------------------------------------
def _bnrelu_conv3d_stats(y_pad, scale, shift, w_r, coords, *,
                         D, H, W, TILE, HALO, out_dtype):
    N, Cin_p, DHWp = y_pad.shape
    Cout = w_r.shape[1]
    HW, DHW = H * W, D * H * W
    WIN = TILE + 2 * HALO
    TD = TILE // HW
    Tj = DHW // TILE

    def kernel(x_ref, sc_ref, sh_ref, w_ref, c_ref, y_ref, st_ref):
        j = pl.program_id(1)
        start = pl.multiple_of(j * TILE, TILE)
        # BN1-apply + ReLU once per halo'd window, in f32 (v5e-friendly VPU).
        raw = x_ref[:, pl.ds(start, WIN)].astype(jnp.float32)
        a_win = jnp.maximum(raw * sc_ref[...] + sh_ref[...], 0.0)
        acc = _conv_tile(a_win, w_ref, c_ref, j * TD,
                         D=D, H=H, W=W, TILE=TILE, HALO=HALO)
        y_ref[...] = acc.astype(y_ref.dtype)
        st_ref[:, 0:1] = jnp.sum(acc, axis=1, keepdims=True)
        st_ref[:, 1:2] = jnp.sum(acc * acc, axis=1, keepdims=True)

    fp = _conv_footprint(Cin_p, DHWp, Cout, TILE, WIN, 2,
                         jnp.dtype(out_dtype).itemsize)
    return pl.pallas_call(
        kernel,
        out_shape=(jax.ShapeDtypeStruct((N, Cout, DHW), out_dtype),
                   jax.ShapeDtypeStruct((N, Tj, Cout, 2), jnp.float32)),
        grid=(N, Tj),
        in_specs=[
            pl.BlockSpec((None, Cin_p, DHWp), lambda n, j: (n, 0, 0)),
            pl.BlockSpec((Cin_p, 1), lambda n, j: (0, 0)),
            pl.BlockSpec((Cin_p, 1), lambda n, j: (0, 0)),
            pl.BlockSpec(w_r.shape, lambda n, j: (0, 0, 0)),
            pl.BlockSpec(coords.shape, lambda n, j: (0, 0)),
        ],
        out_specs=(
            pl.BlockSpec((None, Cout, TILE), lambda n, j: (n, 0, j)),
            pl.BlockSpec((None, None, Cout, 2), lambda n, j: (n, j, 0, 0)),
        ),
        compiler_params=pltpu.CompilerParams(
            dimension_semantics=("parallel", "parallel"),
            vmem_limit_bytes=_vmem_limit(fp)),
    )(y_pad, scale, shift, w_r, coords)


# ----------------------------------------------------------------------------
# Kernel 3: final BN apply + ReLU (lane-dense elementwise pass, f32).
# ----------------------------------------------------------------------------
def _bn_relu(y, scale, shift, *, TILE):
    N, C, DHW = y.shape
    Tj = DHW // TILE

    def kernel(y_ref, sc_ref, sh_ref, o_ref):
        o_ref[...] = jnp.maximum(y_ref[...] * sc_ref[...] + sh_ref[...], 0.0)

    fp = 4 * C * TILE * 4 + 4 * C * 4
    return pl.pallas_call(
        kernel,
        out_shape=jax.ShapeDtypeStruct((N, C, DHW), jnp.float32),
        grid=(N, Tj),
        in_specs=[
            pl.BlockSpec((None, C, TILE), lambda n, j: (n, 0, j)),
            pl.BlockSpec((C, 1), lambda n, j: (0, 0)),
            pl.BlockSpec((C, 1), lambda n, j: (0, 0)),
        ],
        out_specs=pl.BlockSpec((None, C, TILE), lambda n, j: (n, 0, j)),
        compiler_params=pltpu.CompilerParams(
            dimension_semantics=("parallel", "parallel"),
            vmem_limit_bytes=_vmem_limit(fp)),
    )(y, scale, shift)


def _bn_affine(stats, gamma, beta, count):
    """Reduce per-(batch, tile) partial (sum, sumsq) -> per-channel scale/shift."""
    # TODO(synk): single-pass E[x^2]-E[x]^2 in f32 can lose precision for very
    # large volumes; switch to a mean-shifted / Welford combine if needed.
    s = jnp.sum(stats, axis=(0, 1))                       # (C, 2)
    mean = s[:, 0] / count
    var = jnp.maximum(s[:, 1] / count - mean * mean, 0.0)
    scale = gamma / jnp.sqrt(var + EPS)
    shift = beta - mean * scale
    return scale[:, None], shift[:, None]


# ----------------------------------------------------------------------------
# Wrapper
# ----------------------------------------------------------------------------
@functools.partial(jax.jit, static_argnames=("max_tile_elems",))
def double_conv3d(x_ncdhw, params, max_tile_elems=2048):
    N, Cin, D, H, W = x_ncdhw.shape
    HW, DHW = H * W, D * H * W
    C1 = params["w1"].shape[-1]
    C2 = params["w2"].shape[-1]

    TD = _pick_depth_tile(D, HW, max_tile_elems)
    TILE = TD * HW
    HALO = _round_up(HW + W + 1, 128)       # halo so every tap slice is in-bounds
    Cin_p = _round_up(Cin, 8)
    C1_p = _round_up(C1, 8)

    # Tiny per-tile coordinate table (d_local, h, w) for in-kernel boundary
    # masks — replaces the old HBM-resident (27, DHW) f32 mask.
    q = jnp.arange(TILE, dtype=jnp.int32)
    coords = jnp.stack([q // HW, (q // W) % H, q % W], axis=0)    # (3, TILE)

    # Activations: channel-first, spatial-flattened, zero halo of HALO elements.
    x = x_ncdhw.reshape(N, Cin, DHW).astype(jnp.float32)
    x = _pad_axis(x, 1, Cin_p)
    x_pad = jnp.pad(x, ((0, 0), (0, 0), (HALO, HALO)))

    # Weights: (kd,kh,kw,Cin,Cout) -> (kd, Cout, 9*Cin_pad) bf16 for the MXU.
    def prep_w(w, cin_p):
        cout = w.shape[-1]
        w = _pad_axis(w, 3, cin_p)
        w = jnp.transpose(w, (0, 4, 1, 2, 3))            # (kd, cout, kh, kw, cin_p)
        return w.reshape(3, cout, 9 * cin_p).astype(jnp.bfloat16)

    w1r = prep_w(params["w1"], Cin_p)
    w2r = prep_w(params["w2"], C1_p)
    cnt = jnp.float32(N * DHW)

    # Conv1 (+ partial BN1 stats).  Bias dropped: exactly cancelled by the
    # training-mode BN mean subtraction.  y1 stored as bf16 (conv2 feeds the
    # MXU in bf16 anyway) to halve the intermediate HBM traffic.
    y1, st1 = _conv3d_stats(x_pad, w1r, coords, D=D, H=H, W=W,
                            TILE=TILE, HALO=HALO, out_dtype=jnp.bfloat16)
    sc1, sh1 = _bn_affine(st1, params["g1"], params["be1"], cnt)
    sc1 = _pad_axis(sc1, 0, C1_p)
    sh1 = _pad_axis(sh1, 0, C1_p)

    # TODO(synk): have kernel 1 write the channel/halo-padded layout directly so
    # this jnp.pad copy of the intermediate activation disappears.
    y1p = jnp.pad(_pad_axis(y1, 1, C1_p), ((0, 0), (0, 0), (HALO, HALO)))

    # BN1-apply + ReLU fused into conv2 (no separate HBM pass over y1).
    y2, st2 = _bnrelu_conv3d_stats(y1p, sc1, sh1, w2r, coords, D=D, H=H, W=W,
                                   TILE=TILE, HALO=HALO, out_dtype=jnp.float32)
    sc2, sh2 = _bn_affine(st2, params["g2"], params["be2"], cnt)

    out = _bn_relu(y2, sc2, sh2, TILE=TILE)
    # TODO(synk): BatchNorm running_mean/running_var (momentum) buffer updates
    # are not materialized — they do not affect the training-mode forward output.
    # TODO(synk): for volumes whose (Cin, DHW+2*HALO) slab no longer fits VMEM
    # residency, switch the input to memory_space=pl.ANY with a manual halo'd
    # DMA per tile; also consider pl.Buffered(1) on the constant-index weight.
    return out.reshape(N, C2, D, H, W)


# ----------------------------------------------------------------------------
# Deterministic parameter init (PyTorch-like uniform bounds; gamma=1, beta=0).
# ----------------------------------------------------------------------------
def init_params(key, cin, cout):
    k1, k2, k3, k4 = jax.random.split(key, 4)
    bound1 = 1.0 / float((cin * 27) ** 0.5)
    bound2 = 1.0 / float((cout * 27) ** 0.5)
    return dict(
        w1=jax.random.uniform(k1, (3, 3, 3, cin, cout), jnp.float32, -bound1, bound1),
        b1=jax.random.uniform(k2, (cout,), jnp.float32, -bound1, bound1),
        g1=jnp.ones((cout,), jnp.float32),
        be1=jnp.zeros((cout,), jnp.float32),
        w2=jax.random.uniform(k3, (3, 3, 3, cout, cout), jnp.float32, -bound2, bound2),
        b2=jax.random.uniform(k4, (cout,), jnp.float32, -bound2, bound2),
        g2=jnp.ones((cout,), jnp.float32),
        be2=jnp.zeros((cout,), jnp.float32),
    )


# ----------------------------------------------------------------------------
# Pure-JAX reference (f32, with conv bias, channels-last) for validation.
# ----------------------------------------------------------------------------
def _ref_block(x, w, b, gamma, beta):
    N, D, H, W, Cin = x.shape
    Cout = w.shape[-1]
    xp = jnp.pad(x, ((0, 0), (1, 1), (1, 1), (1, 1), (0, 0)))
    y = jnp.zeros((N, D, H, W, Cout), jnp.float32) + b
    for kd in range(3):
        for kh in range(3):
            for kw in range(3):
                y = y + jnp.einsum('ndhwc,co->ndhwo',
                                   xp[:, kd:kd + D, kh:kh + H, kw:kw + W, :],
                                   w[kd, kh, kw])
    mean = jnp.mean(y, axis=(0, 1, 2, 3))
    var = jnp.mean((y - mean) ** 2, axis=(0, 1, 2, 3))
    return jnp.maximum((y - mean) * (gamma / jnp.sqrt(var + EPS)) + beta, 0.0)


def ref_double_conv(x_ncdhw, p):
    x = jnp.transpose(x_ncdhw, (0, 2, 3, 4, 1)).astype(jnp.float32)
    h = _ref_block(x, p["w1"], p["b1"], p["g1"], p["be1"])
    h = _ref_block(h, p["w2"], p["b2"], p["g2"], p["be2"])
    return jnp.transpose(h, (0, 4, 1, 2, 3))


if __name__ == "__main__":
    key = jax.random.PRNGKey(0)
    kx, kp = jax.random.split(key)

    N, Cin, Cout, D, H, W = 2, 4, 8, 8, 8, 8
    x = jax.random.normal(kx, (N, Cin, D, H, W), jnp.float32)   # NCDHW, like PyTorch
    params = init_params(kp, Cin, Cout)

    # max_tile_elems=256 -> 2 spatial tiles of 4 depth slices each, exercising
    # the halo'd-window gather and in-kernel boundary masks across tiles.
    out = jax.block_until_ready(double_conv3d(x, params, max_tile_elems=256))
    assert out.shape == (N, Cout, D, H, W)

    ref = jax.block_until_ready(ref_double_conv(x, params))
    assert bool(jnp.allclose(out, ref, atol=5e-2, rtol=5e-2)), \
        "Pallas output mismatch vs JAX reference"

    print("KERNEL_OK")
</pallas_src>

<mosaic_0001>
module attributes {stable_mosaic.version = 11 : i64} {
  func.func @kernel(%arg0: i32, %arg1: i32, %arg2: memref<1x8x256xf32, #tpu.memory_space<vmem>>, %arg3: memref<8x1xf32, #tpu.memory_space<vmem>>, %arg4: memref<8x1xf32, #tpu.memory_space<vmem>>, %arg5: memref<1x8x256xf32, #tpu.memory_space<vmem>>) attributes {dimension_semantics = [#tpu.dimension_semantics<parallel>, #tpu.dimension_semantics<parallel>], iteration_bounds = array<i64: 2, 2>, scalar_prefetch = 0 : i64, scratch_operands = 0 : i64, tpu.core_type = #tpu.core_type<tc>, window_params = [{transform_indices = @transform_0, window_bounds = array<i64: 1, 8, 256>}, {pipeline_mode = #tpu.pipeline_mode<synchronous>, transform_indices = @transform_1, window_bounds = array<i64: 8, 1>}, {pipeline_mode = #tpu.pipeline_mode<synchronous>, transform_indices = @transform_2, window_bounds = array<i64: 8, 1>}, {transform_indices = @transform_3, window_bounds = array<i64: 1, 8, 256>}]} {
    %c0 = arith.constant 0 : index
    %c0_0 = arith.constant 0 : index
    %c0_1 = arith.constant 0 : index
    %0 = vector.load %arg2[%c0, %c0_0, %c0_1] : memref<1x8x256xf32, #tpu.memory_space<vmem>>, vector<1x8x256xf32>
    %1 = vector.shape_cast %0 : vector<1x8x256xf32> to vector<8x256xf32>
    %c0_2 = arith.constant 0 : index
    %c0_3 = arith.constant 0 : index
    %2 = vector.load %arg3[%c0_2, %c0_3] : memref<8x1xf32, #tpu.memory_space<vmem>>, vector<8x1xf32>
    %3 = vector.broadcast %2 : vector<8x1xf32> to vector<8x256xf32>
    %4 = arith.mulf %1, %3 : vector<8x256xf32>
    %c0_4 = arith.constant 0 : index
    %c0_5 = arith.constant 0 : index
    %5 = vector.load %arg4[%c0_4, %c0_5] : memref<8x1xf32, #tpu.memory_space<vmem>>, vector<8x1xf32>
    %6 = vector.broadcast %5 : vector<8x1xf32> to vector<8x256xf32>
    %7 = arith.addf %4, %6 : vector<8x256xf32>
    %cst = arith.constant 0.000000e+00 : f32
    %8 = vector.broadcast %cst : f32 to vector<8x256xf32>
    %9 = arith.maximumf %7, %8 : vector<8x256xf32>
    %c0_6 = arith.constant 0 : index
    %c0_7 = arith.constant 0 : index
    %c0_8 = arith.constant 0 : index
    %10 = vector.load %arg5[%c0_6, %c0_7, %c0_8] : memref<1x8x256xf32, #tpu.memory_space<vmem>>, vector<1x8x256xf32>
    %11 = vector.shape_cast %10 : vector<1x8x256xf32> to vector<8x256xf32>
    %12 = vector.shape_cast %9 : vector<8x256xf32> to vector<1x8x256xf32>
    tpu.vector_store %arg5[%c0_6, %c0_7, %c0_8], %12 {strides = array<i32>} : memref<1x8x256xf32, #tpu.memory_space<vmem>>, vector<1x8x256xf32>,
    return
  }
  func.func @transform_0(%arg0: i32, %arg1: i32) -> (i32, i32, i32) {
    %c0_i32 = arith.constant 0 : i32
    %c0_i32_0 = arith.constant 0 : i32
    return %arg0, %c0_i32, %arg1 : i32, i32, i32
  }
  func.func @transform_1(%arg0: i32, %arg1: i32) -> (i32, i32) {
    %c0_i32 = arith.constant 0 : i32
    %c0_i32_0 = arith.constant 0 : i32
    %c0_i32_1 = arith.constant 0 : i32
    return %c0_i32, %c0_i32_0 : i32, i32
  }
  func.func @transform_2(%arg0: i32, %arg1: i32) -> (i32, i32) {
    %c0_i32 = arith.constant 0 : i32
    %c0_i32_0 = arith.constant 0 : i32
    %c0_i32_1 = arith.constant 0 : i32
    return %c0_i32, %c0_i32_0 : i32, i32
  }
  func.func @transform_3(%arg0: i32, %arg1: i32) -> (i32, i32, i32) {
    %c0_i32 = arith.constant 0 : i32
    %c0_i32_0 = arith.constant 0 : i32
    return %arg0, %c0_i32, %arg1 : i32, i32, i32
  }
}

module attributes {stable_mosaic.version = 11 : i64} {
  func.func @kernel(%arg0: i32, %arg1: i32, %arg2: memref<1x8x768xbf16, #tpu.memory_space<vmem>>, %arg3: memref<8x1xf32, #tpu.memory_space<vmem>>, %arg4: memref<8x1xf32, #tpu.memory_space<vmem>>, %arg5: memref<3x8x72xbf16, #tpu.memory_space<vmem>>, %arg6: memref<3x256xi32, #tpu.memory_space<vmem>>, %arg7: memref<1x8x256xf32, #tpu.memory_space<vmem>>, %arg8: memref<1x1x8x2xf32, #tpu.memory_space<vmem>>) attributes {dimension_semantics = [#tpu.dimension_semantics<parallel>, #tpu.dimension_semantics<parallel>], iteration_bounds = array<i64: 2, 2>, scalar_prefetch = 0 : i64, scratch_operands = 0 : i64, tpu.core_type = #tpu.core_type<tc>, window_params = [{transform_indices = @transform_0, window_bounds = array<i64: 1, 8, 768>}, {pipeline_mode = #tpu.pipeline_mode<synchronous>, transform_indices = @transform_1, window_bounds = array<i64: 8, 1>}, {pipeline_mode = #tpu.pipeline_mode<synchronous>, transform_indices = @transform_2, window_bounds = array<i64: 8, 1>}, {pipeline_mode = #tpu.pipeline_mode<synchronous>, transform_indices = @transform_3, window_bounds = array<i64: 3, 8, 72>}, {pipeline_mode = #tpu.pipeline_mode<synchronous>, transform_indices = @transform_4, window_bounds = array<i64: 3, 256>}, {transform_indices = @transform_5, window_bounds = array<i64: 1, 8, 256>}, {transform_indices = @transform_6, window_bounds = array<i64: 1, 1, 8, 2>}]} {
    %c256_i32 = arith.constant 256 : i32
    %0 = arith.muli %arg1, %c256_i32 : i32
    %1 = tpu.assume_multiple %0, 256 : i32
    %c0 = arith.constant 0 : index
    %c0_0 = arith.constant 0 : index
    %2 = arith.index_cast %1 : i32 to index
    %3 = vector.load %arg2[%c0, %c0_0, %2] : memref<1x8x768xbf16, #tpu.memory_space<vmem>>, vector<1x8x512xbf16>
    %4 = vector.shape_cast %3 : vector<1x8x512xbf16> to vector<8x512xbf16>
    %5 = arith.extf %4 : vector<8x512xbf16> to vector<8x512xf32>
    %c0_1 = arith.constant 0 : index
    %c0_2 = arith.constant 0 : index
    %6 = vector.load %arg3[%c0_1, %c0_2] : memref<8x1xf32, #tpu.memory_space<vmem>>, vector<8x1xf32>
    %7 = vector.broadcast %6 : vector<8x1xf32> to vector<8x512xf32>
    %8 = arith.mulf %5, %7 : vector<8x512xf32>
    %c0_3 = arith.constant 0 : index
    %c0_4 = arith.constant 0 : index
    %9 = vector.load %arg4[%c0_3, %c0_4] : memref<8x1xf32, #tpu.memory_space<vmem>>, vector<8x1xf32>
    %10 = vector.broadcast %9 : vector<8x1xf32> to vector<8x512xf32>
    %11 = arith.addf %8, %10 : vector<8x512xf32>
    %cst = arith.constant 0.000000e+00 : f32
    %12 = vector.broadcast %cst : f32 to vector<8x512xf32>
    %13 = arith.maximumf %11, %12 : vector<8x512xf32>
    %c4_i32 = arith.constant 4 : i32
    %14 = arith.muli %arg1, %c4_i32 : i32
    %c0_5 = arith.constant 0 : index
    %c0_6 = arith.constant 0 : index
    %15 = vector.load %arg6[%c0_5, %c0_6] : memref<3x256xi32, #tpu.memory_space<vmem>>, vector<1x256xi32>
    %c1 = arith.constant 1 : index
    %c0_7 = arith.constant 0 : index
    %16 = vector.load %arg6[%c1, %c0_7] : memref<3x256xi32, #tpu.memory_space<vmem>>, vector<1x256xi32>
    %c2 = arith.constant 2 : index
    %c0_8 = arith.constant 0 : index
    %17 = vector.load %arg6[%c2, %c0_8] : memref<3x256xi32, #tpu.memory_space<vmem>>, vector<1x256xi32>
    %18 = vector.broadcast %14 : i32 to vector<1x256xi32>
    %19 = arith.addi %15, %18 : vector<1x256xi32>
    %cst_9 = arith.constant 0.000000e+00 : f32
    %20 = vector.broadcast %cst_9 : f32 to vector<8x256xf32>
    %21 = vector.extract_strided_slice %13 {offsets = [0, 55], sizes = [8, 256], strides = [1, 1]} : vector<8x512xf32> to vector<8x256xf32>
    %c1_i32 = arith.constant 1 : i32
    %22 = vector.broadcast %c1_i32 : i32 to vector<1x256xi32>
    %23 = arith.cmpi sge, %19, %22 : vector<1x256xi32>
    %c1_i32_10 = arith.constant 1 : i32
    %24 = vector.broadcast %c1_i32_10 : i32 to vector<1x256xi32>
    %25 = arith.cmpi sge, %16, %24 : vector<1x256xi32>
    %c1_i32_11 = arith.constant 1 : i32
    %26 = vector.broadcast %c1_i32_11 : i32 to vector<1x256xi32>
    %27 = arith.cmpi sge, %17, %26 : vector<1x256xi32>
    %28 = arith.andi %23, %25 : vector<1x256xi1>
    %29 = arith.andi %28, %27 : vector<1x256xi1>
    %cst_12 = arith.constant 0.000000e+00 : f32
    %30 = vector.shape_cast %29 : vector<1x256xi1> to vector<1x256xi1>
    %31 = vector.broadcast %30 : vector<1x256xi1> to vector<8x256xi1>
    %32 = vector.broadcast %cst_12 : f32 to vector<8x256xf32>
    %33 = arith.select %31, %21, %32 : vector<8x256xi1>, vector<8x256xf32>
    %34 = arith.truncf %33 : vector<8x256xf32> to vector<8x256xbf16>
    %35 = vector.extract_strided_slice %13 {offsets = [0, 56], sizes = [8, 256], strides = [1, 1]} : vector<8x512xf32> to vector<8x256xf32>
    %c1_i32_13 = arith.constant 1 : i32
    %36 = vector.broadcast %c1_i32_13 : i32 to vector<1x256xi32>
    %37 = arith.cmpi sge, %19, %36 : vector<1x256xi32>
    %c1_i32_14 = arith.constant 1 : i32
    %38 = vector.broadcast %c1_i32_14 : i32 to vector<1x256xi32>
    %39 = arith.cmpi sge, %16, %38 : vector<1x256xi32>
    %40 = arith.andi %37, %39 : vector<1x256xi1>
    %cst_15 = arith.constant 0.000000e+00 : f32
    %41 = vector.shape_cast %40 : vector<1x256xi1> to vector<1x256xi1>
    %42 = vector.broadcast %41 : vector<1x256xi1> to vector<8x256xi1>
    %43 = vector.broadcast %cst_15 : f32 to vector<8x256xf32>
    %44 = arith.select %42, %35, %43 : vector<8x256xi1>, vector<8x256xf32>
    %45 = arith.truncf %44 : vector<8x256xf32> to vector<8x256xbf16>
    %46 = vector.extract_strided_slice %13 {offsets = [0, 57], sizes = [8, 256], strides = [1, 1]} : vector<8x512xf32> to vector<8x256xf32>
    %c1_i32_16 = arith.constant 1 : i32
    %47 = vector.broadcast %c1_i32_16 : i32 to vector<1x256xi32>
    %48 = arith.cmpi sge, %19, %47 : vector<1x256xi32>
    %c1_i32_17 = arith.constant 1 : i32
    %49 = vector.broadcast %c1_i32_17 : i32 to vector<1x256xi32>
    %50 = arith.cmpi sge, %16, %49 : vector<1x256xi32>
    %c7_i32 = arith.constant 7 : i32
    %51 = vector.broadcast %c7_i32 : i32 to vector<1x256xi32>
    %52 = arith.cmpi slt, %17, %51 : vector<1x256xi32>
    %53 = arith.andi %48, %50 : vector<1x256xi1>
    %54 = arith.andi %53, %52 : vector<1x256xi1>
    %cst_18 = arith.constant 0.000000e+00 : f32
    %55 = vector.shape_cast %54 : vector<1x256xi1> to vector<1x256xi1>
    %56 = vector.broadcast %55 : vector<1x256xi1> to vector<8x256xi1>
    %57 = vector.broadcast %cst_18 : f32 to vector<8x256xf32>
    %58 = arith.select %56, %46, %57 : vector<8x256xi1>, vector<8x256xf32>
    %59 = arith.truncf %58 : vector<8x256xf32> to vector<8x256xbf16>
    %60 = vector.extract_strided_slice %13 {offsets = [0, 63], sizes = [8, 256], strides = [1, 1]} : vector<8x512xf32> to vector<8x256xf32>
    %c1_i32_19 = arith.constant 1 : i32
    %61 = vector.broadcast %c1_i32_19 : i32 to vector<1x256xi32>
    %62 = arith.cmpi sge, %19, %61 : vector<1x256xi32>
    %c1_i32_20 = arith.constant 1 : i32
    %63 = vector.broadcast %c1_i32_20 : i32 to vector<1x256xi32>
    %64 = arith.cmpi sge, %17, %63 : vector<1x256xi32>
    %65 = arith.andi %62, %64 : vector<1x256xi1>
    %cst_21 = arith.constant 0.000000e+00 : f32
    %66 = vector.shape_cast %65 : vector<1x256xi1> to vector<1x256xi1>
    %67 = vector.broadcast %66 : vector<1x256xi1> to vector<8x256xi1>
    %68 = vector.broadcast %cst_21 : f32 to vector<8x256xf32>
    %69 = arith.select %67, %60, %68 : vector<8x256xi1>, vector<8x256xf32>
    %70 = arith.truncf %69 : vector<8x256xf32> to vector<8x256xbf16>
    %71 = vector.extract_strided_slice %13 {offsets = [0, 64], sizes = [8, 256], strides = [1, 1]} : vector<8x512xf32> to vector<8x256xf32>
    %c1_i32_22 = arith.constant 1 : i32
    %72 = vector.broadcast %c1_i32_22 : i32 to vector<1x256xi32>
    %73 = arith.cmpi sge, %19, %72 : vector<1x256xi32>
    %cst_23 = arith.constant 0.000000e+00 : f32
    %74 = vector.shape_cast %73 : vector<1x256xi1> to vector<1x256xi1>
    %75 = vector.broadcast %74 : vector<1x256xi1> to vector<8x256xi1>
    %76 = vector.broadcast %cst_23 : f32 to vector<8x256xf32>
    %77 = arith.select %75, %71, %76 : vector<8x256xi1>, vector<8x256xf32>
    %78 = arith.truncf %77 : vector<8x256xf32> to vector<8x256xbf16>
    %79 = vector.extract_strided_slice %13 {offsets = [0, 65], sizes = [8, 256], strides = [1, 1]} : vector<8x512xf32> to vector<8x256xf32>
    %c1_i32_24 = arith.constant 1 : i32
    %80 = vector.broadcast %c1_i32_24 : i32 to vector<1x256xi32>
    %81 = arith.cmpi sge, %19, %80 : vector<1x256xi32>
    %c7_i32_25 = arith.constant 7 : i32
    %82 = vector.broadcast %c7_i32_25 : i32 to vector<1x256xi32>
    %83 = arith.cmpi slt, %17, %82 : vector<1x256xi32>
    %84 = arith.andi %81, %83 : vector<1x256xi1>
    %cst_26 = arith.constant 0.000000e+00 : f32
    %85 = vector.shape_cast %84 : vector<1x256xi1> to vector<1x256xi1>
    %86 = vector.broadcast %85 : vector<1x256xi1> to vector<8x256xi1>
    %87 = vector.broadcast %cst_26 : f32 to vector<8x256xf32>
    %88 = arith.select %86, %79, %87 : vector<8x256xi1>, vector<8x256xf32>
    %89 = arith.truncf %88 : vector<8x256xf32> to vector<8x256xbf16>
    %90 = vector.extract_strided_slice %13 {offsets = [0, 71], sizes = [8, 256], strides = [1, 1]} : vector<8x512xf32> to vector<8x256xf32>
    %c1_i32_27 = arith.constant 1 : i32
    %91 = vector.broadcast %c1_i32_27 : i32 to vector<1x256xi32>
    %92 = arith.cmpi sge, %19, %91 : vector<1x256xi32>
    %c7_i32_28 = arith.constant 7 : i32
    %93 = vector.broadcast %c7_i32_28 : i32 to vector<1x256xi32>
    %94 = arith.cmpi slt, %16, %93 : vector<1x256xi32>
    %c1_i32_29 = arith.constant 1 : i32
    %95 = vector.broadcast %c1_i32_29 : i32 to vector<1x256xi32>
    %96 = arith.cmpi sge, %17, %95 : vector<1x256xi32>
    %97 = arith.andi %92, %94 : vector<1x256xi1>
    %98 = arith.andi %97, %96 : vector<1x256xi1>
    %cst_30 = arith.constant 0.000000e+00 : f32
    %99 = vector.shape_cast %98 : vector<1x256xi1> to vector<1x256xi1>
    %100 = vector.broadcast %99 : vector<1x256xi1> to vector<8x256xi1>
    %101 = vector.broadcast %cst_30 : f32 to vector<8x256xf32>
    %102 = arith.select %100, %90, %101 : vector<8x256xi1>, vector<8x256xf32>
    %103 = arith.truncf %102 : vector<8x256xf32> to vector<8x256xbf16>
    %104 = vector.extract_strided_slice %13 {offsets = [0, 72], sizes = [8, 256], strides = [1, 1]} : vector<8x512xf32> to vector<8x256xf32>
    %c1_i32_31 = arith.constant 1 : i32
    %105 = vector.broadcast %c1_i32_31 : i32 to vector<1x256xi32>
    %106 = arith.cmpi sge, %19, %105 : vector<1x256xi32>
    %c7_i32_32 = arith.constant 7 : i32
    %107 = vector.broadcast %c7_i32_32 : i32 to vector<1x256xi32>
    %108 = arith.cmpi slt, %16, %107 : vector<1x256xi32>
    %109 = arith.andi %106, %108 : vector<1x256xi1>
    %cst_33 = arith.constant 0.000000e+00 : f32
    %110 = vector.shape_cast %109 : vector<1x256xi1> to vector<1x256xi1>
    %111 = vector.broadcast %110 : vector<1x256xi1> to vector<8x256xi1>
    %112 = vector.broadcast %cst_33 : f32 to vector<8x256xf32>
    %113 = arith.select %111, %104, %112 : vector<8x256xi1>, vector<8x256xf32>
    %114 = arith.truncf %113 : vector<8x256xf32> to vector<8x256xbf16>
    %115 = vector.extract_strided_slice %13 {offsets = [0, 73], sizes = [8, 256], strides = [1, 1]} : vector<8x512xf32> to vector<8x256xf32>
    %c1_i32_34 = arith.constant 1 : i32
    %116 = vector.broadcast %c1_i32_34 : i32 to vector<1x256xi32>
    %117 = arith.cmpi sge, %19, %116 : vector<1x256xi32>
    %c7_i32_35 = arith.constant 7 : i32
    %118 = vector.broadcast %c7_i32_35 : i32 to vector<1x256xi32>
    %119 = arith.cmpi slt, %16, %118 : vector<1x256xi32>
    %c7_i32_36 = arith.constant 7 : i32
    %120 = vector.broadcast %c7_i32_36 : i32 to vector<1x256xi32>
    %121 = arith.cmpi slt, %17, %120 : vector<1x256xi32>
    %122 = arith.andi %117, %119 : vector<1x256xi1>
    %123 = arith.andi %122, %121 : vector<1x256xi1>
    %cst_37 = arith.constant 0.000000e+00 : f32
    %124 = vector.shape_cast %123 : vector<1x256xi1> to vector<1x256xi1>
    %125 = vector.broadcast %124 : vector<1x256xi1> to vector<8x256xi1>
    %126 = vector.broadcast %cst_37 : f32 to vector<8x256xf32>
    %127 = arith.select %125, %115, %126 : vector<8x256xi1>, vector<8x256xf32>
    %128 = arith.truncf %127 : vector<8x256xf32> to vector<8x256xbf16>
    %129 = tpu.concatenate %34, %45, %59, %70, %78, %89, %103, %114, %128 in 0 : vector<8x256xbf16>, vector<8x256xbf16>, vector<8x256xbf16>, vector<8x256xbf16>, vector<8x256xbf16>, vector<8x256xbf16>, vector<8x256xbf16>, vector<8x256xbf16>, vector<8x256xbf16> -> vector<72x256xbf16>
    %c0_38 = arith.constant 0 : index
    %c0_39 = arith.constant 0 : index
    %c0_40 = arith.constant 0 : index
    %130 = vector.load %arg5[%c0_38, %c0_39, %c0_40] : memref<3x8x72xbf16, #tpu.memory_space<vmem>>, vector<1x8x72xbf16>
    %131 = vector.shape_cast %130 : vector<1x8x72xbf16> to vector<8x72xbf16>
    %cst_41 = arith.constant dense<0.000000e+00> : vector<8x256xf32>
    %132 = tpu.matmul %131, %129, %cst_41 {dimension_numbers = #tpu.dot_dimension_numbers<[1], [0], [0], [1], [0, 0, 1, 1], [], []>} : vector<8x72xbf16>, vector<72x256xbf16>, vector<8x256xf32> -> vector<8x256xf32>
    %133 = arith.addf %20, %132 : vector<8x256xf32>
    %134 = vector.extract_strided_slice %13 {offsets = [0, 119], sizes = [8, 256], strides = [1, 1]} : vector<8x512xf32> to vector<8x256xf32>
    %c1_i32_42 = arith.constant 1 : i32
    %135 = vector.broadcast %c1_i32_42 : i32 to vector<1x256xi32>
    %136 = arith.cmpi sge, %16, %135 : vector<1x256xi32>
    %c1_i32_43 = arith.constant 1 : i32
    %137 = vector.broadcast %c1_i32_43 : i32 to vector<1x256xi32>
    %138 = arith.cmpi sge, %17, %137 : vector<1x256xi32>
    %139 = arith.andi %136, %138 : vector<1x256xi1>
    %cst_44 = arith.constant 0.000000e+00 : f32
    %140 = vector.shape_cast %139 : vector<1x256xi1> to vector<1x256xi1>
    %141 = vector.broadcast %140 : vector<1x256xi1> to vector<8x256xi1>
    %142 = vector.broadcast %cst_44 : f32 to vector<8x256xf32>
    %143 = arith.select %141, %134, %142 : vector<8x256xi1>, vector<8x256xf32>
    %144 = arith.truncf %143 : vector<8x256xf32> to vector<8x256xbf16>
    %145 = vector.extract_strided_slice %13 {offsets = [0, 120], sizes = [8, 256], strides = [1, 1]} : vector<8x512xf32> to vector<8x256xf32>
    %c1_i32_45 = arith.constant 1 : i32
    %146 = vector.broadcast %c1_i32_45 : i32 to vector<1x256xi32>
    %147 = arith.cmpi sge, %16, %146 : vector<1x256xi32>
    %cst_46 = arith.constant 0.000000e+00 : f32
    %148 = vector.shape_cast %147 : vector<1x256xi1> to vector<1x256xi1>
    %149 = vector.broadcast %148 : vector<1x256xi1> to vector<8x256xi1>
    %150 = vector.broadcast %cst_46 : f32 to vector<8x256xf32>
    %151 = arith.select %149, %145, %150 : vector<8x256xi1>, vector<8x256xf32>
    %152 = arith.truncf %151 : vector<8x256xf32> to vector<8x256xbf16>
    %153 = vector.extract_strided_slice %13 {offsets = [0, 121], sizes = [8, 256], strides = [1, 1]} : vector<8x512xf32> to vector<8x256xf32>
    %c1_i32_47 = arith.constant 1 : i32
    %154 = vector.broadcast %c1_i32_47 : i32 to vector<1x256xi32>
    %155 = arith.cmpi sge, %16, %154 : vector<1x256xi32>
    %c7_i32_48 = arith.constant 7 : i32
    %156 = vector.broadcast %c7_i32_48 : i32 to vector<1x256xi32>
    %157 = arith.cmpi slt, %17, %156 : vector<1x256xi32>
    %158 = arith.andi %155, %157 : vector<1x256xi1>
    %cst_49 = arith.constant 0.000000e+00 : f32
    %159 = vector.shape_cast %158 : vector<1x256xi1> to vector<1x256xi1>
    %160 = vector.broadcast %159 : vector<1x256xi1> to vector<8x256xi1>
    %161 = vector.broadcast %cst_49 : f32 to vector<8x256xf32>
    %162 = arith.select %160, %153, %161 : vector<8x256xi1>, vector<8x256xf32>
    %163 = arith.truncf %162 : vector<8x256xf32> to vector<8x256xbf16>
    %164 = vector.extract_strided_slice %13 {offsets = [0, 127], sizes = [8, 256], strides = [1, 1]} : vector<8x512xf32> to vector<8x256xf32>
    %c1_i32_50 = arith.constant 1 : i32
    %165 = vector.broadcast %c1_i32_50 : i32 to vector<1x256xi32>
    %166 = arith.cmpi sge, %17, %165 : vector<1x256xi32>
    %cst_51 = arith.constant 0.000000e+00 : f32
    %167 = vector.shape_cast %166 : vector<1x256xi1> to vector<1x256xi1>
    %168 = vector.broadcast %167 : vector<1x256xi1> to vector<8x256xi1>
    %169 = vector.broadcast %cst_51 : f32 to vector<8x256xf32>
    %170 = arith.select %168, %164, %169 : vector<8x256xi1>, vector<8x256xf32>
    %171 = arith.truncf %170 : vector<8x256xf32> to vector<8x256xbf16>
    %172 = vector.extract_strided_slice %13 {offsets = [0, 128], sizes = [8, 256], strides = [1, 1]} : vector<8x512xf32> to vector<8x256xf32>
    %173 = arith.truncf %172 : vector<8x256xf32> to vector<8x256xbf16>
    %174 = vector.extract_strided_slice %13 {offsets = [0, 129], sizes = [8, 256], strides = [1, 1]} : vector<8x512xf32> to vector<8x256xf32>
    %c7_i32_52 = arith.constant 7 : i32
    %175 = vector.broadcast %c7_i32_52 : i32 to vector<1x256xi32>
    %176 = arith.cmpi slt, %17, %175 : vector<1x256xi32>
    %cst_53 = arith.constant 0.000000e+00 : f32
    %177 = vector.shape_cast %176 : vector<1x256xi1> to vector<1x256xi1>
    %178 = vector.broadcast %177 : vector<1x256xi1> to vector<8x256xi1>
    %179 = vector.broadcast %cst_53 : f32 to vector<8x256xf32>
    %180 = arith.select %178, %174, %179 : vector<8x256xi1>, vector<8x256xf32>
    %181 = arith.truncf %180 : vector<8x256xf32> to vector<8x256xbf16>
    %182 = vector.extract_strided_slice %13 {offsets = [0, 135], sizes = [8, 256], strides = [1, 1]} : vector<8x512xf32> to vector<8x256xf32>
    %c7_i32_54 = arith.constant 7 : i32
    %183 = vector.broadcast %c7_i32_54 : i32 to vector<1x256xi32>
    %184 = arith.cmpi slt, %16, %183 : vector<1x256xi32>
    %c1_i32_55 = arith.constant 1 : i32
    %185 = vector.broadcast %c1_i32_55 : i32 to vector<1x256xi32>
    %186 = arith.cmpi sge, %17, %185 : vector<1x256xi32>
    %187 = arith.andi %184, %186 : vector<1x256xi1>
    %cst_56 = arith.constant 0.000000e+00 : f32
    %188 = vector.shape_cast %187 : vector<1x256xi1> to vector<1x256xi1>
    %189 = vector.broadcast %188 : vector<1x256xi1> to vector<8x256xi1>
    %190 = vector.broadcast %cst_56 : f32 to vector<8x256xf32>
    %191 = arith.select %189, %182, %190 : vector<8x256xi1>, vector<8x256xf32>
    %192 = arith.truncf %191 : vector<8x256xf32> to vector<8x256xbf16>
    %193 = vector.extract_strided_slice %13 {offsets = [0, 136], sizes = [8, 256], strides = [1, 1]} : vector<8x512xf32> to vector<8x256xf32>
    %c7_i32_57 = arith.constant 7 : i32
    %194 = vector.broadcast %c7_i32_57 : i32 to vector<1x256xi32>
    %195 = arith.cmpi slt, %16, %194 : vector<1x256xi32>
    %cst_58 = arith.constant 0.000000e+00 : f32
    %196 = vector.shape_cast %195 : vector<1x256xi1> to vector<1x256xi1>
    %197 = vector.broadcast %196 : vector<1x256xi1> to vector<8x256xi1>
    %198 = vector.broadcast %cst_58 : f32 to vector<8x256xf32>
    %199 = arith.select %197, %193, %198 : vector<8x256xi1>, vector<8x256xf32>
    %200 = arith.truncf %199 : vector<8x256xf32> to vector<8x256xbf16>
    %201 = vector.extract_strided_slice %13 {offsets = [0, 137], sizes = [8, 256], strides = [1, 1]} : vector<8x512xf32> to vector<8x256xf32>
    %c7_i32_59 = arith.constant 7 : i32
    %202 = vector.broadcast %c7_i32_59 : i32 to vector<1x256xi32>
    %203 = arith.cmpi slt, %16, %202 : vector<1x256xi32>
    %c7_i32_60 = arith.constant 7 : i32
    %204 = vector.broadcast %c7_i32_60 : i32 to vector<1x256xi32>
    %205 = arith.cmpi slt, %17, %204 : vector<1x256xi32>
    %206 = arith.andi %203, %205 : vector<1x256xi1>
    %cst_61 = arith.constant 0.000000e+00 : f32
    %207 = vector.shape_cast %206 : vector<1x256xi1> to vector<1x256xi1>
    %208 = vector.broadcast %207 : vector<1x256xi1> to vector<8x256xi1>
    %209 = vector.broadcast %cst_61 : f32 to vector<8x256xf32>
    %210 = arith.select %208, %201, %209 : vector<8x256xi1>, vector<8x256xf32>
    %211 = arith.truncf %210 : vector<8x256xf32> to vector<8x256xbf16>
    %212 = tpu.concatenate %144, %152, %163, %171, %173, %181, %192, %200, %211 in 0 : vector<8x256xbf16>, vector<8x256xbf16>, vector<8x256xbf16>, vector<8x256xbf16>, vector<8x256xbf16>, vector<8x256xbf16>, vector<8x256xbf16>, vector<8x256xbf16>, vector<8x256xbf16> -> vector<72x256xbf16>
    %c1_62 = arith.constant 1 : index
    %c0_63 = arith.constant 0 : index
    %c0_64 = arith.constant 0 : index
    %213 = vector.load %arg5[%c1_62, %c0_63, %c0_64] : memref<3x8x72xbf16, #tpu.memory_space<vmem>>, vector<1x8x72xbf16>
    %214 = vector.shape_cast %213 : vector<1x8x72xbf16> to vector<8x72xbf16>
    %cst_65 = arith.constant dense<0.000000e+00> : vector<8x256xf32>
    %215 = tpu.matmul %214, %212, %cst_65 {dimension_numbers = #tpu.dot_dimension_numbers<[1], [0], [0], [1], [0, 0, 1, 1], [], []>} : vector<8x72xbf16>, vector<72x256xbf16>, vector<8x256xf32> -> vector<8x256xf32>
    %216 = arith.addf %133, %215 : vector<8x256xf32>
    %217 = vector.extract_strided_slice %13 {offsets = [0, 183], sizes = [8, 256], strides = [1, 1]} : vector<8x512xf32> to vector<8x256xf32>
    %c7_i32_66 = arith.constant 7 : i32
    %218 = vector.broadcast %c7_i32_66 : i32 to vector<1x256xi32>
    %219 = arith.cmpi slt, %19, %218 : vector<1x256xi32>
    %c1_i32_67 = arith.constant 1 : i32
    %220 = vector.broadcast %c1_i32_67 : i32 to vector<1x256xi32>
    %221 = arith.cmpi sge, %16, %220 : vector<1x256xi32>
    %c1_i32_68 = arith.constant 1 : i32
    %222 = vector.broadcast %c1_i32_68 : i32 to vector<1x256xi32>
    %223 = arith.cmpi sge, %17, %222 : vector<1x256xi32>
    %224 = arith.andi %219, %221 : vector<1x256xi1>
    %225 = arith.andi %224, %223 : vector<1x256xi1>
    %cst_69 = arith.constant 0.000000e+00 : f32
    %226 = vector.shape_cast %225 : vector<1x256xi1> to vector<1x256xi1>
    %227 = vector.broadcast %226 : vector<1x256xi1> to vector<8x256xi1>
    %228 = vector.broadcast %cst_69 : f32 to vector<8x256xf32>
    %229 = arith.select %227, %217, %228 : vector<8x256xi1>, vector<8x256xf32>
    %230 = arith.truncf %229 : vector<8x256xf32> to vector<8x256xbf16>
    %231 = vector.extract_strided_slice %13 {offsets = [0, 184], sizes = [8, 256], strides = [1, 1]} : vector<8x512xf32> to vector<8x256xf32>
    %c7_i32_70 = arith.constant 7 : i32
    %232 = vector.broadcast %c7_i32_70 : i32 to vector<1x256xi32>
    %233 = arith.cmpi slt, %19, %232 : vector<1x256xi32>
    %c1_i32_71 = arith.constant 1 : i32
    %234 = vector.broadcast %c1_i32_71 : i32 to vector<1x256xi32>
    %235 = arith.cmpi sge, %16, %234 : vector<1x256xi32>
    %236 = arith.andi %233, %235 : vector<1x256xi1>
    %cst_72 = arith.constant 0.000000e+00 : f32
    %237 = vector.shape_cast %236 : vector<1x256xi1> to vector<1x256xi1>
    %238 = vector.broadcast %237 : vector<1x256xi1> to vector<8x256xi1>
    %239 = vector.broadcast %cst_72 : f32 to vector<8x256xf32>
    %240 = arith.select %238, %231, %239 : vector<8x256xi1>, vector<8x256xf32>
    %241 = arith.truncf %240 : vector<8x256xf32> to vector<8x256xbf16>
    %242 = vector.extract_strided_slice %13 {offsets = [0, 185], sizes = [8, 256], strides = [1, 1]} : vector<8x512xf32> to vector<8x256xf32>
    %c7_i32_73 = arith.constant 7 : i32
    %243 = vector.broadcast %c7_i32_73 : i32 to vector<1x256xi32>
    %244 = arith.cmpi slt, %19, %243 : vector<1x256xi32>
    %c1_i32_74 = arith.constant 1 : i32
    %245 = vector.broadcast %c1_i32_74 : i32 to vector<1x256xi32>
    %246 = arith.cmpi sge, %16, %245 : vector<1x256xi32>
    %c7_i32_75 = arith.constant 7 : i32
    %247 = vector.broadcast %c7_i32_75 : i32 to vector<1x256xi32>
    %248 = arith.cmpi slt, %17, %247 : vector<1x256xi32>
    %249 = arith.andi %244, %246 : vector<1x256xi1>
    %250 = arith.andi %249, %248 : vector<1x256xi1>
    %cst_76 = arith.constant 0.000000e+00 : f32
    %251 = vector.shape_cast %250 : vector<1x256xi1> to vector<1x256xi1>
    %252 = vector.broadcast %251 : vector<1x256xi1> to vector<8x256xi1>
    %253 = vector.broadcast %cst_76 : f32 to vector<8x256xf32>
    %254 = arith.select %252, %242, %253 : vector<8x256xi1>, vector<8x256xf32>
    %255 = arith.truncf %254 : vector<8x256xf32> to vector<8x256xbf16>
    %256 = vector.extract_strided_slice %13 {offsets = [0, 191], sizes = [8, 256], strides = [1, 1]} : vector<8x512xf32> to vector<8x256xf32>
    %c7_i32_77 = arith.constant 7 : i32
    %257 = vector.broadcast %c7_i32_77 : i32 to vector<1x256xi32>
    %258 = arith.cmpi slt, %19, %257 : vector<1x256xi32>
    %c1_i32_78 = arith.constant 1 : i32
    %259 = vector.broadcast %c1_i32_78 : i32 to vector<1x256xi32>
    %260 = arith.cmpi sge, %17, %259 : vector<1x256xi32>
    %261 = arith.andi %258, %260 : vector<1x256xi1>
    %cst_79 = arith.constant 0.000000e+00 : f32
    %262 = vector.shape_cast %261 : vector<1x256xi1> to vector<1x256xi1>
    %263 = vector.broadcast %262 : vector<1x256xi1> to vector<8x256xi1>
    %264 = vector.broadcast %cst_79 : f32 to vector<8x256xf32>
    %265 = arith.select %263, %256, %264 : vector<8x256xi1>, vector<8x256xf32>
    %266 = arith.truncf %265 : vector<8x256xf32> to vector<8x256xbf16>
    %267 = vector.extract_strided_slice %13 {offsets = [0, 192], sizes = [8, 256], strides = [1, 1]} : vector<8x512xf32> to vector<8x256xf32>
    %c7_i32_80 = arith.constant 7 : i32
    %268 = vector.broadcast %c7_i32_80 : i32 to vector<1x256xi32>
    %269 = arith.cmpi slt, %19, %268 : vector<1x256xi32>
    %cst_81 = arith.constant 0.000000e+00 : f32
    %270 = vector.shape_cast %269 : vector<1x256xi1> to vector<1x256xi1>
    %271 = vector.broadcast %270 : vector<1x256xi1> to vector<8x256xi1>
    %272 = vector.broadcast %cst_81 : f32 to vector<8x256xf32>
    %273 = arith.select %271, %267, %272 : vector<8x256xi1>, vector<8x256xf32>
    %274 = arith.truncf %273 : vector<8x256xf32> to vector<8x256xbf16>
    %275 = vector.extract_strided_slice %13 {offsets = [0, 193], sizes = [8, 256], strides = [1, 1]} : vector<8x512xf32> to vector<8x256xf32>
    %c7_i32_82 = arith.constant 7 : i32
    %276 = vector.broadcast %c7_i32_82 : i32 to vector<1x256xi32>
    %277 = arith.cmpi slt, %19, %276 : vector<1x256xi32>
    %c7_i32_83 = arith.constant 7 : i32
    %278 = vector.broadcast %c7_i32_83 : i32 to vector<1x256xi32>
    %279 = arith.cmpi slt, %17, %278 : vector<1x256xi32>
    %280 = arith.andi %277, %279 : vector<1x256xi1>
    %cst_84 = arith.constant 0.000000e+00 : f32
    %281 = vector.shape_cast %280 : vector<1x256xi1> to vector<1x256xi1>
    %282 = vector.broadcast %281 : vector<1x256xi1> to vector<8x256xi1>
    %283 = vector.broadcast %cst_84 : f32 to vector<8x256xf32>
    %284 = arith.select %282, %275, %283 : vector<8x256xi1>, vector<8x256xf32>
    %285 = arith.truncf %284 : vector<8x256xf32> to vector<8x256xbf16>
    %286 = vector.extract_strided_slice %13 {offsets = [0, 199], sizes = [8, 256], strides = [1, 1]} : vector<8x512xf32> to vector<8x256xf32>
    %c7_i32_85 = arith.constant 7 : i32
    %287 = vector.broadcast %c7_i32_85 : i32 to vector<1x256xi32>
    %288 = arith.cmpi slt, %19, %287 : vector<1x256xi32>
    %c7_i32_86 = arith.constant 7 : i32
    %289 = vector.broadcast %c7_i32_86 : i32 to vector<1x256xi32>
    %290 = arith.cmpi slt, %16, %289 : vector<1x256xi32>
    %c1_i32_87 = arith.constant 1 : i32
    %291 = vector.broadcast %c1_i32_87 : i32 to vector<1x256xi32>
    %292 = arith.cmpi sge, %17, %291 : vector<1x256xi32>
    %293 = arith.andi %288, %290 : vector<1x256xi1>
    %294 = arith.andi %293, %292 : vector<1x256xi1>
    %cst_88 = arith.constant 0.000000e+00 : f32
    %295 = vector.shape_cast %294 : vector<1x256xi1> to vector<1x256xi1>
    %296 = vector.broadcast %295 : vector<1x256xi1> to vector<8x256xi1>
    %297 = vector.broadcast %cst_88 : f32 to vector<8x256xf32>
    %298 = arith.select %296, %286, %297 : vector<8x256xi1>, vector<8x256xf32>
    %299 = arith.truncf %298 : vector<8x256xf32> to vector<8x256xbf16>
    %300 = vector.extract_strided_slice %13 {offsets = [0, 200], sizes = [8, 256], strides = [1, 1]} : vector<8x512xf32> to vector<8x256xf32>
    %c7_i32_89 = arith.constant 7 : i32
    %301 = vector.broadcast %c7_i32_89 : i32 to vector<1x256xi32>
    %302 = arith.cmpi slt, %19, %301 : vector<1x256xi32>
    %c7_i32_90 = arith.constant 7 : i32
    %303 = vector.broadcast %c7_i32_90 : i32 to vector<1x256xi32>
    %304 = arith.cmpi slt, %16, %303 : vector<1x256xi32>
    %305 = arith.andi %302, %304 : vector<1x256xi1>
    %cst_91 = arith.constant 0.000000e+00 : f32
    %306 = vector.shape_cast %305 : vector<1x256xi1> to vector<1x256xi1>
    %307 = vector.broadcast %306 : vector<1x256xi1> to vector<8x256xi1>
    %308 = vector.broadcast %cst_91 : f32 to vector<8x256xf32>
    %309 = arith.select %307, %300, %308 : vector<8x256xi1>, vector<8x256xf32>
    %310 = arith.truncf %309 : vector<8x256xf32> to vector<8x256xbf16>
    %311 = vector.extract_strided_slice %13 {offsets = [0, 201], sizes = [8, 256], strides = [1, 1]} : vector<8x512xf32> to vector<8x256xf32>
    %c7_i32_92 = arith.constant 7 : i32
    %312 = vector.broadcast %c7_i32_92 : i32 to vector<1x256xi32>
    %313 = arith.cmpi slt, %19, %312 : vector<1x256xi32>
    %c7_i32_93 = arith.constant 7 : i32
    %314 = vector.broadcast %c7_i32_93 : i32 to vector<1x256xi32>
    %315 = arith.cmpi slt, %16, %314 : vector<1x256xi32>
    %c7_i32_94 = arith.constant 7 : i32
    %316 = vector.broadcast %c7_i32_94 : i32 to vector<1x256xi32>
    %317 = arith.cmpi slt, %17, %316 : vector<1x256xi32>
    %318 = arith.andi %313, %315 : vector<1x256xi1>
    %319 = arith.andi %318, %317 : vector<1x256xi1>
    %cst_95 = arith.constant 0.000000e+00 : f32
    %320 = vector.shape_cast %319 : vector<1x256xi1> to vector<1x256xi1>
    %321 = vector.broadcast %320 : vector<1x256xi1> to vector<8x256xi1>
    %322 = vector.broadcast %cst_95 : f32 to vector<8x256xf32>
    %323 = arith.select %321, %311, %322 : vector<8x256xi1>, vector<8x256xf32>
    %324 = arith.truncf %323 : vector<8x256xf32> to vector<8x256xbf16>
    %325 = tpu.concatenate %230, %241, %255, %266, %274, %285, %299, %310, %324 in 0 : vector<8x256xbf16>, vector<8x256xbf16>, vector<8x256xbf16>, vector<8x256xbf16>, vector<8x256xbf16>, vector<8x256xbf16>, vector<8x256xbf16>, vector<8x256xbf16>, vector<8x256xbf16> -> vector<72x256xbf16>
    %c2_96 = arith.constant 2 : index
    %c0_97 = arith.constant 0 : index
    %c0_98 = arith.constant 0 : index
    %326 = vector.load %arg5[%c2_96, %c0_97, %c0_98] : memref<3x8x72xbf16, #tpu.memory_space<vmem>>, vector<1x8x72xbf16>
    %327 = vector.shape_cast %326 : vector<1x8x72xbf16> to vector<8x72xbf16>
    %cst_99 = arith.constant dense<0.000000e+00> : vector<8x256xf32>
    %328 = tpu.matmul %327, %325, %cst_99 {dimension_numbers = #tpu.dot_dimension_numbers<[1], [0], [0], [1], [0, 0, 1, 1], [], []>} : vector<8x72xbf16>, vector<72x256xbf16>, vector<8x256xf32> -> vector<8x256xf32>
    %329 = arith.addf %216, %328 : vector<8x256xf32>
    %c0_100 = arith.constant 0 : index
    %c0_101 = arith.constant 0 : index
    %c0_102 = arith.constant 0 : index
    %330 = vector.load %arg7[%c0_100, %c0_101, %c0_102] : memref<1x8x256xf32, #tpu.memory_space<vmem>>, vector<1x8x256xf32>
    %331 = vector.shape_cast %330 : vector<1x8x256xf32> to vector<8x256xf32>
    %332 = vector.shape_cast %329 : vector<8x256xf32> to vector<1x8x256xf32>
    tpu.vector_store %arg7[%c0_100, %c0_101, %c0_102], %332 {strides = array<i32>} : memref<1x8x256xf32, #tpu.memory_space<vmem>>, vector<1x8x256xf32>,
    %cst_103 = arith.constant dense<0.000000e+00> : vector<8xf32>
    %333 = vector.multi_reduction <add>, %329, %cst_103 [1] : vector<8x256xf32> to vector<8xf32>
    %334 = vector.shape_cast %333 : vector<8xf32> to vector<8x1xf32>
    %c0_104 = arith.constant 0 : index
    %c0_105 = arith.constant 0 : index
    %c0_106 = arith.constant 0 : index
    %c0_107 = arith.constant 0 : index
    %335 = vector.load %arg8[%c0_104, %c0_105, %c0_106, %c0_107] : memref<1x1x8x2xf32, #tpu.memory_space<vmem>>, vector<1x1x8x1xf32>
    %336 = vector.shape_cast %335 : vector<1x1x8x1xf32> to vector<8x1xf32>
    %337 = vector.shape_cast %334 : vector<8x1xf32> to vector<1x1x8x1xf32>
    tpu.vector_store %arg8[%c0_104, %c0_105, %c0_106, %c0_107], %337 {strides = array<i32>} : memref<1x1x8x2xf32, #tpu.memory_space<vmem>>, vector<1x1x8x1xf32>,
    %338 = arith.mulf %329, %329 : vector<8x256xf32>
    %cst_108 = arith.constant dense<0.000000e+00> : vector<8xf32>
    %339 = vector.multi_reduction <add>, %338, %cst_108 [1] : vector<8x256xf32> to vector<8xf32>
    %340 = vector.shape_cast %339 : vector<8xf32> to vector<8x1xf32>
    %c0_109 = arith.constant 0 : index
    %c0_110 = arith.constant 0 : index
    %c0_111 = arith.constant 0 : index
    %c1_112 = arith.constant 1 : index
    %341 = vector.load %arg8[%c0_109, %c0_110, %c0_111, %c1_112] : memref<1x1x8x2xf32, #tpu.memory_space<vmem>>, vector<1x1x8x1xf32>
    %342 = vector.shape_cast %341 : vector<1x1x8x1xf32> to vector<8x1xf32>
    %343 = vector.shape_cast %340 : vector<8x1xf32> to vector<1x1x8x1xf32>
    tpu.vector_store %arg8[%c0_109, %c0_110, %c0_111, %c1_112], %343 {strides = array<i32>} : memref<1x1x8x2xf32, #tpu.memory_space<vmem>>, vector<1x1x8x1xf32>,
    return
  }
  func.func @transform_0(%arg0: i32, %arg1: i32) -> (i32, i32, i32) {
    %c0_i32 = arith.constant 0 : i32
    %c0_i32_0 = arith.constant 0 : i32
    %c0_i32_1 = arith.constant 0 : i32
    return %arg0, %c0_i32, %c0_i32_0 : i32, i32, i32
  }
  func.func @transform_1(%arg0: i32, %arg1: i32) -> (i32, i32) {
    %c0_i32 = arith.constant 0 : i32
    %c0_i32_0 = arith.constant 0 : i32
    %c0_i32_1 = arith.constant 0 : i32
    return %c0_i32, %c0_i32_0 : i32, i32
  }
  func.func @transform_2(%arg0: i32, %arg1: i32) -> (i32, i32) {
    %c0_i32 = arith.constant 0 : i32
    %c0_i32_0 = arith.constant 0 : i32
    %c0_i32_1 = arith.constant 0 : i32
    return %c0_i32, %c0_i32_0 : i32, i32
  }
  func.func @transform_3(%arg0: i32, %arg1: i32) -> (i32, i32, i32) {
    %c0_i32 = arith.constant 0 : i32
    %c0_i32_0 = arith.constant 0 : i32
    %c0_i32_1 = arith.constant 0 : i32
    %c0_i32_2 = arith.constant 0 : i32
    return %c0_i32, %c0_i32_0, %c0_i32_1 : i32, i32, i32
  }
  func.func @transform_4(%arg0: i32, %arg1: i32) -> (i32, i32) {
    %c0_i32 = arith.constant 0 : i32
    %c0_i32_0 = arith.constant 0 : i32
    %c0_i32_1 = arith.constant 0 : i32
    return %c0_i32, %c0_i32_0 : i32, i32
  }
  func.func @transform_5(%arg0: i32, %arg1: i32) -> (i32, i32, i32) {
    %c0_i32 = arith.constant 0 : i32
    %c0_i32_0 = arith.constant 0 : i32
    return %arg0, %c0_i32, %arg1 : i32, i32, i32
  }
  func.func @transform_6(%arg0: i32, %arg1: i32) -> (i32, i32, i32, i32) {
    %c0_i32 = arith.constant 0 : i32
    %c0_i32_0 = arith.constant 0 : i32
    %c0_i32_1 = arith.constant 0 : i32
    return %arg0, %arg1, %c0_i32, %c0_i32_0 : i32, i32, i32, i32
  }
}

module attributes {stable_mosaic.version = 11 : i64} {
  func.func @kernel(%arg0: i32, %arg1: i32, %arg2: memref<1x8x768xf32, #tpu.memory_space<vmem>>, %arg3: memref<3x8x72xbf16, #tpu.memory_space<vmem>>, %arg4: memref<3x256xi32, #tpu.memory_space<vmem>>, %arg5: memref<1x8x256xbf16, #tpu.memory_space<vmem>>, %arg6: memref<1x1x8x2xf32, #tpu.memory_space<vmem>>) attributes {dimension_semantics = [#tpu.dimension_semantics<parallel>, #tpu.dimension_semantics<parallel>], iteration_bounds = array<i64: 2, 2>, scalar_prefetch = 0 : i64, scratch_operands = 0 : i64, tpu.core_type = #tpu.core_type<tc>, window_params = [{transform_indices = @transform_0, window_bounds = array<i64: 1, 8, 768>}, {pipeline_mode = #tpu.pipeline_mode<synchronous>, transform_indices = @transform_1, window_bounds = array<i64: 3, 8, 72>}, {pipeline_mode = #tpu.pipeline_mode<synchronous>, transform_indices = @transform_2, window_bounds = array<i64: 3, 256>}, {transform_indices = @transform_3, window_bounds = array<i64: 1, 8, 256>}, {transform_indices = @transform_4, window_bounds = array<i64: 1, 1, 8, 2>}]} {
    %c256_i32 = arith.constant 256 : i32
    %0 = arith.muli %arg1, %c256_i32 : i32
    %1 = tpu.assume_multiple %0, 256 : i32
    %c0 = arith.constant 0 : index
    %c0_0 = arith.constant 0 : index
    %2 = arith.index_cast %1 : i32 to index
    %3 = vector.load %arg2[%c0, %c0_0, %2] : memref<1x8x768xf32, #tpu.memory_space<vmem>>, vector<1x8x512xf32>
    %4 = vector.shape_cast %3 : vector<1x8x512xf32> to vector<8x512xf32>
    %c4_i32 = arith.constant 4 : i32
    %5 = arith.muli %arg1, %c4_i32 : i32
    %c0_1 = arith.constant 0 : index
    %c0_2 = arith.constant 0 : index
    %6 = vector.load %arg4[%c0_1, %c0_2] : memref<3x256xi32, #tpu.memory_space<vmem>>, vector<1x256xi32>
    %c1 = arith.constant 1 : index
    %c0_3 = arith.constant 0 : index
    %7 = vector.load %arg4[%c1, %c0_3] : memref<3x256xi32, #tpu.memory_space<vmem>>, vector<1x256xi32>
    %c2 = arith.constant 2 : index
    %c0_4 = arith.constant 0 : index
    %8 = vector.load %arg4[%c2, %c0_4] : memref<3x256xi32, #tpu.memory_space<vmem>>, vector<1x256xi32>
    %9 = vector.broadcast %5 : i32 to vector<1x256xi32>
    %10 = arith.addi %6, %9 : vector<1x256xi32>
    %cst = arith.constant 0.000000e+00 : f32
    %11 = vector.broadcast %cst : f32 to vector<8x256xf32>
    %12 = vector.extract_strided_slice %4 {offsets = [0, 55], sizes = [8, 256], strides = [1, 1]} : vector<8x512xf32> to vector<8x256xf32>
    %c1_i32 = arith.constant 1 : i32
    %13 = vector.broadcast %c1_i32 : i32 to vector<1x256xi32>
    %14 = arith.cmpi sge, %10, %13 : vector<1x256xi32>
    %c1_i32_5 = arith.constant 1 : i32
    %15 = vector.broadcast %c1_i32_5 : i32 to vector<1x256xi32>
    %16 = arith.cmpi sge, %7, %15 : vector<1x256xi32>
    %c1_i32_6 = arith.constant 1 : i32
    %17 = vector.broadcast %c1_i32_6 : i32 to vector<1x256xi32>
    %18 = arith.cmpi sge, %8, %17 : vector<1x256xi32>
    %19 = arith.andi %14, %16 : vector<1x256xi1>
    %20 = arith.andi %19, %18 : vector<1x256xi1>
    %cst_7 = arith.constant 0.000000e+00 : f32
    %21 = vector.shape_cast %20 : vector<1x256xi1> to vector<1x256xi1>
    %22 = vector.broadcast %21 : vector<1x256xi1> to vector<8x256xi1>
    %23 = vector.broadcast %cst_7 : f32 to vector<8x256xf32>
    %24 = arith.select %22, %12, %23 : vector<8x256xi1>, vector<8x256xf32>
    %25 = arith.truncf %24 : vector<8x256xf32> to vector<8x256xbf16>
    %26 = vector.extract_strided_slice %4 {offsets = [0, 56], sizes = [8, 256], strides = [1, 1]} : vector<8x512xf32> to vector<8x256xf32>
    %c1_i32_8 = arith.constant 1 : i32
    %27 = vector.broadcast %c1_i32_8 : i32 to vector<1x256xi32>
    %28 = arith.cmpi sge, %10, %27 : vector<1x256xi32>
    %c1_i32_9 = arith.constant 1 : i32
    %29 = vector.broadcast %c1_i32_9 : i32 to vector<1x256xi32>
    %30 = arith.cmpi sge, %7, %29 : vector<1x256xi32>
    %31 = arith.andi %28, %30 : vector<1x256xi1>
    %cst_10 = arith.constant 0.000000e+00 : f32
    %32 = vector.shape_cast %31 : vector<1x256xi1> to vector<1x256xi1>
    %33 = vector.broadcast %32 : vector<1x256xi1> to vector<8x256xi1>
    %34 = vector.broadcast %cst_10 : f32 to vector<8x256xf32>
    %35 = arith.select %33, %26, %34 : vector<8x256xi1>, vector<8x256xf32>
    %36 = arith.truncf %35 : vector<8x256xf32> to vector<8x256xbf16>
    %37 = vector.extract_strided_slice %4 {offsets = [0, 57], sizes = [8, 256], strides = [1, 1]} : vector<8x512xf32> to vector<8x256xf32>
    %c1_i32_11 = arith.constant 1 : i32
    %38 = vector.broadcast %c1_i32_11 : i32 to vector<1x256xi32>
    %39 = arith.cmpi sge, %10, %38 : vector<1x256xi32>
    %c1_i32_12 = arith.constant 1 : i32
    %40 = vector.broadcast %c1_i32_12 : i32 to vector<1x256xi32>
    %41 = arith.cmpi sge, %7, %40 : vector<1x256xi32>
    %c7_i32 = arith.constant 7 : i32
    %42 = vector.broadcast %c7_i32 : i32 to vector<1x256xi32>
    %43 = arith.cmpi slt, %8, %42 : vector<1x256xi32>
    %44 = arith.andi %39, %41 : vector<1x256xi1>
    %45 = arith.andi %44, %43 : vector<1x256xi1>
    %cst_13 = arith.constant 0.000000e+00 : f32
    %46 = vector.shape_cast %45 : vector<1x256xi1> to vector<1x256xi1>
    %47 = vector.broadcast %46 : vector<1x256xi1> to vector<8x256xi1>
    %48 = vector.broadcast %cst_13 : f32 to vector<8x256xf32>
    %49 = arith.select %47, %37, %48 : vector<8x256xi1>, vector<8x256xf32>
    %50 = arith.truncf %49 : vector<8x256xf32> to vector<8x256xbf16>
    %51 = vector.extract_strided_slice %4 {offsets = [0, 63], sizes = [8, 256], strides = [1, 1]} : vector<8x512xf32> to vector<8x256xf32>
    %c1_i32_14 = arith.constant 1 : i32
    %52 = vector.broadcast %c1_i32_14 : i32 to vector<1x256xi32>
    %53 = arith.cmpi sge, %10, %52 : vector<1x256xi32>
    %c1_i32_15 = arith.constant 1 : i32
    %54 = vector.broadcast %c1_i32_15 : i32 to vector<1x256xi32>
    %55 = arith.cmpi sge, %8, %54 : vector<1x256xi32>
    %56 = arith.andi %53, %55 : vector<1x256xi1>
    %cst_16 = arith.constant 0.000000e+00 : f32
    %57 = vector.shape_cast %56 : vector<1x256xi1> to vector<1x256xi1>
    %58 = vector.broadcast %57 : vector<1x256xi1> to vector<8x256xi1>
    %59 = vector.broadcast %cst_16 : f32 to vector<8x256xf32>
    %60 = arith.select %58, %51, %59 : vector<8x256xi1>, vector<8x256xf32>
    %61 = arith.truncf %60 : vector<8x256xf32> to vector<8x256xbf16>
    %62 = vector.extract_strided_slice %4 {offsets = [0, 64], sizes = [8, 256], strides = [1, 1]} : vector<8x512xf32> to vector<8x256xf32>
    %c1_i32_17 = arith.constant 1 : i32
    %63 = vector.broadcast %c1_i32_17 : i32 to vector<1x256xi32>
    %64 = arith.cmpi sge, %10, %63 : vector<1x256xi32>
    %cst_18 = arith.constant 0.000000e+00 : f32
    %65 = vector.shape_cast %64 : vector<1x256xi1> to vector<1x256xi1>
    %66 = vector.broadcast %65 : vector<1x256xi1> to vector<8x256xi1>
    %67 = vector.broadcast %cst_18 : f32 to vector<8x256xf32>
    %68 = arith.select %66, %62, %67 : vector<8x256xi1>, vector<8x256xf32>
    %69 = arith.truncf %68 : vector<8x256xf32> to vector<8x256xbf16>
    %70 = vector.extract_strided_slice %4 {offsets = [0, 65], sizes = [8, 256], strides = [1, 1]} : vector<8x512xf32> to vector<8x256xf32>
    %c1_i32_19 = arith.constant 1 : i32
    %71 = vector.broadcast %c1_i32_19 : i32 to vector<1x256xi32>
    %72 = arith.cmpi sge, %10, %71 : vector<1x256xi32>
    %c7_i32_20 = arith.constant 7 : i32
    %73 = vector.broadcast %c7_i32_20 : i32 to vector<1x256xi32>
    %74 = arith.cmpi slt, %8, %73 : vector<1x256xi32>
    %75 = arith.andi %72, %74 : vector<1x256xi1>
    %cst_21 = arith.constant 0.000000e+00 : f32
    %76 = vector.shape_cast %75 : vector<1x256xi1> to vector<1x256xi1>
    %77 = vector.broadcast %76 : vector<1x256xi1> to vector<8x256xi1>
    %78 = vector.broadcast %cst_21 : f32 to vector<8x256xf32>
    %79 = arith.select %77, %70, %78 : vector<8x256xi1>, vector<8x256xf32>
    %80 = arith.truncf %79 : vector<8x256xf32> to vector<8x256xbf16>
    %81 = vector.extract_strided_slice %4 {offsets = [0, 71], sizes = [8, 256], strides = [1, 1]} : vector<8x512xf32> to vector<8x256xf32>
    %c1_i32_22 = arith.constant 1 : i32
    %82 = vector.broadcast %c1_i32_22 : i32 to vector<1x256xi32>
    %83 = arith.cmpi sge, %10, %82 : vector<1x256xi32>
    %c7_i32_23 = arith.constant 7 : i32
    %84 = vector.broadcast %c7_i32_23 : i32 to vector<1x256xi32>
    %85 = arith.cmpi slt, %7, %84 : vector<1x256xi32>
    %c1_i32_24 = arith.constant 1 : i32
    %86 = vector.broadcast %c1_i32_24 : i32 to vector<1x256xi32>
    %87 = arith.cmpi sge, %8, %86 : vector<1x256xi32>
    %88 = arith.andi %83, %85 : vector<1x256xi1>
    %89 = arith.andi %88, %87 : vector<1x256xi1>
    %cst_25 = arith.constant 0.000000e+00 : f32
    %90 = vector.shape_cast %89 : vector<1x256xi1> to vector<1x256xi1>
    %91 = vector.broadcast %90 : vector<1x256xi1> to vector<8x256xi1>
    %92 = vector.broadcast %cst_25 : f32 to vector<8x256xf32>
    %93 = arith.select %91, %81, %92 : vector<8x256xi1>, vector<8x256xf32>
    %94 = arith.truncf %93 : vector<8x256xf32> to vector<8x256xbf16>
    %95 = vector.extract_strided_slice %4 {offsets = [0, 72], sizes = [8, 256], strides = [1, 1]} : vector<8x512xf32> to vector<8x256xf32>
    %c1_i32_26 = arith.constant 1 : i32
    %96 = vector.broadcast %c1_i32_26 : i32 to vector<1x256xi32>
    %97 = arith.cmpi sge, %10, %96 : vector<1x256xi32>
    %c7_i32_27 = arith.constant 7 : i32
    %98 = vector.broadcast %c7_i32_27 : i32 to vector<1x256xi32>
    %99 = arith.cmpi slt, %7, %98 : vector<1x256xi32>
    %100 = arith.andi %97, %99 : vector<1x256xi1>
    %cst_28 = arith.constant 0.000000e+00 : f32
    %101 = vector.shape_cast %100 : vector<1x256xi1> to vector<1x256xi1>
    %102 = vector.broadcast %101 : vector<1x256xi1> to vector<8x256xi1>
    %103 = vector.broadcast %cst_28 : f32 to vector<8x256xf32>
    %104 = arith.select %102, %95, %103 : vector<8x256xi1>, vector<8x256xf32>
    %105 = arith.truncf %104 : vector<8x256xf32> to vector<8x256xbf16>
    %106 = vector.extract_strided_slice %4 {offsets = [0, 73], sizes = [8, 256], strides = [1, 1]} : vector<8x512xf32> to vector<8x256xf32>
    %c1_i32_29 = arith.constant 1 : i32
    %107 = vector.broadcast %c1_i32_29 : i32 to vector<1x256xi32>
    %108 = arith.cmpi sge, %10, %107 : vector<1x256xi32>
    %c7_i32_30 = arith.constant 7 : i32
    %109 = vector.broadcast %c7_i32_30 : i32 to vector<1x256xi32>
    %110 = arith.cmpi slt, %7, %109 : vector<1x256xi32>
    %c7_i32_31 = arith.constant 7 : i32
    %111 = vector.broadcast %c7_i32_31 : i32 to vector<1x256xi32>
    %112 = arith.cmpi slt, %8, %111 : vector<1x256xi32>
    %113 = arith.andi %108, %110 : vector<1x256xi1>
    %114 = arith.andi %113, %112 : vector<1x256xi1>
    %cst_32 = arith.constant 0.000000e+00 : f32
    %115 = vector.shape_cast %114 : vector<1x256xi1> to vector<1x256xi1>
    %116 = vector.broadcast %115 : vector<1x256xi1> to vector<8x256xi1>
    %117 = vector.broadcast %cst_32 : f32 to vector<8x256xf32>
    %118 = arith.select %116, %106, %117 : vector<8x256xi1>, vector<8x256xf32>
    %119 = arith.truncf %118 : vector<8x256xf32> to vector<8x256xbf16>
    %120 = tpu.concatenate %25, %36, %50, %61, %69, %80, %94, %105, %119 in 0 : vector<8x256xbf16>, vector<8x256xbf16>, vector<8x256xbf16>, vector<8x256xbf16>, vector<8x256xbf16>, vector<8x256xbf16>, vector<8x256xbf16>, vector<8x256xbf16>, vector<8x256xbf16> -> vector<72x256xbf16>
    %c0_33 = arith.constant 0 : index
    %c0_34 = arith.constant 0 : index
    %c0_35 = arith.constant 0 : index
    %121 = vector.load %arg3[%c0_33, %c0_34, %c0_35] : memref<3x8x72xbf16, #tpu.memory_space<vmem>>, vector<1x8x72xbf16>
    %122 = vector.shape_cast %121 : vector<1x8x72xbf16> to vector<8x72xbf16>
    %cst_36 = arith.constant dense<0.000000e+00> : vector<8x256xf32>
    %123 = tpu.matmul %122, %120, %cst_36 {dimension_numbers = #tpu.dot_dimension_numbers<[1], [0], [0], [1], [0, 0, 1, 1], [], []>} : vector<8x72xbf16>, vector<72x256xbf16>, vector<8x256xf32> -> vector<8x256xf32>
    %124 = arith.addf %11, %123 : vector<8x256xf32>
    %125 = vector.extract_strided_slice %4 {offsets = [0, 119], sizes = [8, 256], strides = [1, 1]} : vector<8x512xf32> to vector<8x256xf32>
    %c1_i32_37 = arith.constant 1 : i32
    %126 = vector.broadcast %c1_i32_37 : i32 to vector<1x256xi32>
    %127 = arith.cmpi sge, %7, %126 : vector<1x256xi32>
    %c1_i32_38 = arith.constant 1 : i32
    %128 = vector.broadcast %c1_i32_38 : i32 to vector<1x256xi32>
    %129 = arith.cmpi sge, %8, %128 : vector<1x256xi32>
    %130 = arith.andi %127, %129 : vector<1x256xi1>
    %cst_39 = arith.constant 0.000000e+00 : f32
    %131 = vector.shape_cast %130 : vector<1x256xi1> to vector<1x256xi1>
    %132 = vector.broadcast %131 : vector<1x256xi1> to vector<8x256xi1>
    %133 = vector.broadcast %cst_39 : f32 to vector<8x256xf32>
    %134 = arith.select %132, %125, %133 : vector<8x256xi1>, vector<8x256xf32>
    %135 = arith.truncf %134 : vector<8x256xf32> to vector<8x256xbf16>
    %136 = vector.extract_strided_slice %4 {offsets = [0, 120], sizes = [8, 256], strides = [1, 1]} : vector<8x512xf32> to vector<8x256xf32>
    %c1_i32_40 = arith.constant 1 : i32
    %137 = vector.broadcast %c1_i32_40 : i32 to vector<1x256xi32>
    %138 = arith.cmpi sge, %7, %137 : vector<1x256xi32>
    %cst_41 = arith.constant 0.000000e+00 : f32
    %139 = vector.shape_cast %138 : vector<1x256xi1> to vector<1x256xi1>
    %140 = vector.broadcast %139 : vector<1x256xi1> to vector<8x256xi1>
    %141 = vector.broadcast %cst_41 : f32 to vector<8x256xf32>
    %142 = arith.select %140, %136, %141 : vector<8x256xi1>, vector<8x256xf32>
    %143 = arith.truncf %142 : vector<8x256xf32> to vector<8x256xbf16>
    %144 = vector.extract_strided_slice %4 {offsets = [0, 121], sizes = [8, 256], strides = [1, 1]} : vector<8x512xf32> to vector<8x256xf32>
    %c1_i32_42 = arith.constant 1 : i32
    %145 = vector.broadcast %c1_i32_42 : i32 to vector<1x256xi32>
    %146 = arith.cmpi sge, %7, %145 : vector<1x256xi32>
    %c7_i32_43 = arith.constant 7 : i32
    %147 = vector.broadcast %c7_i32_43 : i32 to vector<1x256xi32>
    %148 = arith.cmpi slt, %8, %147 : vector<1x256xi32>
    %149 = arith.andi %146, %148 : vector<1x256xi1>
    %cst_44 = arith.constant 0.000000e+00 : f32
    %150 = vector.shape_cast %149 : vector<1x256xi1> to vector<1x256xi1>
    %151 = vector.broadcast %150 : vector<1x256xi1> to vector<8x256xi1>
    %152 = vector.broadcast %cst_44 : f32 to vector<8x256xf32>
    %153 = arith.select %151, %144, %152 : vector<8x256xi1>, vector<8x256xf32>
    %154 = arith.truncf %153 : vector<8x256xf32> to vector<8x256xbf16>
    %155 = vector.extract_strided_slice %4 {offsets = [0, 127], sizes = [8, 256], strides = [1, 1]} : vector<8x512xf32> to vector<8x256xf32>
    %c1_i32_45 = arith.constant 1 : i32
    %156 = vector.broadcast %c1_i32_45 : i32 to vector<1x256xi32>
    %157 = arith.cmpi sge, %8, %156 : vector<1x256xi32>
    %cst_46 = arith.constant 0.000000e+00 : f32
    %158 = vector.shape_cast %157 : vector<1x256xi1> to vector<1x256xi1>
    %159 = vector.broadcast %158 : vector<1x256xi1> to vector<8x256xi1>
    %160 = vector.broadcast %cst_46 : f32 to vector<8x256xf32>
    %161 = arith.select %159, %155, %160 : vector<8x256xi1>, vector<8x256xf32>
    %162 = arith.truncf %161 : vector<8x256xf32> to vector<8x256xbf16>
    %163 = vector.extract_strided_slice %4 {offsets = [0, 128], sizes = [8, 256], strides = [1, 1]} : vector<8x512xf32> to vector<8x256xf32>
    %164 = arith.truncf %163 : vector<8x256xf32> to vector<8x256xbf16>
    %165 = vector.extract_strided_slice %4 {offsets = [0, 129], sizes = [8, 256], strides = [1, 1]} : vector<8x512xf32> to vector<8x256xf32>
    %c7_i32_47 = arith.constant 7 : i32
    %166 = vector.broadcast %c7_i32_47 : i32 to vector<1x256xi32>
    %167 = arith.cmpi slt, %8, %166 : vector<1x256xi32>
    %cst_48 = arith.constant 0.000000e+00 : f32
    %168 = vector.shape_cast %167 : vector<1x256xi1> to vector<1x256xi1>
    %169 = vector.broadcast %168 : vector<1x256xi1> to vector<8x256xi1>
    %170 = vector.broadcast %cst_48 : f32 to vector<8x256xf32>
    %171 = arith.select %169, %165, %170 : vector<8x256xi1>, vector<8x256xf32>
    %172 = arith.truncf %171 : vector<8x256xf32> to vector<8x256xbf16>
    %173 = vector.extract_strided_slice %4 {offsets = [0, 135], sizes = [8, 256], strides = [1, 1]} : vector<8x512xf32> to vector<8x256xf32>
    %c7_i32_49 = arith.constant 7 : i32
    %174 = vector.broadcast %c7_i32_49 : i32 to vector<1x256xi32>
    %175 = arith.cmpi slt, %7, %174 : vector<1x256xi32>
    %c1_i32_50 = arith.constant 1 : i32
    %176 = vector.broadcast %c1_i32_50 : i32 to vector<1x256xi32>
    %177 = arith.cmpi sge, %8, %176 : vector<1x256xi32>
    %178 = arith.andi %175, %177 : vector<1x256xi1>
    %cst_51 = arith.constant 0.000000e+00 : f32
    %179 = vector.shape_cast %178 : vector<1x256xi1> to vector<1x256xi1>
    %180 = vector.broadcast %179 : vector<1x256xi1> to vector<8x256xi1>
    %181 = vector.broadcast %cst_51 : f32 to vector<8x256xf32>
    %182 = arith.select %180, %173, %181 : vector<8x256xi1>, vector<8x256xf32>
    %183 = arith.truncf %182 : vector<8x256xf32> to vector<8x256xbf16>
    %184 = vector.extract_strided_slice %4 {offsets = [0, 136], sizes = [8, 256], strides = [1, 1]} : vector<8x512xf32> to vector<8x256xf32>
    %c7_i32_52 = arith.constant 7 : i32
    %185 = vector.broadcast %c7_i32_52 : i32 to vector<1x256xi32>
    %186 = arith.cmpi slt, %7, %185 : vector<1x256xi32>
    %cst_53 = arith.constant 0.000000e+00 : f32
    %187 = vector.shape_cast %186 : vector<1x256xi1> to vector<1x256xi1>
    %188 = vector.broadcast %187 : vector<1x256xi1> to vector<8x256xi1>
    %189 = vector.broadcast %cst_53 : f32 to vector<8x256xf32>
    %190 = arith.select %188, %184, %189 : vector<8x256xi1>, vector<8x256xf32>
    %191 = arith.truncf %190 : vector<8x256xf32> to vector<8x256xbf16>
    %192 = vector.extract_strided_slice %4 {offsets = [0, 137], sizes = [8, 256], strides = [1, 1]} : vector<8x512xf32> to vector<8x256xf32>
    %c7_i32_54 = arith.constant 7 : i32
    %193 = vector.broadcast %c7_i32_54 : i32 to vector<1x256xi32>
    %194 = arith.cmpi slt, %7, %193 : vector<1x256xi32>
    %c7_i32_55 = arith.constant 7 : i32
    %195 = vector.broadcast %c7_i32_55 : i32 to vector<1x256xi32>
    %196 = arith.cmpi slt, %8, %195 : vector<1x256xi32>
    %197 = arith.andi %194, %196 : vector<1x256xi1>
    %cst_56 = arith.constant 0.000000e+00 : f32
    %198 = vector.shape_cast %197 : vector<1x256xi1> to vector<1x256xi1>
    %199 = vector.broadcast %198 : vector<1x256xi1> to vector<8x256xi1>
    %200 = vector.broadcast %cst_56 : f32 to vector<8x256xf32>
    %201 = arith.select %199, %192, %200 : vector<8x256xi1>, vector<8x256xf32>
    %202 = arith.truncf %201 : vector<8x256xf32> to vector<8x256xbf16>
    %203 = tpu.concatenate %135, %143, %154, %162, %164, %172, %183, %191, %202 in 0 : vector<8x256xbf16>, vector<8x256xbf16>, vector<8x256xbf16>, vector<8x256xbf16>, vector<8x256xbf16>, vector<8x256xbf16>, vector<8x256xbf16>, vector<8x256xbf16>, vector<8x256xbf16> -> vector<72x256xbf16>
    %c1_57 = arith.constant 1 : index
    %c0_58 = arith.constant 0 : index
    %c0_59 = arith.constant 0 : index
    %204 = vector.load %arg3[%c1_57, %c0_58, %c0_59] : memref<3x8x72xbf16, #tpu.memory_space<vmem>>, vector<1x8x72xbf16>
    %205 = vector.shape_cast %204 : vector<1x8x72xbf16> to vector<8x72xbf16>
    %cst_60 = arith.constant dense<0.000000e+00> : vector<8x256xf32>
    %206 = tpu.matmul %205, %203, %cst_60 {dimension_numbers = #tpu.dot_dimension_numbers<[1], [0], [0], [1], [0, 0, 1, 1], [], []>} : vector<8x72xbf16>, vector<72x256xbf16>, vector<8x256xf32> -> vector<8x256xf32>
    %207 = arith.addf %124, %206 : vector<8x256xf32>
    %208 = vector.extract_strided_slice %4 {offsets = [0, 183], sizes = [8, 256], strides = [1, 1]} : vector<8x512xf32> to vector<8x256xf32>
    %c7_i32_61 = arith.constant 7 : i32
    %209 = vector.broadcast %c7_i32_61 : i32 to vector<1x256xi32>
    %210 = arith.cmpi slt, %10, %209 : vector<1x256xi32>
    %c1_i32_62 = arith.constant 1 : i32
    %211 = vector.broadcast %c1_i32_62 : i32 to vector<1x256xi32>
    %212 = arith.cmpi sge, %7, %211 : vector<1x256xi32>
    %c1_i32_63 = arith.constant 1 : i32
    %213 = vector.broadcast %c1_i32_63 : i32 to vector<1x256xi32>
    %214 = arith.cmpi sge, %8, %213 : vector<1x256xi32>
    %215 = arith.andi %210, %212 : vector<1x256xi1>
    %216 = arith.andi %215, %214 : vector<1x256xi1>
    %cst_64 = arith.constant 0.000000e+00 : f32
    %217 = vector.shape_cast %216 : vector<1x256xi1> to vector<1x256xi1>
    %218 = vector.broadcast %217 : vector<1x256xi1> to vector<8x256xi1>
    %219 = vector.broadcast %cst_64 : f32 to vector<8x256xf32>
    %220 = arith.select %218, %208, %219 : vector<8x256xi1>, vector<8x256xf32>
    %221 = arith.truncf %220 : vector<8x256xf32> to vector<8x256xbf16>
    %222 = vector.extract_strided_slice %4 {offsets = [0, 184], sizes = [8, 256], strides = [1, 1]} : vector<8x512xf32> to vector<8x256xf32>
    %c7_i32_65 = arith.constant 7 : i32
    %223 = vector.broadcast %c7_i32_65 : i32 to vector<1x256xi32>
    %224 = arith.cmpi slt, %10, %223 : vector<1x256xi32>
    %c1_i32_66 = arith.constant 1 : i32
    %225 = vector.broadcast %c1_i32_66 : i32 to vector<1x256xi32>
    %226 = arith.cmpi sge, %7, %225 : vector<1x256xi32>
    %227 = arith.andi %224, %226 : vector<1x256xi1>
    %cst_67 = arith.constant 0.000000e+00 : f32
    %228 = vector.shape_cast %227 : vector<1x256xi1> to vector<1x256xi1>
    %229 = vector.broadcast %228 : vector<1x256xi1> to vector<8x256xi1>
    %230 = vector.broadcast %cst_67 : f32 to vector<8x256xf32>
    %231 = arith.select %229, %222, %230 : vector<8x256xi1>, vector<8x256xf32>
    %232 = arith.truncf %231 : vector<8x256xf32> to vector<8x256xbf16>
    %233 = vector.extract_strided_slice %4 {offsets = [0, 185], sizes = [8, 256], strides = [1, 1]} : vector<8x512xf32> to vector<8x256xf32>
    %c7_i32_68 = arith.constant 7 : i32
    %234 = vector.broadcast %c7_i32_68 : i32 to vector<1x256xi32>
    %235 = arith.cmpi slt, %10, %234 : vector<1x256xi32>
    %c1_i32_69 = arith.constant 1 : i32
    %236 = vector.broadcast %c1_i32_69 : i32 to vector<1x256xi32>
    %237 = arith.cmpi sge, %7, %236 : vector<1x256xi32>
    %c7_i32_70 = arith.constant 7 : i32
    %238 = vector.broadcast %c7_i32_70 : i32 to vector<1x256xi32>
    %239 = arith.cmpi slt, %8, %238 : vector<1x256xi32>
    %240 = arith.andi %235, %237 : vector<1x256xi1>
    %241 = arith.andi %240, %239 : vector<1x256xi1>
    %cst_71 = arith.constant 0.000000e+00 : f32
    %242 = vector.shape_cast %241 : vector<1x256xi1> to vector<1x256xi1>
    %243 = vector.broadcast %242 : vector<1x256xi1> to vector<8x256xi1>
    %244 = vector.broadcast %cst_71 : f32 to vector<8x256xf32>
    %245 = arith.select %243, %233, %244 : vector<8x256xi1>, vector<8x256xf32>
    %246 = arith.truncf %245 : vector<8x256xf32> to vector<8x256xbf16>
    %247 = vector.extract_strided_slice %4 {offsets = [0, 191], sizes = [8, 256], strides = [1, 1]} : vector<8x512xf32> to vector<8x256xf32>
    %c7_i32_72 = arith.constant 7 : i32
    %248 = vector.broadcast %c7_i32_72 : i32 to vector<1x256xi32>
    %249 = arith.cmpi slt, %10, %248 : vector<1x256xi32>
    %c1_i32_73 = arith.constant 1 : i32
    %250 = vector.broadcast %c1_i32_73 : i32 to vector<1x256xi32>
    %251 = arith.cmpi sge, %8, %250 : vector<1x256xi32>
    %252 = arith.andi %249, %251 : vector<1x256xi1>
    %cst_74 = arith.constant 0.000000e+00 : f32
    %253 = vector.shape_cast %252 : vector<1x256xi1> to vector<1x256xi1>
    %254 = vector.broadcast %253 : vector<1x256xi1> to vector<8x256xi1>
    %255 = vector.broadcast %cst_74 : f32 to vector<8x256xf32>
    %256 = arith.select %254, %247, %255 : vector<8x256xi1>, vector<8x256xf32>
    %257 = arith.truncf %256 : vector<8x256xf32> to vector<8x256xbf16>
    %258 = vector.extract_strided_slice %4 {offsets = [0, 192], sizes = [8, 256], strides = [1, 1]} : vector<8x512xf32> to vector<8x256xf32>
    %c7_i32_75 = arith.constant 7 : i32
    %259 = vector.broadcast %c7_i32_75 : i32 to vector<1x256xi32>
    %260 = arith.cmpi slt, %10, %259 : vector<1x256xi32>
    %cst_76 = arith.constant 0.000000e+00 : f32
    %261 = vector.shape_cast %260 : vector<1x256xi1> to vector<1x256xi1>
    %262 = vector.broadcast %261 : vector<1x256xi1> to vector<8x256xi1>
    %263 = vector.broadcast %cst_76 : f32 to vector<8x256xf32>
    %264 = arith.select %262, %258, %263 : vector<8x256xi1>, vector<8x256xf32>
    %265 = arith.truncf %264 : vector<8x256xf32> to vector<8x256xbf16>
    %266 = vector.extract_strided_slice %4 {offsets = [0, 193], sizes = [8, 256], strides = [1, 1]} : vector<8x512xf32> to vector<8x256xf32>
    %c7_i32_77 = arith.constant 7 : i32
    %267 = vector.broadcast %c7_i32_77 : i32 to vector<1x256xi32>
    %268 = arith.cmpi slt, %10, %267 : vector<1x256xi32>
    %c7_i32_78 = arith.constant 7 : i32
    %269 = vector.broadcast %c7_i32_78 : i32 to vector<1x256xi32>
    %270 = arith.cmpi slt, %8, %269 : vector<1x256xi32>
    %271 = arith.andi %268, %270 : vector<1x256xi1>
    %cst_79 = arith.constant 0.000000e+00 : f32
    %272 = vector.shape_cast %271 : vector<1x256xi1> to vector<1x256xi1>
    %273 = vector.broadcast %272 : vector<1x256xi1> to vector<8x256xi1>
    %274 = vector.broadcast %cst_79 : f32 to vector<8x256xf32>
    %275 = arith.select %273, %266, %274 : vector<8x256xi1>, vector<8x256xf32>
    %276 = arith.truncf %275 : vector<8x256xf32> to vector<8x256xbf16>
    %277 = vector.extract_strided_slice %4 {offsets = [0, 199], sizes = [8, 256], strides = [1, 1]} : vector<8x512xf32> to vector<8x256xf32>
    %c7_i32_80 = arith.constant 7 : i32
    %278 = vector.broadcast %c7_i32_80 : i32 to vector<1x256xi32>
    %279 = arith.cmpi slt, %10, %278 : vector<1x256xi32>
    %c7_i32_81 = arith.constant 7 : i32
    %280 = vector.broadcast %c7_i32_81 : i32 to vector<1x256xi32>
    %281 = arith.cmpi slt, %7, %280 : vector<1x256xi32>
    %c1_i32_82 = arith.constant 1 : i32
    %282 = vector.broadcast %c1_i32_82 : i32 to vector<1x256xi32>
    %283 = arith.cmpi sge, %8, %282 : vector<1x256xi32>
    %284 = arith.andi %279, %281 : vector<1x256xi1>
    %285 = arith.andi %284, %283 : vector<1x256xi1>
    %cst_83 = arith.constant 0.000000e+00 : f32
    %286 = vector.shape_cast %285 : vector<1x256xi1> to vector<1x256xi1>
    %287 = vector.broadcast %286 : vector<1x256xi1> to vector<8x256xi1>
    %288 = vector.broadcast %cst_83 : f32 to vector<8x256xf32>
    %289 = arith.select %287, %277, %288 : vector<8x256xi1>, vector<8x256xf32>
    %290 = arith.truncf %289 : vector<8x256xf32> to vector<8x256xbf16>
    %291 = vector.extract_strided_slice %4 {offsets = [0, 200], sizes = [8, 256], strides = [1, 1]} : vector<8x512xf32> to vector<8x256xf32>
    %c7_i32_84 = arith.constant 7 : i32
    %292 = vector.broadcast %c7_i32_84 : i32 to vector<1x256xi32>
    %293 = arith.cmpi slt, %10, %292 : vector<1x256xi32>
    %c7_i32_85 = arith.constant 7 : i32
    %294 = vector.broadcast %c7_i32_85 : i32 to vector<1x256xi32>
    %295 = arith.cmpi slt, %7, %294 : vector<1x256xi32>
    %296 = arith.andi %293, %295 : vector<1x256xi1>
    %cst_86 = arith.constant 0.000000e+00 : f32
    %297 = vector.shape_cast %296 : vector<1x256xi1> to vector<1x256xi1>
    %298 = vector.broadcast %297 : vector<1x256xi1> to vector<8x256xi1>
    %299 = vector.broadcast %cst_86 : f32 to vector<8x256xf32>
    %300 = arith.select %298, %291, %299 : vector<8x256xi1>, vector<8x256xf32>
    %301 = arith.truncf %300 : vector<8x256xf32> to vector<8x256xbf16>
    %302 = vector.extract_strided_slice %4 {offsets = [0, 201], sizes = [8, 256], strides = [1, 1]} : vector<8x512xf32> to vector<8x256xf32>
    %c7_i32_87 = arith.constant 7 : i32
    %303 = vector.broadcast %c7_i32_87 : i32 to vector<1x256xi32>
    %304 = arith.cmpi slt, %10, %303 : vector<1x256xi32>
    %c7_i32_88 = arith.constant 7 : i32
    %305 = vector.broadcast %c7_i32_88 : i32 to vector<1x256xi32>
    %306 = arith.cmpi slt, %7, %305 : vector<1x256xi32>
    %c7_i32_89 = arith.constant 7 : i32
    %307 = vector.broadcast %c7_i32_89 : i32 to vector<1x256xi32>
    %308 = arith.cmpi slt, %8, %307 : vector<1x256xi32>
    %309 = arith.andi %304, %306 : vector<1x256xi1>
    %310 = arith.andi %309, %308 : vector<1x256xi1>
    %cst_90 = arith.constant 0.000000e+00 : f32
    %311 = vector.shape_cast %310 : vector<1x256xi1> to vector<1x256xi1>
    %312 = vector.broadcast %311 : vector<1x256xi1> to vector<8x256xi1>
    %313 = vector.broadcast %cst_90 : f32 to vector<8x256xf32>
    %314 = arith.select %312, %302, %313 : vector<8x256xi1>, vector<8x256xf32>
    %315 = arith.truncf %314 : vector<8x256xf32> to vector<8x256xbf16>
    %316 = tpu.concatenate %221, %232, %246, %257, %265, %276, %290, %301, %315 in 0 : vector<8x256xbf16>, vector<8x256xbf16>, vector<8x256xbf16>, vector<8x256xbf16>, vector<8x256xbf16>, vector<8x256xbf16>, vector<8x256xbf16>, vector<8x256xbf16>, vector<8x256xbf16> -> vector<72x256xbf16>
    %c2_91 = arith.constant 2 : index
    %c0_92 = arith.constant 0 : index
    %c0_93 = arith.constant 0 : index
    %317 = vector.load %arg3[%c2_91, %c0_92, %c0_93] : memref<3x8x72xbf16, #tpu.memory_space<vmem>>, vector<1x8x72xbf16>
    %318 = vector.shape_cast %317 : vector<1x8x72xbf16> to vector<8x72xbf16>
    %cst_94 = arith.constant dense<0.000000e+00> : vector<8x256xf32>
    %319 = tpu.matmul %318, %316, %cst_94 {dimension_numbers = #tpu.dot_dimension_numbers<[1], [0], [0], [1], [0, 0, 1, 1], [], []>} : vector<8x72xbf16>, vector<72x256xbf16>, vector<8x256xf32> -> vector<8x256xf32>
    %320 = arith.addf %207, %319 : vector<8x256xf32>
    %321 = arith.truncf %320 : vector<8x256xf32> to vector<8x256xbf16>
    %c0_95 = arith.constant 0 : index
    %c0_96 = arith.constant 0 : index
    %c0_97 = arith.constant 0 : index
    %322 = vector.load %arg5[%c0_95, %c0_96, %c0_97] : memref<1x8x256xbf16, #tpu.memory_space<vmem>>, vector<1x8x256xbf16>
    %323 = vector.shape_cast %322 : vector<1x8x256xbf16> to vector<8x256xbf16>
    %324 = vector.shape_cast %321 : vector<8x256xbf16> to vector<1x8x256xbf16>
    tpu.vector_store %arg5[%c0_95, %c0_96, %c0_97], %324 {strides = array<i32>} : memref<1x8x256xbf16, #tpu.memory_space<vmem>>, vector<1x8x256xbf16>,
    %cst_98 = arith.constant dense<0.000000e+00> : vector<8xf32>
    %325 = vector.multi_reduction <add>, %320, %cst_98 [1] : vector<8x256xf32> to vector<8xf32>
    %326 = vector.shape_cast %325 : vector<8xf32> to vector<8x1xf32>
    %c0_99 = arith.constant 0 : index
    %c0_100 = arith.constant 0 : index
    %c0_101 = arith.constant 0 : index
    %c0_102 = arith.constant 0 : index
    %327 = vector.load %arg6[%c0_99, %c0_100, %c0_101, %c0_102] : memref<1x1x8x2xf32, #tpu.memory_space<vmem>>, vector<1x1x8x1xf32>
    %328 = vector.shape_cast %327 : vector<1x1x8x1xf32> to vector<8x1xf32>
    %329 = vector.shape_cast %326 : vector<8x1xf32> to vector<1x1x8x1xf32>
    tpu.vector_store %arg6[%c0_99, %c0_100, %c0_101, %c0_102], %329 {strides = array<i32>} : memref<1x1x8x2xf32, #tpu.memory_space<vmem>>, vector<1x1x8x1xf32>,
    %330 = arith.mulf %320, %320 : vector<8x256xf32>
    %cst_103 = arith.constant dense<0.000000e+00> : vector<8xf32>
    %331 = vector.multi_reduction <add>, %330, %cst_103 [1] : vector<8x256xf32> to vector<8xf32>
    %332 = vector.shape_cast %331 : vector<8xf32> to vector<8x1xf32>
    %c0_104 = arith.constant 0 : index
    %c0_105 = arith.constant 0 : index
    %c0_106 = arith.constant 0 : index
    %c1_107 = arith.constant 1 : index
    %333 = vector.load %arg6[%c0_104, %c0_105, %c0_106, %c1_107] : memref<1x1x8x2xf32, #tpu.memory_space<vmem>>, vector<1x1x8x1xf32>
    %334 = vector.shape_cast %333 : vector<1x1x8x1xf32> to vector<8x1xf32>
    %335 = vector.shape_cast %332 : vector<8x1xf32> to vector<1x1x8x1xf32>
    tpu.vector_store %arg6[%c0_104, %c0_105, %c0_106, %c1_107], %335 {strides = array<i32>} : memref<1x1x8x2xf32, #tpu.memory_space<vmem>>, vector<1x1x8x1xf32>,
    return
  }
  func.func @transform_0(%arg0: i32, %arg1: i32) -> (i32, i32, i32) {
    %c0_i32 = arith.constant 0 : i32
    %c0_i32_0 = arith.constant 0 : i32
    %c0_i32_1 = arith.constant 0 : i32
    return %arg0, %c0_i32, %c0_i32_0 : i32, i32, i32
  }
  func.func @transform_1(%arg0: i32, %arg1: i32) -> (i32, i32, i32) {
    %c0_i32 = arith.constant 0 : i32
    %c0_i32_0 = arith.constant 0 : i32
    %c0_i32_1 = arith.constant 0 : i32
    %c0_i32_2 = arith.constant 0 : i32
    return %c0_i32, %c0_i32_0, %c0_i32_1 : i32, i32, i32
  }
  func.func @transform_2(%arg0: i32, %arg1: i32) -> (i32, i32) {
    %c0_i32 = arith.constant 0 : i32
    %c0_i32_0 = arith.constant 0 : i32
    %c0_i32_1 = arith.constant 0 : i32
    return %c0_i32, %c0_i32_0 : i32, i32
  }
  func.func @transform_3(%arg0: i32, %arg1: i32) -> (i32, i32, i32) {
    %c0_i32 = arith.constant 0 : i32
    %c0_i32_0 = arith.constant 0 : i32
    return %arg0, %c0_i32, %arg1 : i32, i32, i32
  }
  func.func @transform_4(%arg0: i32, %arg1: i32) -> (i32, i32, i32, i32) {
    %c0_i32 = arith.constant 0 : i32
    %c0_i32_0 = arith.constant 0 : i32
    %c0_i32_1 = arith.constant 0 : i32
    return %arg0, %arg1, %c0_i32, %c0_i32_0 : i32, i32, i32, i32
  }
}

</mosaic_0001>

<llo_original>
// kernel: double_conv3d.5
$region0: #{double_conv3d.5}
  #allocation0 [shape = 'u32[]', space=smem, size = 0x4, offset = 0x4, fixed_abs, tag = 'smem constant byte address 0x4 - core index']
  #allocation1 [shape = 'u32[72,128]{1,0:T(1,128)}', space=vmem, size = 0x9000, scoped, tag = 'internal scratch']
  %s0 = inlined_call_operand.vmem [shape: f32[2,8,512], index: 0, kind: input, shape index: {}]
  %s1 = inlined_call_operand.vmem [shape: f32[8,1], index: 1, kind: input, shape index: {}]
  %s2 = inlined_call_operand.vmem [shape: f32[8,1], index: 2, kind: input, shape index: {}]
  %s3 = inlined_call_operand.vmem [shape: f32[2,8,512], index: 3, kind: output, shape index: {}]
  %s4 = sld [smem:[#allocation0]]
  $region45: #{double_conv3d.5} parent=0
    _
  %s6 = ssub.s32 1, %s4
  %s7 = scalar_select 0, %s6, %s4
  loop: start=0, step=1, limit=6
  $region2: #{double_conv3d.5} parent=0 // loop_pre_header
    _
  $region3: #{double_conv3d.5} parent=0 // loop_header
    %s9 = sphi 0, %s13
    %p10 = scmp.ge.s32.totalorder %s9, 6
    %s16 = sphi 0, %s28
    %s17 = sphi 0, %s24
    %s18 = sphi 0, %s16
    %s19 = sphi 0, %s17
    %s20 = sphi 0, %s18
    %s21 = sphi 0, %s19
    %s33 = sphi 0, %s35
    %s36 = sphi 0, %s33
    %s37 = sphi 0, %s36
    %s53 = sphi 0, %s37
    %s57 = sphi 0, %s57
    %s59 = sphi 0, %s57
    %s60 = sphi 0, %s59
    %s74 = sphi 0, %s60
    %s78 = sphi 0, %s78
    %s80 = sphi 0, %s78
    %s81 = sphi 0, %s80
    %s95 = sphi 0, %s81
    %s103 = sphi 0, %s105
    %s106 = sphi 0, %s103
    %s107 = sphi 0, %s106
    %s123 = sphi 0, %s107
  $region4: #{double_conv3d.5} parent=0 // loop_header_branch
    %12 = sbr.rel (%p10) target = $region8
  $region5: #{double_conv3d.5} parent=0 // loop_body
    %s14 = ssub.s32 %s9, 1
    %s15 = ssub.s32 %s9, 2
    %s22 = sadd.s32 1, %s17
    %p23 = scmp.ge.s32.totalorder %s22, 2
    %s24 = scalar_select %p23, 0, %s22
    %s25 = sadd.s32 1, %s16
    %s26 = scalar_select %p23, %s25, %s16
    %p27 = scmp.ge.s32.totalorder %s26, 2
    %s28 = scalar_select %p27, 0, %s26
    %s29 = ssub.s32 %s16, %s28
    %s30 = ssub.s32 %s17, %s24
    %s31 = sor.u32 %s29, %s30
    %p32 = scmp.eq.s32.totalorder %s31, 0
    %s34 = sadd.s32 %s33, 1
    %s35 = scalar_select %p32, %s33, %s34
    %p38 = pneg %p32
    %p39 = scmp.eq.s32.totalorder %s9, 3
    %p40 = por %p38, %p39
    %p41 = scmp.ne.s32.totalorder %s33, %s36
    %p42 = scmp.eq.s32.totalorder %s9, 0
    %p43 = por %p41, %p42
    %p44 = scmp.ne.s32.totalorder %s33, %s36
    %p45 = scmp.eq.s32.totalorder %s14, 3
    %p46 = por %p44, %p45
    %p47 = scmp.ne.s32.totalorder %s36, %s37
    %p48 = scmp.eq.s32.totalorder %s14, 0
    %p49 = por %p47, %p48
    %p50 = scmp.ne.s32.totalorder %s36, %s37
    %p51 = scmp.eq.s32.totalorder %s15, 3
    %p52 = por %p50, %p51
    %p54 = scmp.ne.s32.totalorder %s37, %s53
    %p55 = scmp.eq.s32.totalorder %s15, 0
    %p56 = por %p54, %p55
    %s58 = sadd.s32 %s57, 1
    %p61 = scmp.eq.s32.totalorder %s9, 3
    %p62 = scmp.ne.s32.totalorder %s57, %s59
    %p63 = scmp.eq.s32.totalorder %s9, 0
    %p64 = por %p62, %p63
    %p65 = scmp.ne.s32.totalorder %s57, %s59
    %p66 = scmp.eq.s32.totalorder %s14, 3
    %p67 = por %p65, %p66
    %p68 = scmp.ne.s32.totalorder %s59, %s60
    %p69 = scmp.eq.s32.totalorder %s14, 0
    %p70 = por %p68, %p69
    %p71 = scmp.ne.s32.totalorder %s59, %s60
    %p72 = scmp.eq.s32.totalorder %s15, 3
    %p73 = por %p71, %p72
    %p75 = scmp.ne.s32.totalorder %s60, %s74
    %p76 = scmp.eq.s32.totalorder %s15, 0
    %p77 = por %p75, %p76
    %s79 = sadd.s32 %s78, 1
    %p82 = scmp.eq.s32.totalorder %s9, 3
    %p83 = scmp.ne.s32.totalorder %s78, %s80
    %p84 = scmp.eq.s32.totalorder %s9, 0
    %p85 = por %p83, %p84
    %p86 = scmp.ne.s32.totalorder %s78, %s80
    %p87 = scmp.eq.s32.totalorder %s14, 3
    %p88 = por %p86, %p87
    %p89 = scmp.ne.s32.totalorder %s80, %s81
    %p90 = scmp.eq.s32.totalorder %s14, 0
    %p91 = por %p89, %p90
    %p92 = scmp.ne.s32.totalorder %s80, %s81
    %p93 = scmp.eq.s32.totalorder %s15, 3
    %p94 = por %p92, %p93
    %p96 = scmp.ne.s32.totalorder %s81, %s95
    %p97 = scmp.eq.s32.totalorder %s15, 0
    %p98 = por %p96, %p97
    %s99 = ssub.s32 %s16, %s28
    %s100 = ssub.s32 %s17, %s24
    %s101 = sor.u32 %s99, %s100
    %p102 = scmp.eq.s32.totalorder %s101, 0
    %s104 = sadd.s32 %s103, 1
    %s105 = scalar_select %p102, %s103, %s104
    %p108 = pneg %p102
    %p109 = scmp.eq.s32.totalorder %s9, 3
    %p110 = por %p108, %p109
    %p111 = scmp.ne.s32.totalorder %s103, %s106
    %p112 = scmp.eq.s32.totalorder %s9, 0
    %p113 = por %p111, %p112
    %p114 = scmp.ne.s32.totalorder %s103, %s106
    %p115 = scmp.eq.s32.totalorder %s14, 3
    %p116 = por %p114, %p115
    %p117 = scmp.ne.s32.totalorder %s106, %s107
    %p118 = scmp.eq.s32.totalorder %s14, 0
    %p119 = por %p117, %p118
    %p120 = scmp.ne.s32.totalorder %s106, %s107
    %p121 = scmp.eq.s32.totalorder %s15, 3
    %p122 = por %p120, %p121
    %p124 = scmp.ne.s32.totalorder %s107, %s123
    %p125 = scmp.eq.s32.totalorder %s15, 0
    %p126 = por %p124, %p125
    %p127 = scmp.le.s32.totalorder 1, %s9
    %p128 = scmp.lt.s32.totalorder %s9, 5
    %p129 = pnand %p127, %p128
    %p130 = pneg %p129
    // Predicated region
    $region9: #{double_conv3d.5} parent=5 // pred_check
      _
    $region10: #{double_conv3d.5} parent=5 // pred_check_branch
      %132 = sbr.rel (%p129) target = $region12
    $region11: #{double_conv3d.5} parent=5 // pred_region
      %s133 = ssub.s32 %s9, 1
      // Predicated region
      $region13: #{double_conv3d.5} parent=11 // pred_check
        %p134 = pneg %p70
      $region14: #{double_conv3d.5} parent=11 // pred_check_branch
        %136 = sbr.rel (%p134) target = $region16
      $region15: #{double_conv3d.5} parent=11 // pred_region
        _
      $region16: #{double_conv3d.5} parent=11 // pred_fallthru
        _
      // Predicated region
      $region17: #{double_conv3d.5} parent=11 // pred_check
        %p137 = pneg %p91
      $region18: #{double_conv3d.5} parent=11 // pred_check_branch
        %139 = sbr.rel (%p137) target = $region20
      $region19: #{double_conv3d.5} parent=11 // pred_region
        _
      $region20: #{double_conv3d.5} parent=11 // pred_fallthru
        _
    $region12: #{double_conv3d.5} parent=5 // pred_fallthru
      _
    %p140 = scmp.lt.s32.totalorder %s9, 4
    // Predicated region
    $region21: #{double_conv3d.5} parent=5 // pred_check
      %p141 = pneg %p140
    $region22: #{double_conv3d.5} parent=5 // pred_check_branch
      %143 = sbr.rel (%p141) target = $region24
    $region23: #{double_conv3d.5} parent=5 // pred_region
      // Predicated region
      $region25: #{double_conv3d.5} parent=23 // pred_check
        %p144 = pneg %p43
      $region26: #{double_conv3d.5} parent=23 // pred_check_branch
        %146 = sbr.rel (%p144) target = $region28
      $region27: #{double_conv3d.5} parent=23 // pred_region
        %s147 = smul.u32 2, %s17
        %p148 = scmp.lt.s32.totalorder %s16, 1
        %s149 = scalar_select %p148, %s16, 1
        %p150 = scmp.lt.s32.totalorder %s147, 3
        %s151 = scalar_select %p150, %s147, 3
        %s152 = smul.addr %s149, 4
        %s153 = sadd.s32 %s151, %s152
        %s154 = smul.addr %s153, 8
        %s155 = scalar_lea.vmem %s0, %s154
        %s156 = smul.u32 2, %s17
      $region28: #{double_conv3d.5} parent=23 // pred_fallthru
        _
    $region24: #{double_conv3d.5} parent=5 // pred_fallthru
      _
    %p157 = scmp.le.s32.totalorder 1, %s9
    %p158 = scmp.lt.s32.totalorder %s9, 5
    %p159 = pnand %p157, %p158
    %p160 = pneg %p159
    // Predicated region
    $region29: #{double_conv3d.5} parent=5 // pred_check
      _
    $region30: #{double_conv3d.5} parent=5 // pred_check_branch
      %162 = sbr.rel (%p159) target = $region32
    $region31: #{double_conv3d.5} parent=5 // pred_region
      %s163 = ssub.s32 %s9, 1
      %s164 = smul.u32 2, %s19
      %p165 = scmp.lt.s32.totalorder %s18, 1
      %s166 = scalar_select %p165, %s18, 1
      %p167 = scmp.lt.s32.totalorder %s164, 3
      %s168 = scalar_select %p167, %s164, 3
      %s169 = smul.addr %s166, 4
      %s170 = sadd.s32 %s168, %s169
      %s171 = smul.addr %s170, 8
      %s172 = scalar_lea.vmem %s0, %s171
      %p173 = pneg %p49
      %p174 = pneg %p46
      %p175 = pneg %p70
      %p176 = pneg %p67
      %p177 = pneg %p91
      %p178 = pneg %p88
      %p179 = pneg %p119
      %p180 = pneg %p116
      %s181 = smul.u32 2, %s19
      %p182 = scmp.lt.s32.totalorder %s18, 1
      %s183 = scalar_select %p182, %s18, 1
      %p184 = scmp.lt.s32.totalorder %s181, 3
      %s185 = scalar_select %p184, %s181, 3
      %s186 = smul.addr %s183, 4
      %s187 = sadd.s32 %s185, %s186
      %s188 = smul.addr %s187, 8
      %s189 = scalar_lea.vmem %s3, %s188
      %s190 = smul.u32 2, %s19
      %p191 = scmp.lt.s32.totalorder %s18, 1
      %s192 = scalar_select %p191, %s18, 1
      %p193 = scmp.lt.s32.totalorder %s190, 3
      %s194 = scalar_select %p193, %s190, 3
      %s195 = smul.addr %s192, 4
      %s196 = sadd.s32 %s194, %s195
      %s197 = smul.addr %s196, 8
      %s198 = scalar_lea.vmem %s0, %s197
      %s199 = smul.u32 2, %s19
      %s200 = smul.u32 2, %s19
      %p201 = scmp.lt.s32.totalorder %s18, 1
      %s202 = scalar_select %p201, %s18, 1
      %p203 = scmp.lt.s32.totalorder %s200, 3
      %s204 = scalar_select %p203, %s200, 3
      %s205 = smul.addr %s202, 4
      %s206 = sadd.s32 %s204, %s205
      %s207 = smul.addr %s206, 8
      %s208 = scalar_lea.vmem %s3, %s207
      %s209 = smul.u32 2, %s19
      %v210 = vld [vmem:[%s198] sm:$0xff]
      %v211 = vld [vmem:[%s198 + $0x8] sm:$0xff]
      %v212 = vld [vmem:[%s1] sm:$0xff]
      %214 = vset.pattern.permute.xlu0 0
      %215 = vperm.xlu0 %214, %v212
      %v216 = vpop.permute.xlu0 %215
      %v218 = vmul.f32 %v210, %v216
      %v219 = vmul.f32 %v211, %v216
      %v220 = vld [vmem:[%s2] sm:$0xff]
      %222 = vset.pattern.permute.xlu0 0
      %223 = vperm.xlu0 %222, %v220
      %v224 = vpop.permute.xlu0 %223
      %v226 = vadd.f32 %v218, %v224
      %v227 = vadd.f32 %v219, %v224
      %v228 = vmax.f32 %v226, 0.0
      %v229 = vmax.f32 %v227, 0.0
      %230 = vst [vmem:[%s208] sm:$0xff] %v228
      %231 = vst [vmem:[%s208 + $0x8] sm:$0xff] %v229
      %s232 = smul.u32 2, %s19
      %p233 = scmp.lt.s32.totalorder %s18, 1
      %s234 = scalar_select %p233, %s18, 1
      %p235 = scmp.lt.s32.totalorder %s232, 3
      %s236 = scalar_select %p235, %s232, 3
      %s237 = smul.addr %s234, 4
      %s238 = sadd.s32 %s236, %s237
      %s239 = smul.addr %s238, 8
      %s240 = scalar_lea.vmem %s3, %s239
      // Predicated region
      $region33: #{double_conv3d.5} parent=31 // pred_check
        %p241 = pneg %p116
      $region34: #{double_conv3d.5} parent=31 // pred_check_branch
        %243 = sbr.rel (%p241) target = $region36
      $region35: #{double_conv3d.5} parent=31 // pred_region
        %s244 = smul.u32 2, %s19
      $region36: #{double_conv3d.5} parent=31 // pred_fallthru
        _
    $region32: #{double_conv3d.5} parent=5 // pred_fallthru
      _
    %p245 = scmp.le.s32.totalorder 2, %s9
    // Predicated region
    $region37: #{double_conv3d.5} parent=5 // pred_check
      %p246 = pneg %p245
    $region38: #{double_conv3d.5} parent=5 // pred_check_branch
      %248 = sbr.rel (%p246) target = $region40
    $region39: #{double_conv3d.5} parent=5 // pred_region
      %s249 = ssub.s32 %s9, 2
      // Predicated region
      $region41: #{double_conv3d.5} parent=39 // pred_check
        %p250 = pneg %p122
      $region42: #{double_conv3d.5} parent=39 // pred_check_branch
        %252 = sbr.rel (%p250) target = $region44
      $region43: #{double_conv3d.5} parent=39 // pred_region
        %s253 = smul.u32 2, %s21
        %p254 = scmp.lt.s32.totalorder %s20, 1
        %s255 = scalar_select %p254, %s20, 1
        %p256 = scmp.lt.s32.totalorder %s253, 3
        %s257 = scalar_select %p256, %s253, 3
        %s258 = smul.addr %s255, 4
        %s259 = sadd.s32 %s257, %s258
        %s260 = smul.addr %s259, 8
        %s261 = scalar_lea.vmem %s3, %s260
      $region44: #{double_conv3d.5} parent=39 // pred_fallthru
        _
    $region40: #{double_conv3d.5} parent=5 // pred_fallthru
      _
  $region6: #{double_conv3d.5} parent=0 // loop_footer
    %s13 = sadd.s32 1, %s9
  $region7: #{double_conv3d.5} parent=0 // loop_footer_branch
    %8 = sbr.rel target = $region3
  $region8: #{double_conv3d.5} parent=0 // loop_exit
    _

// kernel: double_conv3d.4
$region0: #{double_conv3d.4}
  #allocation0 [shape = 'u32[]', space=smem, size = 0x4, offset = 0x4, fixed_abs, tag = 'smem constant byte address 0x4 - core index']
  #allocation1 [shape = 'u32[72,128]{1,0:T(1,128)}', space=vmem, size = 0x9000, scoped, tag = 'internal scratch']
  %s0 = inlined_call_operand.vmem [shape: bf16[2,8,768], index: 0, kind: input, shape index: {}]
  %s1 = inlined_call_operand.vmem [shape: f32[8,1], index: 1, kind: input, shape index: {}]
  %s2 = inlined_call_operand.vmem [shape: f32[8,1], index: 2, kind: input, shape index: {}]
  %s3 = inlined_call_operand.vmem [shape: bf16[3,8,72], index: 3, kind: input, shape index: {}]
  %s4 = inlined_call_operand.vmem [shape: s32[3,256], index: 4, kind: input, shape index: {}]
  %s5 = inlined_call_operand.vmem [shape: f32[2,8,512], index: 5, kind: output, shape index: {0}]
  %s6 = inlined_call_operand.vmem [shape: f32[2,2,8,2], index: 6, kind: output, shape index: {1}]
  %7 = xla_tuple %s5, %s6
  %s8 = sld [smem:[#allocation0]]
  $region61: #{double_conv3d.4} parent=0
    _
  %s10 = ssub.s32 1, %s8
  %s11 = scalar_select 0, %s10, %s8
  loop: start=0, step=1, limit=6
  $region2: #{double_conv3d.4} parent=0 // loop_pre_header
    _
  $region3: #{double_conv3d.4} parent=0 // loop_header
    %s13 = sphi 0, %s17
    %p14 = scmp.ge.s32.totalorder %s13, 6
    %s20 = sphi 0, %s32
    %s21 = sphi 0, %s28
    %s22 = sphi 0, %s20
    %s23 = sphi 0, %s21
    %s24 = sphi 0, %s22
    %s25 = sphi 0, %s23
    %s35 = sphi 0, %s37
    %s38 = sphi 0, %s35
    %s39 = sphi 0, %s38
    %s55 = sphi 0, %s39
    %s59 = sphi 0, %s59
    %s61 = sphi 0, %s59
    %s62 = sphi 0, %s61
    %s76 = sphi 0, %s62
    %s80 = sphi 0, %s80
    %s82 = sphi 0, %s80
    %s83 = sphi 0, %s82
    %s97 = sphi 0, %s83
    %s101 = sphi 0, %s101
    %s103 = sphi 0, %s101
    %s104 = sphi 0, %s103
    %s118 = sphi 0, %s104
    %s122 = sphi 0, %s122
    %s124 = sphi 0, %s122
    %s125 = sphi 0, %s124
    %s139 = sphi 0, %s125
    %s147 = sphi 0, %s149
    %s150 = sphi 0, %s147
    %s151 = sphi 0, %s150
    %s167 = sphi 0, %s151
    %s175 = sphi 0, %s177
    %s178 = sphi 0, %s175
    %s179 = sphi 0, %s178
    %s195 = sphi 0, %s179
  $region4: #{double_conv3d.4} parent=0 // loop_header_branch
    %16 = sbr.rel (%p14) target = $region8
  $region5: #{double_conv3d.4} parent=0 // loop_body
    %s18 = ssub.s32 %s13, 1
    %s19 = ssub.s32 %s13, 2
    %s26 = sadd.s32 1, %s21
    %p27 = scmp.ge.s32.totalorder %s26, 2
    %s28 = scalar_select %p27, 0, %s26
    %s29 = sadd.s32 1, %s20
    %s30 = scalar_select %p27, %s29, %s20
    %p31 = scmp.ge.s32.totalorder %s30, 2
    %s32 = scalar_select %p31, 0, %s30
    %s33 = ssub.s32 %s20, %s32
    %p34 = scmp.eq.s32.totalorder %s33, 0
    %s36 = sadd.s32 %s35, 1
    %s37 = scalar_select %p34, %s35, %s36
    %p40 = pneg %p34
    %p41 = scmp.eq.s32.totalorder %s13, 3
    %p42 = por %p40, %p41
    %p43 = scmp.ne.s32.totalorder %s35, %s38
    %p44 = scmp.eq.s32.totalorder %s13, 0
    %p45 = por %p43, %p44
    %p46 = scmp.ne.s32.totalorder %s35, %s38
    %p47 = scmp.eq.s32.totalorder %s18, 3
    %p48 = por %p46, %p47
    %p49 = scmp.ne.s32.totalorder %s38, %s39
    %p50 = scmp.eq.s32.totalorder %s18, 0
    %p51 = por %p49, %p50
    %p52 = scmp.ne.s32.totalorder %s38, %s39
    %p53 = scmp.eq.s32.totalorder %s19, 3
    %p54 = por %p52, %p53
    %p56 = scmp.ne.s32.totalorder %s39, %s55
    %p57 = scmp.eq.s32.totalorder %s19, 0
    %p58 = por %p56, %p57
    %s60 = sadd.s32 %s59, 1
    %p63 = scmp.eq.s32.totalorder %s13, 3
    %p64 = scmp.ne.s32.totalorder %s59, %s61
    %p65 = scmp.eq.s32.totalorder %s13, 0
    %p66 = por %p64, %p65
    %p67 = scmp.ne.s32.totalorder %s59, %s61
    %p68 = scmp.eq.s32.totalorder %s18, 3
    %p69 = por %p67, %p68
    %p70 = scmp.ne.s32.totalorder %s61, %s62
    %p71 = scmp.eq.s32.totalorder %s18, 0
    %p72 = por %p70, %p71
    %p73 = scmp.ne.s32.totalorder %s61, %s62
    %p74 = scmp.eq.s32.totalorder %s19, 3
    %p75 = por %p73, %p74
    %p77 = scmp.ne.s32.totalorder %s62, %s76
    %p78 = scmp.eq.s32.totalorder %s19, 0
    %p79 = por %p77, %p78
    %s81 = sadd.s32 %s80, 1
    %p84 = scmp.eq.s32.totalorder %s13, 3
    %p85 = scmp.ne.s32.totalorder %s80, %s82
    %p86 = scmp.eq.s32.totalorder %s13, 0
    %p87 = por %p85, %p86
    %p88 = scmp.ne.s32.totalorder %s80, %s82
    %p89 = scmp.eq.s32.totalorder %s18, 3
    %p90 = por %p88, %p89
    %p91 = scmp.ne.s32.totalorder %s82, %s83
    %p92 = scmp.eq.s32.totalorder %s18, 0
    %p93 = por %p91, %p92
    %p94 = scmp.ne.s32.totalorder %s82, %s83
    %p95 = scmp.eq.s32.totalorder %s19, 3
    %p96 = por %p94, %p95
    %p98 = scmp.ne.s32.totalorder %s83, %s97
    %p99 = scmp.eq.s32.totalorder %s19, 0
    %p100 = por %p98, %p99
    %s102 = sadd.s32 %s101, 1
    %p105 = scmp.eq.s32.totalorder %s13, 3
    %p106 = scmp.ne.s32.totalorder %s101, %s103
    %p107 = scmp.eq.s32.totalorder %s13, 0
    %p108 = por %p106, %p107
    %p109 = scmp.ne.s32.totalorder %s101, %s103
    %p110 = scmp.eq.s32.totalorder %s18, 3
    %p111 = por %p109, %p110
    %p112 = scmp.ne.s32.totalorder %s103, %s104
    %p113 = scmp.eq.s32.totalorder %s18, 0
    %p114 = por %p112, %p113
    %p115 = scmp.ne.s32.totalorder %s103, %s104
    %p116 = scmp.eq.s32.totalorder %s19, 3
    %p117 = por %p115, %p116
    %p119 = scmp.ne.s32.totalorder %s104, %s118
    %p120 = scmp.eq.s32.totalorder %s19, 0
    %p121 = por %p119, %p120
    %s123 = sadd.s32 %s122, 1
    %p126 = scmp.eq.s32.totalorder %s13, 3
    %p127 = scmp.ne.s32.totalorder %s122, %s124
    %p128 = scmp.eq.s32.totalorder %s13, 0
    %p129 = por %p127, %p128
    %p130 = scmp.ne.s32.totalorder %s122, %s124
    %p131 = scmp.eq.s32.totalorder %s18, 3
    %p132 = por %p130, %p131
    %p133 = scmp.ne.s32.totalorder %s124, %s125
    %p134 = scmp.eq.s32.totalorder %s18, 0
    %p135 = por %p133, %p134
    %p136 = scmp.ne.s32.totalorder %s124, %s125
    %p137 = scmp.eq.s32.totalorder %s19, 3
    %p138 = por %p136, %p137
    %p140 = scmp.ne.s32.totalorder %s125, %s139
    %p141 = scmp.eq.s32.totalorder %s19, 0
    %p142 = por %p140, %p141
    %s143 = ssub.s32 %s20, %s32
    %s144 = ssub.s32 %s21, %s28
    %s145 = sor.u32 %s143, %s144
    %p146 = scmp.eq.s32.totalorder %s145, 0
    %s148 = sadd.s32 %s147, 1
    %s149 = scalar_select %p146, %s147, %s148
    %p152 = pneg %p146
    %p153 = scmp.eq.s32.totalorder %s13, 3
    %p154 = por %p152, %p153
    %p155 = scmp.ne.s32.totalorder %s147, %s150
    %p156 = scmp.eq.s32.totalorder %s13, 0
    %p157 = por %p155, %p156
    %p158 = scmp.ne.s32.totalorder %s147, %s150
    %p159 = scmp.eq.s32.totalorder %s18, 3
    %p160 = por %p158, %p159
    %p161 = scmp.ne.s32.totalorder %s150, %s151
    %p162 = scmp.eq.s32.totalorder %s18, 0
    %p163 = por %p161, %p162
    %p164 = scmp.ne.s32.totalorder %s150, %s151
    %p165 = scmp.eq.s32.totalorder %s19, 3
    %p166 = por %p164, %p165
    %p168 = scmp.ne.s32.totalorder %s151, %s167
    %p169 = scmp.eq.s32.totalorder %s19, 0
    %p170 = por %p168, %p169
    %s171 = ssub.s32 %s20, %s32
    %s172 = ssub.s32 %s21, %s28
    %s173 = sor.u32 %s171, %s172
    %p174 = scmp.eq.s32.totalorder %s173, 0
    %s176 = sadd.s32 %s175, 1
    %s177 = scalar_select %p174, %s175, %s176
    %p180 = pneg %p174
    %p181 = scmp.eq.s32.totalorder %s13, 3
    %p182 = por %p180, %p181
    %p183 = scmp.ne.s32.totalorder %s175, %s178
    %p184 = scmp.eq.s32.totalorder %s13, 0
    %p185 = por %p183, %p184
    %p186 = scmp.ne.s32.totalorder %s175, %s178
    %p187 = scmp.eq.s32.totalorder %s18, 3
    %p188 = por %p186, %p187
    %p189 = scmp.ne.s32.totalorder %s178, %s179
    %p190 = scmp.eq.s32.totalorder %s18, 0
    %p191 = por %p189, %p190
    %p192 = scmp.ne.s32.totalorder %s178, %s179
    %p193 = scmp.eq.s32.totalorder %s19, 3
    %p194 = por %p192, %p193
    %p196 = scmp.ne.s32.totalorder %s179, %s195
    %p197 = scmp.eq.s32.totalorder %s19, 0
    %p198 = por %p196, %p197
    %p199 = scmp.le.s32.totalorder 1, %s13
    %p200 = scmp.lt.s32.totalorder %s13, 5
    %p201 = pnand %p199, %p200
    %p202 = pneg %p201
    // Predicated region
    $region9: #{double_conv3d.4} parent=5 // pred_check
      _
    $region10: #{double_conv3d.4} parent=5 // pred_check_branch
      %204 = sbr.rel (%p201) target = $region12
    $region11: #{double_conv3d.4} parent=5 // pred_region
      %s205 = ssub.s32 %s13, 1
      // Predicated region
      $region13: #{double_conv3d.4} parent=11 // pred_check
        %p206 = pneg %p72
      $region14: #{double_conv3d.4} parent=11 // pred_check_branch
        %208 = sbr.rel (%p206) target = $region16
      $region15: #{double_conv3d.4} parent=11 // pred_region
        _
      $region16: #{double_conv3d.4} parent=11 // pred_fallthru
        _
      // Predicated region
      $region17: #{double_conv3d.4} parent=11 // pred_check
        %p209 = pneg %p93
      $region18: #{double_conv3d.4} parent=11 // pred_check_branch
        %211 = sbr.rel (%p209) target = $region20
      $region19: #{double_conv3d.4} parent=11 // pred_region
        _
      $region20: #{double_conv3d.4} parent=11 // pred_fallthru
        _
      // Predicated region
      $region21: #{double_conv3d.4} parent=11 // pred_check
        %p212 = pneg %p114
      $region22: #{double_conv3d.4} parent=11 // pred_check_branch
        %214 = sbr.rel (%p212) target = $region24
      $region23: #{double_conv3d.4} parent=11 // pred_region
        _
      $region24: #{double_conv3d.4} parent=11 // pred_fallthru
        _
      // Predicated region
      $region25: #{double_conv3d.4} parent=11 // pred_check
        %p215 = pneg %p135
      $region26: #{double_conv3d.4} parent=11 // pred_check_branch
        %217 = sbr.rel (%p215) target = $region28
      $region27: #{double_conv3d.4} parent=11 // pred_region
        _
      $region28: #{double_conv3d.4} parent=11 // pred_fallthru
        _
    $region12: #{double_conv3d.4} parent=5 // pred_fallthru
      _
    %p218 = scmp.lt.s32.totalorder %s13, 4
    // Predicated region
    $region29: #{double_conv3d.4} parent=5 // pred_check
      %p219 = pneg %p218
    $region30: #{double_conv3d.4} parent=5 // pred_check_branch
      %221 = sbr.rel (%p219) target = $region32
    $region31: #{double_conv3d.4} parent=5 // pred_region
      // Predicated region
      $region33: #{double_conv3d.4} parent=31 // pred_check
        %p222 = pneg %p45
      $region34: #{double_conv3d.4} parent=31 // pred_check_branch
        %224 = sbr.rel (%p222) target = $region36
      $region35: #{double_conv3d.4} parent=31 // pred_region
        %p225 = scmp.lt.s32.totalorder %s20, 1
        %s226 = scalar_select %p225, %s20, 1
        %s227 = smul.addr %s226, 6
        %s228 = smul.addr %s227, 4
        %s229 = scalar_lea.vmem %s0, %s228
      $region36: #{double_conv3d.4} parent=31 // pred_fallthru
        _
    $region32: #{double_conv3d.4} parent=5 // pred_fallthru
      _
    %p230 = scmp.le.s32.totalorder 1, %s13
    %p231 = scmp.lt.s32.totalorder %s13, 5
    %p232 = pnand %p230, %p231
    %p233 = pneg %p232
    // Predicated region
    $region37: #{double_conv3d.4} parent=5 // pred_check
      _
    $region38: #{double_conv3d.4} parent=5 // pred_check_branch
      %235 = sbr.rel (%p232) target = $region40
    $region39: #{double_conv3d.4} parent=5 // pred_region
      %s236 = ssub.s32 %s13, 1
      %p237 = scmp.lt.s32.totalorder %s22, 1
      %s238 = scalar_select %p237, %s22, 1
      %s239 = smul.addr %s238, 6
      %s240 = smul.addr %s239, 4
      %s241 = scalar_lea.vmem %s0, %s240
      %p242 = pneg %p51
      %p243 = pneg %p48
      %p244 = pneg %p72
      %p245 = pneg %p69
      %p246 = pneg %p93
      %p247 = pneg %p90
      %p248 = pneg %p114
      %p249 = pneg %p111
      %p250 = pneg %p135
      %p251 = pneg %p132
      %p252 = pneg %p163
      %p253 = pneg %p160
      %s254 = smul.u32 2, %s23
      %p255 = scmp.lt.s32.totalorder %s22, 1
      %s256 = scalar_select %p255, %s22, 1
      %p257 = scmp.lt.s32.totalorder %s254, 3
      %s258 = scalar_select %p257, %s254, 3
      %s259 = smul.addr %s256, 4
      %s260 = sadd.s32 %s258, %s259
      %s261 = smul.addr %s260, 8
      %s262 = scalar_lea.vmem %s5, %s261
      %p263 = pneg %p191
      %p264 = pneg %p188
      %p265 = scmp.lt.s32.totalorder %s22, 1
      %s266 = scalar_select %p265, %s22, 1
      %p267 = scmp.lt.s32.totalorder %s23, 1
      %s268 = scalar_select %p267, %s23, 1
      %s269 = smul.addr %s266, 2
      %s270 = sadd.s32 %s268, %s269
      %s271 = smul.addr %s270, 8
      %s272 = scalar_lea.vmem %s6, %s271
      %p273 = scmp.lt.s32.totalorder %s22, 1
      %s274 = scalar_select %p273, %s22, 1
      %s275 = smul.addr %s274, 6
      %s276 = smul.addr %s275, 4
      %s277 = scalar_lea.vmem %s0, %s276
      %s278 = smul.u32 2, %s23
      %p279 = scmp.lt.s32.totalorder %s22, 1
      %s280 = scalar_select %p279, %s22, 1
      %p281 = scmp.lt.s32.totalorder %s278, 3
      %s282 = scalar_select %p281, %s278, 3
      %s283 = smul.addr %s280, 4
      %s284 = sadd.s32 %s282, %s283
      %s285 = smul.addr %s284, 8
      %s286 = scalar_lea.vmem %s5, %s285
      %s287 = smul.u32 2, %s23
      %p288 = scmp.lt.s32.totalorder %s22, 1
      %s289 = scalar_select %p288, %s22, 1
      %p290 = scmp.lt.s32.totalorder %s23, 1
      %s291 = scalar_select %p290, %s23, 1
      %s292 = smul.addr %s289, 2
      %s293 = sadd.s32 %s291, %s292
      %s294 = smul.addr %s293, 8
      %s295 = scalar_lea.vmem %s6, %s294
      %s297 = smul.u32 %s23, 256
      %s298 = sshra.s32 %s297, 7
      %s299 = sand.u32 %s297, 127
      %s300 = smul.addr %s298, 4
      %s301 = scalar_lea.vmem %s277, %s300
      %v302 = vld [vmem:[%s301] sm:$0xff]
      %v303 = vld [vmem:[%s301 + $0x8] sm:$0xff]
      %v304 = vunpack.c.l.bf16 %v302
      %v305 = vunpack.c.h.bf16 %v302
      %v306 = vunpack.c.l.bf16 %v303
      %v307 = vunpack.c.h.bf16 %v303
      %v308 = vld [vmem:[%s1] sm:$0xff]
      %310 = vset.pattern.permute.xlu0 0
      %311 = vperm.xlu0 %310, %v308
      %v312 = vpop.permute.xlu0 %311
      %v314 = vmul.f32 %v304, %v312
      %v315 = vmul.f32 %v305, %v312
      %v316 = vmul.f32 %v306, %v312
      %v317 = vmul.f32 %v307, %v312
      %v318 = vld [vmem:[%s2] sm:$0xff]
      %320 = vset.pattern.permute.xlu0 0
      %321 = vperm.xlu0 %320, %v318
      %v322 = vpop.permute.xlu0 %321
      %v324 = vadd.f32 %v314, %v322
      %v325 = vadd.f32 %v315, %v322
      %v326 = vadd.f32 %v316, %v322
      %v327 = vadd.f32 %v317, %v322
      %v328 = vmax.f32 %v324, 0.0
      %v329 = vmax.f32 %v325, 0.0
      %v330 = vmax.f32 %v326, 0.0
      %v331 = vmax.f32 %v327, 0.0
      %s332 = smul.u32 %s23, 4
      %v333 = vld [vmem:[%s4] ss:$4 sm:$0x3]
      %s334 = scalar_lea.vmem %s4, 1
      %v335 = vld [vmem:[%s334] ss:$4 sm:$0x3]
      %s336 = scalar_lea.vmem %s4, 2
      %v337 = vld [vmem:[%s336] ss:$4 sm:$0x3]
      %v338 = vstv %s332
      %v339 = vadd.s32 %v333, %v338
      %vm340 = vcmp.ge.s32.totalorder %v339, 1
      %vm341 = vcmp.ge.s32.totalorder %v335, 1
      %vm342 = vcmp.ge.s32.totalorder %v337, 1
      %vm343 = vmand %vm340, %vm341
      %vm344 = vmand %vm343, %vm342
      %v345 = vsel %vm344, 1, 0
      %v346 = vperm.slane %v345, 0
      %v347 = vperm.slane %v345, 1
      %vm348 = vcmp.eq.s32.totalorder %v346, 1
      %vm349 = vcmp.eq.s32.totalorder %v347, 1
      %353 = vrot.lane.b32.xlu0 %v328, 73
      %v354 = vpop.permute.xlu0 %353
      %355 = vrot.lane.b32.xlu0 %v329, 73
      %v356 = vpop.permute.xlu0 %355
      %357 = vrot.lane.b32.xlu0 %v330, 73
      %v358 = vpop.permute.xlu0 %357
      %vm359 = vcmask 596992
      %v360 = vsel %vm359, %v354, %v356
      %v361 = vsel %vm359, %v356, %v358
      %v364 = vsel %vm348, %v360, 0.0
      %v365 = vsel %vm349, %v361, 0.0
      %v366 = vpack.c.bf16 %v365, %v364
      %v367 = vsel %vm343, 1, 0
      %v368 = vperm.slane %v367, 0
      %v369 = vperm.slane %v367, 1
      %vm370 = vcmp.eq.s32.totalorder %v368, 1
      %vm371 = vcmp.eq.s32.totalorder %v369, 1
      %372 = vrot.lane.b32.xlu0 %v328, 72
      %v373 = vpop.permute.xlu0 %372
      %374 = vrot.lane.b32.xlu0 %v329, 72
      %v375 = vpop.permute.xlu0 %374
      %376 = vrot.lane.b32.xlu0 %v330, 72
      %v377 = vpop.permute.xlu0 %376
      %vm378 = vcmask 588800
      %v379 = vsel %vm378, %v373, %v375
      %v380 = vsel %vm378, %v375, %v377
      %v383 = vsel %vm370, %v379, 0.0
      %v384 = vsel %vm371, %v380, 0.0
      %v385 = vpack.c.bf16 %v384, %v383
      %vm386 = vcmp.lt.s32.totalorder %v337, 7
      %vm387 = vmand %vm343, %vm386
      %v388 = vsel %vm387, 1, 0
      %v389 = vperm.slane %v388, 0
      %v390 = vperm.slane %v388, 1
      %vm391 = vcmp.eq.s32.totalorder %v389, 1
      %vm392 = vcmp.eq.s32.totalorder %v390, 1
      %393 = vrot.lane.b32.xlu0 %v328, 71
      %v394 = vpop.permute.xlu0 %393
      %395 = vrot.lane.b32.xlu0 %v329, 71
      %v396 = vpop.permute.xlu0 %395
      %397 = vrot.lane.b32.xlu0 %v330, 71
      %v398 = vpop.permute.xlu0 %397
      %vm399 = vcmask 580608
      %v400 = vsel %vm399, %v394, %v396
      %v401 = vsel %vm399, %v396, %v398
      %v404 = vsel %vm391, %v400, 0.0
      %v405 = vsel %vm392, %v401, 0.0
      %v406 = vpack.c.bf16 %v405, %v404
      %vm407 = vmand %vm340, %vm342
      %v408 = vsel %vm407, 1, 0
      %v409 = vperm.slane %v408, 0
      %v410 = vperm.slane %v408, 1
      %vm411 = vcmp.eq.s32.totalorder %v409, 1
      %vm412 = vcmp.eq.s32.totalorder %v410, 1
      %413 = vrot.lane.b32.xlu0 %v328, 65
      %v414 = vpop.permute.xlu0 %413
      %415 = vrot.lane.b32.xlu0 %v329, 65
      %v416 = vpop.permute.xlu0 %415
      %417 = vrot.lane.b32.xlu0 %v330, 65
      %v418 = vpop.permute.xlu0 %417
      %vm419 = vcmask 531456
      %v420 = vsel %vm419, %v414, %v416
      %v421 = vsel %vm419, %v416, %v418
      %v424 = vsel %vm411, %v420, 0.0
      %v425 = vsel %vm412, %v421, 0.0
      %v426 = vpack.c.bf16 %v425, %v424
      %v427 = vsel %vm340, 1, 0
      %v428 = vperm.slane %v427, 0
      %v429 = vperm.slane %v427, 1
      %vm430 = vcmp.eq.s32.totalorder %v428, 1
      %vm431 = vcmp.eq.s32.totalorder %v429, 1
      %432 = vrot.lane.b32.xlu0 %v328, 64
      %v433 = vpop.permute.xlu0 %432
      %434 = vrot.lane.b32.xlu0 %v329, 64
      %v435 = vpop.permute.xlu0 %434
      %436 = vrot.lane.b32.xlu0 %v330, 64
      %v437 = vpop.permute.xlu0 %436
      %vm438 = vcmask 523264
      %v439 = vsel %vm438, %v433, %v435
      %v440 = vsel %vm438, %v435, %v437
      %v443 = vsel %vm430, %v439, 0.0
      %v444 = vsel %vm431, %v440, 0.0
      %v445 = vpack.c.bf16 %v444, %v443
      %vm446 = vmand %vm340, %vm386
      %v447 = vsel %vm446, 1, 0
      %v448 = vperm.slane %v447, 0
      %v449 = vperm.slane %v447, 1
      %vm450 = vcmp.eq.s32.totalorder %v448, 1
      %vm451 = vcmp.eq.s32.totalorder %v449, 1
      %452 = vrot.lane.b32.xlu0 %v328, 63
      %v453 = vpop.permute.xlu0 %452
      %454 = vrot.lane.b32.xlu0 %v329, 63
      %v455 = vpop.permute.xlu0 %454
      %456 = vrot.lane.b32.xlu0 %v330, 63
      %v457 = vpop.permute.xlu0 %456
      %vm458 = vcmask 515072
      %v459 = vsel %vm458, %v453, %v455
      %v460 = vsel %vm458, %v455, %v457
      %v463 = vsel %vm450, %v459, 0.0
      %v464 = vsel %vm451, %v460, 0.0
      %v465 = vpack.c.bf16 %v464, %v463
      %vm466 = vcmp.lt.s32.totalorder %v335, 7
      %vm467 = vmand %vm340, %vm466
      %vm468 = vmand %vm467, %vm342
      %v469 = vsel %vm468, 1, 0
      %v470 = vperm.slane %v469, 0
      %v471 = vperm.slane %v469, 1
      %vm472 = vcmp.eq.s32.totalorder %v470, 1
      %vm473 = vcmp.eq.s32.totalorder %v471, 1
      %474 = vrot.lane.b32.xlu0 %v328, 57
      %v475 = vpop.permute.xlu0 %474
      %476 = vrot.lane.b32.xlu0 %v329, 57
      %v477 = vpop.permute.xlu0 %476
      %478 = vrot.lane.b32.xlu0 %v330, 57
      %v479 = vpop.permute.xlu0 %478
      %vm480 = vcmask 465920
      %v481 = vsel %vm480, %v475, %v477
      %v482 = vsel %vm480, %v477, %v479
      %v485 = vsel %vm472, %v481, 0.0
      %v486 = vsel %vm473, %v482, 0.0
      %v487 = vpack.c.bf16 %v486, %v485
      %v488 = vsel %vm467, 1, 0
      %v489 = vperm.slane %v488, 0
      %v490 = vperm.slane %v488, 1
      %vm491 = vcmp.eq.s32.totalorder %v489, 1
      %vm492 = vcmp.eq.s32.totalorder %v490, 1
      %493 = vrot.lane.b32.xlu0 %v328, 56
      %v494 = vpop.permute.xlu0 %493
      %495 = vrot.lane.b32.xlu0 %v329, 56
      %v496 = vpop.permute.xlu0 %495
      %497 = vrot.lane.b32.xlu0 %v330, 56
      %v498 = vpop.permute.xlu0 %497
      %vm499 = vcmask 457728
      %v500 = vsel %vm499, %v494, %v496
      %v501 = vsel %vm499, %v496, %v498
      %v504 = vsel %vm491, %v500, 0.0
      %v505 = vsel %vm492, %v501, 0.0
      %v506 = vpack.c.bf16 %v505, %v504
      %vm507 = vmand %vm467, %vm386
      %v508 = vsel %vm507, 1, 0
      %v509 = vperm.slane %v508, 0
      %v510 = vperm.slane %v508, 1
      %vm511 = vcmp.eq.s32.totalorder %v509, 1
      %vm512 = vcmp.eq.s32.totalorder %v510, 1
      %513 = vrot.lane.b32.xlu0 %v328, 55
      %v514 = vpop.permute.xlu0 %513
      %515 = vrot.lane.b32.xlu0 %v329, 55
      %v516 = vpop.permute.xlu0 %515
      %517 = vrot.lane.b32.xlu0 %v330, 55
      %v518 = vpop.permute.xlu0 %517
      %vm519 = vcmask 449536
      %v520 = vsel %vm519, %v514, %v516
      %v521 = vsel %vm519, %v516, %v518
      %v524 = vsel %vm511, %v520, 0.0
      %v525 = vsel %vm512, %v521, 0.0
      %v526 = vpack.c.bf16 %v525, %v524
      %v528 = vunpack.c.l.b16 %v366
      %v529 = vunpack.c.h.b16 %v366
      %v530 = vpack.c.b16 %v528, %v528
      %v531 = vpack.c.b16 %v529, %v529
      %v533 = vunpack.c.l.b16 %v385
      %v534 = vunpack.c.h.b16 %v385
      %v535 = vpack.c.b16 %v533, %v533
      %v536 = vpack.c.b16 %v534, %v534
      %v538 = vunpack.c.l.b16 %v406
      %v539 = vunpack.c.h.b16 %v406
      %v540 = vpack.c.b16 %v538, %v538
      %v541 = vpack.c.b16 %v539, %v539
      %v543 = vunpack.c.l.b16 %v426
      %v544 = vunpack.c.h.b16 %v426
      %v545 = vpack.c.b16 %v543, %v543
      %v546 = vpack.c.b16 %v544, %v544
      %v548 = vunpack.c.l.b16 %v445
      %v549 = vunpack.c.h.b16 %v445
      %v550 = vpack.c.b16 %v548, %v548
      %v551 = vpack.c.b16 %v549, %v549
      %v553 = vunpack.c.l.b16 %v465
      %v554 = vunpack.c.h.b16 %v465
      %v555 = vpack.c.b16 %v553, %v553
      %v556 = vpack.c.b16 %v554, %v554
      %v558 = vunpack.c.l.b16 %v487
      %v559 = vunpack.c.h.b16 %v487
      %v560 = vpack.c.b16 %v558, %v558
      %v561 = vpack.c.b16 %v559, %v559
      %v563 = vunpack.c.l.b16 %v506
      %v564 = vunpack.c.h.b16 %v506
      %v565 = vpack.c.b16 %v563, %v563
      %v566 = vpack.c.b16 %v564, %v564
      %v568 = vunpack.c.l.b16 %v526
      %v569 = vunpack.c.h.b16 %v526
      %v570 = vpack.c.b16 %v568, %v568
      %v571 = vpack.c.b16 %v569, %v569
      %vm572 = vcmask 1043456
      %v575 = vsel %vm572, %v530, %v535
      %v579 = vsel %vm572, %v531, %v536
      %v583 = vsel %vm572, %v540, %v545
      %v587 = vsel %vm572, %v541, %v546
      %v591 = vsel %vm572, %v550, %v555
      %v595 = vsel %vm572, %v551, %v556
      %v599 = vsel %vm572, %v560, %v565
      %v603 = vsel %vm572, %v561, %v566
      %v605 = vld [vmem:[%s3] sm:$0xf]
      %vm606 = vmand %vm341, %vm342
      %v607 = vsel %vm606, 1, 0
      %v608 = vperm.slane %v607, 0
      %v609 = vperm.slane %v607, 1
      %vm610 = vcmp.eq.s32.totalorder %v608, 1
      %vm611 = vcmp.eq.s32.totalorder %v609, 1
      %612 = vrot.lane.b32.xlu0 %v328, 9
      %v613 = vpop.permute.xlu0 %612
      %614 = vrot.lane.b32.xlu0 %v329, 9
      %v615 = vpop.permute.xlu0 %614
      %616 = vrot.lane.b32.xlu0 %v330, 9
      %v617 = vpop.permute.xlu0 %616
      %vm618 = vcmask 72704
      %v619 = vsel %vm618, %v613, %v615
      %v620 = vsel %vm618, %v615, %v617
      %v623 = vsel %vm610, %v619, 0.0
      %v624 = vsel %vm611, %v620, 0.0
      %v625 = vpack.c.bf16 %v624, %v623
      %v626 = vsel %vm341, 1, 0
      %v627 = vperm.slane %v626, 0
      %v628 = vperm.slane %v626, 1
      %vm629 = vcmp.eq.s32.totalorder %v627, 1
      %vm630 = vcmp.eq.s32.totalorder %v628, 1
      %631 = vrot.lane.b32.xlu0 %v328, 8
      %v632 = vpop.permute.xlu0 %631
      %633 = vrot.lane.b32.xlu0 %v329, 8
      %v634 = vpop.permute.xlu0 %633
      %635 = vrot.lane.b32.xlu0 %v330, 8
      %v636 = vpop.permute.xlu0 %635
      %vm637 = vcmask 64512
      %v638 = vsel %vm637, %v632, %v634
      %v639 = vsel %vm637, %v634, %v636
      %v642 = vsel %vm629, %v638, 0.0
      %v643 = vsel %vm630, %v639, 0.0
      %v644 = vpack.c.bf16 %v643, %v642
      %vm645 = vmand %vm341, %vm386
      %v646 = vsel %vm645, 1, 0
      %v647 = vperm.slane %v646, 0
      %v648 = vperm.slane %v646, 1
      %vm649 = vcmp.eq.s32.totalorder %v647, 1
      %vm650 = vcmp.eq.s32.totalorder %v648, 1
      %651 = vrot.lane.b32.xlu0 %v328, 7
      %v652 = vpop.permute.xlu0 %651
      %653 = vrot.lane.b32.xlu0 %v329, 7
      %v654 = vpop.permute.xlu0 %653
      %655 = vrot.lane.b32.xlu0 %v330, 7
      %v656 = vpop.permute.xlu0 %655
      %vm657 = vcmask 56320
      %v658 = vsel %vm657, %v652, %v654
      %v659 = vsel %vm657, %v654, %v656
      %v662 = vsel %vm649, %v658, 0.0
      %v663 = vsel %vm650, %v659, 0.0
      %v664 = vpack.c.bf16 %v663, %v662
      %v665 = vsel %vm342, 1, 0
      %v666 = vperm.slane %v665, 0
      %v667 = vperm.slane %v665, 1
      %vm668 = vcmp.eq.s32.totalorder %v666, 1
      %vm669 = vcmp.eq.s32.totalorder %v667, 1
      %670 = vrot.lane.b32.xlu0 %v328, 1
      %v671 = vpop.permute.xlu0 %670
      %672 = vrot.lane.b32.xlu0 %v329, 1
      %v673 = vpop.permute.xlu0 %672
      %674 = vrot.lane.b32.xlu0 %v330, 1
      %v675 = vpop.permute.xlu0 %674
      %vm676 = vcmask 7168
      %v677 = vsel %vm676, %v671, %v673
      %v678 = vsel %vm676, %v673, %v675
      %v681 = vsel %vm668, %v677, 0.0
      %v682 = vsel %vm669, %v678, 0.0
      %v683 = vpack.c.bf16 %v682, %v681
      %v684 = vpack.c.bf16 %v330, %v329
      %v685 = vsel %vm386, 1, 0
      %v686 = vperm.slane %v685, 0
      %v687 = vperm.slane %v685, 1
      %vm688 = vcmp.eq.s32.totalorder %v686, 1
      %vm689 = vcmp.eq.s32.totalorder %v687, 1
      %691 = vrot.lane.b32.xlu0 %v329, 127
      %v692 = vpop.permute.xlu0 %691
      %693 = vrot.lane.b32.xlu0 %v330, 127
      %v694 = vpop.permute.xlu0 %693
      %695 = vrot.lane.b32.xlu0 %v331, 127
      %v696 = vpop.permute.xlu0 %695
      %vm697 = vcmask 1039360
      %v698 = vsel %vm697, %v692, %v694
      %v699 = vsel %vm697, %v694, %v696
      %v702 = vsel %vm688, %v698, 0.0
      %v703 = vsel %vm689, %v699, 0.0
      %v704 = vpack.c.bf16 %v703, %v702
      %vm705 = vmand %vm466, %vm342
      %v706 = vsel %vm705, 1, 0
      %v707 = vperm.slane %v706, 0
      %v708 = vperm.slane %v706, 1
      %vm709 = vcmp.eq.s32.totalorder %v707, 1
      %vm710 = vcmp.eq.s32.totalorder %v708, 1
      %711 = vrot.lane.b32.xlu0 %v329, 121
      %v712 = vpop.permute.xlu0 %711
      %713 = vrot.lane.b32.xlu0 %v330, 121
      %v714 = vpop.permute.xlu0 %713
      %715 = vrot.lane.b32.xlu0 %v331, 121
      %v716 = vpop.permute.xlu0 %715
      %vm717 = vcmask 990208
      %v718 = vsel %vm717, %v712, %v714
      %v719 = vsel %vm717, %v714, %v716
      %v722 = vsel %vm709, %v718, 0.0
      %v723 = vsel %vm710, %v719, 0.0
      %v724 = vpack.c.bf16 %v723, %v722
      %v725 = vsel %vm466, 1, 0
      %v726 = vperm.slane %v725, 0
      %v727 = vperm.slane %v725, 1
      %vm728 = vcmp.eq.s32.totalorder %v726, 1
      %vm729 = vcmp.eq.s32.totalorder %v727, 1
      %730 = vrot.lane.b32.xlu0 %v329, 120
      %v731 = vpop.permute.xlu0 %730
      %732 = vrot.lane.b32.xlu0 %v330, 120
      %v733 = vpop.permute.xlu0 %732
      %734 = vrot.lane.b32.xlu0 %v331, 120
      %v735 = vpop.permute.xlu0 %734
      %vm736 = vcmask 982016
      %v737 = vsel %vm736, %v731, %v733
      %v738 = vsel %vm736, %v733, %v735
      %v741 = vsel %vm728, %v737, 0.0
      %v742 = vsel %vm729, %v738, 0.0
      %v743 = vpack.c.bf16 %v742, %v741
      %vm744 = vmand %vm466, %vm386
      %v745 = vsel %vm744, 1, 0
      %v746 = vperm.slane %v745, 0
      %v747 = vperm.slane %v745, 1
      %vm748 = vcmp.eq.s32.totalorder %v746, 1
      %vm749 = vcmp.eq.s32.totalorder %v747, 1
      %750 = vrot.lane.b32.xlu0 %v329, 119
      %v751 = vpop.permute.xlu0 %750
      %752 = vrot.lane.b32.xlu0 %v330, 119
      %v753 = vpop.permute.xlu0 %752
      %754 = vrot.lane.b32.xlu0 %v331, 119
      %v755 = vpop.permute.xlu0 %754
      %vm756 = vcmask 973824
      %v757 = vsel %vm756, %v751, %v753
      %v758 = vsel %vm756, %v753, %v755
      %v761 = vsel %vm748, %v757, 0.0
      %v762 = vsel %vm749, %v758, 0.0
      %v763 = vpack.c.bf16 %v762, %v761
      %v765 = vunpack.c.l.b16 %v625
      %v766 = vunpack.c.h.b16 %v625
      %v767 = vpack.c.b16 %v765, %v765
      %v768 = vpack.c.b16 %v766, %v766
      %v770 = vunpack.c.l.b16 %v644
      %v771 = vunpack.c.h.b16 %v644
      %v772 = vpack.c.b16 %v770, %v770
      %v773 = vpack.c.b16 %v771, %v771
      %v775 = vunpack.c.l.b16 %v664
      %v776 = vunpack.c.h.b16 %v664
      %v777 = vpack.c.b16 %v775, %v775
      %v778 = vpack.c.b16 %v776, %v776
      %v780 = vunpack.c.l.b16 %v683
      %v781 = vunpack.c.h.b16 %v683
      %v782 = vpack.c.b16 %v780, %v780
      %v783 = vpack.c.b16 %v781, %v781
      %v785 = vunpack.c.l.b16 %v684
      %v786 = vunpack.c.h.b16 %v684
      %v787 = vpack.c.b16 %v785, %v785
      %v788 = vpack.c.b16 %v786, %v786
      %v790 = vunpack.c.l.b16 %v704
      %v791 = vunpack.c.h.b16 %v704
      %v792 = vpack.c.b16 %v790, %v790
      %v793 = vpack.c.b16 %v791, %v791
      %v795 = vunpack.c.l.b16 %v724
      %v796 = vunpack.c.h.b16 %v724
      %v797 = vpack.c.b16 %v795, %v795
      %v798 = vpack.c.b16 %v796, %v796
      %v800 = vunpack.c.l.b16 %v743
      %v801 = vunpack.c.h.b16 %v743
      %v802 = vpack.c.b16 %v800, %v800
      %v803 = vpack.c.b16 %v801, %v801
      %v805 = vunpack.c.l.b16 %v763
      %v806 = vunpack.c.h.b16 %v763
      %v807 = vpack.c.b16 %v805, %v805
      %v808 = vpack.c.b16 %v806, %v806
      %v811 = vsel %vm572, %v767, %v772
      %v815 = vsel %vm572, %v768, %v773
      %v819 = vsel %vm572, %v777, %v782
      %v823 = vsel %vm572, %v778, %v783
      %v827 = vsel %vm572, %v787, %v792
      %v831 = vsel %vm572, %v788, %v793
      %v835 = vsel %vm572, %v797, %v802
      %v839 = vsel %vm572, %v798, %v803
      %s841 = scalar_lea.vmem %s3, 4
      %v842 = vld [vmem:[%s841] sm:$0xf]
      %v844 = vsel %vm378, %v842, 0
      %v847 = vsel %vm572, %v807, 0
      %v850 = vsel %vm572, %v808, 0
      %852 = vmatpush.bf16.msra.mxu0 0
      %853 = vmatpush.bf16.msra.mxu0 0
      %854 = vmatpush.bf16.msra.mxu0 0
      %855 = vmatpush.bf16.msra.mxu0 %v847
      %856 = vmatpush.bf16.msra.mxu0 %v835
      %857 = vmatpush.bf16.msra.mxu0 %v827
      %858 = vmatpush.bf16.msra.mxu0 %v819
      %859 = vmatpush.bf16.msra.mxu0 %v811
      %860 = vmatmul.bf16.gmra.mxu0 %v844
      %v861 = vpop.f32.mrf.mxu0
      %v862 = vadd.f32 0.0, %v861
      %v863 = vpop.f32.mrf.mxu0
      %864 = vdwg.mxu0
      %865 = vmatpush.bf16.msra.mxu0 0
      %866 = vmatpush.bf16.msra.mxu0 0
      %867 = vmatpush.bf16.msra.mxu0 0
      %868 = vmatpush.bf16.msra.mxu0 %v850
      %869 = vmatpush.bf16.msra.mxu0 %v839
      %870 = vmatpush.bf16.msra.mxu0 %v831
      %871 = vmatpush.bf16.msra.mxu0 %v823
      %872 = vmatpush.bf16.msra.mxu0 %v815
      %873 = vmatmul.bf16.gmra.mxu0 %v844
      %v874 = vpop.f32.mrf.mxu0
      %v875 = vadd.f32 0.0, %v874
      %v876 = vpop.f32.mrf.mxu0
      %877 = vdwg.mxu0
      %v879 = vsel %vm378, %v605, 0
      %v882 = vsel %vm572, %v570, 0
      %v885 = vsel %vm572, %v571, 0
      %887 = vmatpush.bf16.msra.mxu0 0
      %888 = vmatpush.bf16.msra.mxu0 0
      %889 = vmatpush.bf16.msra.mxu0 0
      %890 = vmatpush.bf16.msra.mxu0 %v882
      %891 = vmatpush.bf16.msra.mxu0 %v599
      %892 = vmatpush.bf16.msra.mxu0 %v591
      %893 = vmatpush.bf16.msra.mxu0 %v583
      %894 = vmatpush.bf16.msra.mxu0 %v575
      %895 = vmatmul.bf16.gmra.mxu0 %v879
      %v896 = vpop.f32.mrf.mxu0
      %v897 = vadd.f32 %v862, %v896
      %v898 = vpop.f32.mrf.mxu0
      %899 = vdwg.mxu0
      %900 = vmatpush.bf16.msra.mxu0 0
      %901 = vmatpush.bf16.msra.mxu0 0
      %902 = vmatpush.bf16.msra.mxu0 0
      %903 = vmatpush.bf16.msra.mxu0 %v885
      %904 = vmatpush.bf16.msra.mxu0 %v603
      %905 = vmatpush.bf16.msra.mxu0 %v595
      %906 = vmatpush.bf16.msra.mxu0 %v587
      %907 = vmatpush.bf16.msra.mxu0 %v579
      %908 = vmatmul.bf16.gmra.mxu0 %v879
      %v909 = vpop.f32.mrf.mxu0
      %v910 = vadd.f32 %v875, %v909
      %v911 = vpop.f32.mrf.mxu0
      %912 = vdwg.mxu0
      %vm913 = vcmp.lt.s32.totalorder %v339, 7
      %vm914 = vmand %vm913, %vm341
      %vm915 = vmand %vm914, %vm342
      %v916 = vsel %vm915, 1, 0
      %v917 = vperm.slane %v916, 0
      %v918 = vperm.slane %v916, 1
      %vm919 = vcmp.eq.s32.totalorder %v917, 1
      %vm920 = vcmp.eq.s32.totalorder %v918, 1
      %921 = vrot.lane.b32.xlu0 %v331, 73
      %v922 = vpop.permute.xlu0 %921
      %v923 = vsel %vm359, %v358, %v922
      %v925 = vsel %vm919, %v361, 0.0
      %v926 = vsel %vm920, %v923, 0.0
      %v927 = vpack.c.bf16 %v926, %v925
      %v928 = vsel %vm914, 1, 0
      %v929 = vperm.slane %v928, 0
      %v930 = vperm.slane %v928, 1
      %vm931 = vcmp.eq.s32.totalorder %v929, 1
      %vm932 = vcmp.eq.s32.totalorder %v930, 1
      %933 = vrot.lane.b32.xlu0 %v331, 72
      %v934 = vpop.permute.xlu0 %933
      %v935 = vsel %vm378, %v377, %v934
      %v937 = vsel %vm931, %v380, 0.0
      %v938 = vsel %vm932, %v935, 0.0
      %v939 = vpack.c.bf16 %v938, %v937
      %vm940 = vmand %vm914, %vm386
      %v941 = vsel %vm940, 1, 0
      %v942 = vperm.slane %v941, 0
      %v943 = vperm.slane %v941, 1
      %vm944 = vcmp.eq.s32.totalorder %v942, 1
      %vm945 = vcmp.eq.s32.totalorder %v943, 1
      %946 = vrot.lane.b32.xlu0 %v331, 71
      %v947 = vpop.permute.xlu0 %946
      %v948 = vsel %vm399, %v398, %v947
      %v950 = vsel %vm944, %v401, 0.0
      %v951 = vsel %vm945, %v948, 0.0
      %v952 = vpack.c.bf16 %v951, %v950
      %vm953 = vmand %vm913, %vm342
      %v954 = vsel %vm953, 1, 0
      %v955 = vperm.slane %v954, 0
      %v956 = vperm.slane %v954, 1
      %vm957 = vcmp.eq.s32.totalorder %v955, 1
      %vm958 = vcmp.eq.s32.totalorder %v956, 1
      %959 = vrot.lane.b32.xlu0 %v331, 65
      %v960 = vpop.permute.xlu0 %959
      %v961 = vsel %vm419, %v418, %v960
      %v963 = vsel %vm957, %v421, 0.0
      %v964 = vsel %vm958, %v961, 0.0
      %v965 = vpack.c.bf16 %v964, %v963
      %v966 = vsel %vm913, 1, 0
      %v967 = vperm.slane %v966, 0
      %v968 = vperm.slane %v966, 1
      %vm969 = vcmp.eq.s32.totalorder %v967, 1
      %vm970 = vcmp.eq.s32.totalorder %v968, 1
      %971 = vrot.lane.b32.xlu0 %v331, 64
      %v972 = vpop.permute.xlu0 %971
      %v973 = vsel %vm438, %v437, %v972
      %v975 = vsel %vm969, %v440, 0.0
      %v976 = vsel %vm970, %v973, 0.0
      %v977 = vpack.c.bf16 %v976, %v975
      %vm978 = vmand %vm913, %vm386
      %v979 = vsel %vm978, 1, 0
      %v980 = vperm.slane %v979, 0
      %v981 = vperm.slane %v979, 1
      %vm982 = vcmp.eq.s32.totalorder %v980, 1
      %vm983 = vcmp.eq.s32.totalorder %v981, 1
      %984 = vrot.lane.b32.xlu0 %v331, 63
      %v985 = vpop.permute.xlu0 %984
      %v986 = vsel %vm458, %v457, %v985
      %v988 = vsel %vm982, %v460, 0.0
      %v989 = vsel %vm983, %v986, 0.0
      %v990 = vpack.c.bf16 %v989, %v988
      %vm991 = vmand %vm913, %vm466
      %vm992 = vmand %vm991, %vm342
      %v993 = vsel %vm992, 1, 0
      %v994 = vperm.slane %v993, 0
      %v995 = vperm.slane %v993, 1
      %vm996 = vcmp.eq.s32.totalorder %v994, 1
      %vm997 = vcmp.eq.s32.totalorder %v995, 1
      %998 = vrot.lane.b32.xlu0 %v331, 57
      %v999 = vpop.permute.xlu0 %998
      %v1000 = vsel %vm480, %v479, %v999
      %v1002 = vsel %vm996, %v482, 0.0
      %v1003 = vsel %vm997, %v1000, 0.0
      %v1004 = vpack.c.bf16 %v1003, %v1002
      %v1005 = vsel %vm991, 1, 0
      %v1006 = vperm.slane %v1005, 0
      %v1007 = vperm.slane %v1005, 1
      %vm1008 = vcmp.eq.s32.totalorder %v1006, 1
      %vm1009 = vcmp.eq.s32.totalorder %v1007, 1
      %1010 = vrot.lane.b32.xlu0 %v331, 56
      %v1011 = vpop.permute.xlu0 %1010
      %v1012 = vsel %vm499, %v498, %v1011
      %v1014 = vsel %vm1008, %v501, 0.0
      %v1015 = vsel %vm1009, %v1012, 0.0
      %v1016 = vpack.c.bf16 %v1015, %v1014
      %vm1017 = vmand %vm991, %vm386
      %v1018 = vsel %vm1017, 1, 0
      %v1019 = vperm.slane %v1018, 0
      %v1020 = vperm.slane %v1018, 1
      %vm1021 = vcmp.eq.s32.totalorder %v1019, 1
      %vm1022 = vcmp.eq.s32.totalorder %v1020, 1
      %1023 = vrot.lane.b32.xlu0 %v331, 55
      %v1024 = vpop.permute.xlu0 %1023
      %v1025 = vsel %vm519, %v518, %v1024
      %v1027 = vsel %vm1021, %v521, 0.0
      %v1028 = vsel %vm1022, %v1025, 0.0
      %v1029 = vpack.c.bf16 %v1028, %v1027
      %v1031 = vunpack.c.l.b16 %v927
      %v1032 = vunpack.c.h.b16 %v927
      %v1033 = vpack.c.b16 %v1031, %v1031
      %v1034 = vpack.c.b16 %v1032, %v1032
      %v1036 = vunpack.c.l.b16 %v939
      %v1037 = vunpack.c.h.b16 %v939
      %v1038 = vpack.c.b16 %v1036, %v1036
      %v1039 = vpack.c.b16 %v1037, %v1037
      %v1041 = vunpack.c.l.b16 %v952
      %v1042 = vunpack.c.h.b16 %v952
      %v1043 = vpack.c.b16 %v1041, %v1041
      %v1044 = vpack.c.b16 %v1042, %v1042
      %v1046 = vunpack.c.l.b16 %v965
      %v1047 = vunpack.c.h.b16 %v965
      %v1048 = vpack.c.b16 %v1046, %v1046
      %v1049 = vpack.c.b16 %v1047, %v1047
      %v1051 = vunpack.c.l.b16 %v977
      %v1052 = vunpack.c.h.b16 %v977
      %v1053 = vpack.c.b16 %v1051, %v1051
      %v1054 = vpack.c.b16 %v1052, %v1052
      %v1056 = vunpack.c.l.b16 %v990
      %v1057 = vunpack.c.h.b16 %v990
      %v1058 = vpack.c.b16 %v1056, %v1056
      %v1059 = vpack.c.b16 %v1057, %v1057
      %v1061 = vunpack.c.l.b16 %v1004
      %v1062 = vunpack.c.h.b16 %v1004
      %v1063 = vpack.c.b16 %v1061, %v1061
      %v1064 = vpack.c.b16 %v1062, %v1062
      %v1066 = vunpack.c.l.b16 %v1016
      %v1067 = vunpack.c.h.b16 %v1016
      %v1068 = vpack.c.b16 %v1066, %v1066
      %v1069 = vpack.c.b16 %v1067, %v1067
      %v1071 = vunpack.c.l.b16 %v1029
      %v1072 = vunpack.c.h.b16 %v1029
      %v1073 = vpack.c.b16 %v1071, %v1071
      %v1074 = vpack.c.b16 %v1072, %v1072
      %v1077 = vsel %vm572, %v1033, %v1038
      %v1081 = vsel %vm572, %v1034, %v1039
      %v1085 = vsel %vm572, %v1043, %v1048
      %v1089 = vsel %vm572, %v1044, %v1049
      %v1093 = vsel %vm572, %v1053, %v1058
      %v1097 = vsel %vm572, %v1054, %v1059
      %v1101 = vsel %vm572, %v1063, %v1068
      %v1105 = vsel %vm572, %v1064, %v1069
      %s1107 = scalar_lea.vmem %s3, 8
      %v1108 = vld [vmem:[%s1107] sm:$0xf]
      %v1110 = vsel %vm378, %v1108, 0
      %v1113 = vsel %vm572, %v1073, 0
      %v1116 = vsel %vm572, %v1074, 0
      %1118 = vmatpush.bf16.msra.mxu0 0
      %1119 = vmatpush.bf16.msra.mxu0 0
      %1120 = vmatpush.bf16.msra.mxu0 0
      %1121 = vmatpush.bf16.msra.mxu0 %v1113
      %1122 = vmatpush.bf16.msra.mxu0 %v1101
      %1123 = vmatpush.bf16.msra.mxu0 %v1093
      %1124 = vmatpush.bf16.msra.mxu0 %v1085
      %1125 = vmatpush.bf16.msra.mxu0 %v1077
      %1126 = vmatmul.bf16.gmra.mxu0 %v1110
      %v1127 = vpop.f32.mrf.mxu0
      %v1128 = vadd.f32 0.0, %v1127
      %v1129 = vpop.f32.mrf.mxu0
      %1130 = vdwg.mxu0
      %1131 = vmatpush.bf16.msra.mxu0 0
      %1132 = vmatpush.bf16.msra.mxu0 0
      %1133 = vmatpush.bf16.msra.mxu0 0
      %1134 = vmatpush.bf16.msra.mxu0 %v1116
      %1135 = vmatpush.bf16.msra.mxu0 %v1105
      %1136 = vmatpush.bf16.msra.mxu0 %v1097
      %1137 = vmatpush.bf16.msra.mxu0 %v1089
      %1138 = vmatpush.bf16.msra.mxu0 %v1081
      %1139 = vmatmul.bf16.gmra.mxu0 %v1110
      %v1140 = vpop.f32.mrf.mxu0
      %v1141 = vadd.f32 0.0, %v1140
      %v1142 = vpop.f32.mrf.mxu0
      %1143 = vdwg.mxu0
      %v1144 = vadd.f32 %v897, %v1128
      %v1145 = vadd.f32 %v910, %v1141
      %1146 = vst [vmem:[%s286] sm:$0xff] %v1144
      %1147 = vst [vmem:[%s286 + $0x8] sm:$0xff] %v1145
      %v1148 = vadd.f32 %v1144, %v1145
      %1149 = vadd.xlane.f32.xlu0 %v1148
      %v1150 = vpop.xlane.xlu0 %1149
      %1151 = vst.msk [vmem:[%s295] sm:$0xff] %vm676, %v1150
      %v1152 = vmul.f32 %v1144, %v1144
      %v1153 = vmul.f32 %v1145, %v1145
      %v1154 = vadd.f32 %v1152, %v1153
      %1155 = vadd.xlane.f32.xlu0 %v1154
      %v1156 = vpop.xlane.xlu0 %1155
      %vm1157 = vcmask 15368
      %1158 = vst.msk [vmem:[%s295] sm:$0xff] %vm1157, %v1156
      %s1159 = smul.u32 2, %s23
      %p1160 = scmp.lt.s32.totalorder %s22, 1
      %s1161 = scalar_select %p1160, %s22, 1
      %p1162 = scmp.lt.s32.totalorder %s1159, 3
      %s1163 = scalar_select %p1162, %s1159, 3
      %s1164 = smul.addr %s1161, 4
      %s1165 = sadd.s32 %s1163, %s1164
      %s1166 = smul.addr %s1165, 8
      %s1167 = scalar_lea.vmem %s5, %s1166
      %p1168 = scmp.lt.s32.totalorder %s22, 1
      %s1169 = scalar_select %p1168, %s22, 1
      %p1170 = scmp.lt.s32.totalorder %s23, 1
      %s1171 = scalar_select %p1170, %s23, 1
      %s1172 = smul.addr %s1169, 2
      %s1173 = sadd.s32 %s1171, %s1172
      %s1174 = smul.addr %s1173, 8
      %s1175 = scalar_lea.vmem %s6, %s1174
      // Predicated region
      $region41: #{double_conv3d.4} parent=39 // pred_check
        %p1176 = pneg %p160
      $region42: #{double_conv3d.4} parent=39 // pred_check_branch
        %1178 = sbr.rel (%p1176) target = $region44
      $region43: #{double_conv3d.4} parent=39 // pred_region
        %s1179 = smul.u32 2, %s23
      $region44: #{double_conv3d.4} parent=39 // pred_fallthru
        _
      // Predicated region
      $region45: #{double_conv3d.4} parent=39 // pred_check
        %p1180 = pneg %p188
      $region46: #{double_conv3d.4} parent=39 // pred_check_branch
        %1182 = sbr.rel (%p1180) target = $region48
      $region47: #{double_conv3d.4} parent=39 // pred_region
        _
      $region48: #{double_conv3d.4} parent=39 // pred_fallthru
        _
    $region40: #{double_conv3d.4} parent=5 // pred_fallthru
      _
    %p1183 = scmp.le.s32.totalorder 2, %s13
    // Predicated region
    $region49: #{double_conv3d.4} parent=5 // pred_check
      %p1184 = pneg %p1183
    $region50: #{double_conv3d.4} parent=5 // pred_check_branch
      %1186 = sbr.rel (%p1184) target = $region52
    $region51: #{double_conv3d.4} parent=5 // pred_region
      %s1187 = ssub.s32 %s13, 2
      // Predicated region
      $region53: #{double_conv3d.4} parent=51 // pred_check
        %p1188 = pneg %p166
      $region54: #{double_conv3d.4} parent=51 // pred_check_branch
        %1190 = sbr.rel (%p1188) target = $region56
      $region55: #{double_conv3d.4} parent=51 // pred_region
        %s1191 = smul.u32 2, %s25
        %p1192 = scmp.lt.s32.totalorder %s24, 1
        %s1193 = scalar_select %p1192, %s24, 1
        %p1194 = scmp.lt.s32.totalorder %s1191, 3
        %s1195 = scalar_select %p1194, %s1191, 3
        %s1196 = smul.addr %s1193, 4
        %s1197 = sadd.s32 %s1195, %s1196
        %s1198 = smul.addr %s1197, 8
        %s1199 = scalar_lea.vmem %s5, %s1198
      $region56: #{double_conv3d.4} parent=51 // pred_fallthru
        _
      // Predicated region
      $region57: #{double_conv3d.4} parent=51 // pred_check
        %p1200 = pneg %p194
      $region58: #{double_conv3d.4} parent=51 // pred_check_branch
        %1202 = sbr.rel (%p1200) target = $region60
      $region59: #{double_conv3d.4} parent=51 // pred_region
        %p1203 = scmp.lt.s32.totalorder %s24, 1
        %s1204 = scalar_select %p1203, %s24, 1
        %p1205 = scmp.lt.s32.totalorder %s25, 1
        %s1206 = scalar_select %p1205, %s25, 1
        %s1207 = smul.addr %s1204, 2
        %s1208 = sadd.s32 %s1206, %s1207
        %s1209 = smul.addr %s1208, 8
        %s1210 = scalar_lea.vmem %s6, %s1209
      $region60: #{double_conv3d.4} parent=51 // pred_fallthru
        _
    $region52: #{double_conv3d.4} parent=5 // pred_fallthru
      _
  $region6: #{double_conv3d.4} parent=0 // loop_footer
    %s17 = sadd.s32 1, %s13
  $region7: #{double_conv3d.4} parent=0 // loop_footer_branch
    %12 = sbr.rel target = $region3
  $region8: #{double_conv3d.4} parent=0 // loop_exit
    _

// kernel: double_conv3d.3
$region0: #{double_conv3d.3}
  #allocation0 [shape = 'u32[]', space=smem, size = 0x4, offset = 0x4, fixed_abs, tag = 'smem constant byte address 0x4 - core index']
  #allocation1 [shape = 'u32[72,128]{1,0:T(1,128)}', space=vmem, size = 0x9000, scoped, tag = 'internal scratch']
  %s0 = inlined_call_operand.vmem [shape: f32[2,8,768], index: 0, kind: input, shape index: {}]
  %s1 = inlined_call_operand.vmem [shape: bf16[3,8,72], index: 1, kind: input, shape index: {}]
  %s2 = inlined_call_operand.vmem [shape: s32[3,256], index: 2, kind: input, shape index: {}]
  %s3 = inlined_call_operand.vmem [shape: bf16[2,8,512], index: 3, kind: output, shape index: {0}]
  %s4 = inlined_call_operand.vmem [shape: f32[2,2,8,2], index: 4, kind: output, shape index: {1}]
  %5 = xla_tuple %s3, %s4
  %s6 = sld [smem:[#allocation0]]
  $region53: #{double_conv3d.3} parent=0
    _
  %s8 = ssub.s32 1, %s6
  %s9 = scalar_select 0, %s8, %s6
  loop: start=0, step=1, limit=6
  $region2: #{double_conv3d.3} parent=0 // loop_pre_header
    _
  $region3: #{double_conv3d.3} parent=0 // loop_header
    %s11 = sphi 0, %s15
    %p12 = scmp.ge.s32.totalorder %s11, 6
    %s18 = sphi 0, %s30
    %s19 = sphi 0, %s26
    %s20 = sphi 0, %s18
    %s21 = sphi 0, %s19
    %s22 = sphi 0, %s20
    %s23 = sphi 0, %s21
    %s33 = sphi 0, %s35
    %s36 = sphi 0, %s33
    %s37 = sphi 0, %s36
    %s53 = sphi 0, %s37
    %s57 = sphi 0, %s57
    %s59 = sphi 0, %s57
    %s60 = sphi 0, %s59
    %s74 = sphi 0, %s60
    %s78 = sphi 0, %s78
    %s80 = sphi 0, %s78
    %s81 = sphi 0, %s80
    %s95 = sphi 0, %s81
    %s103 = sphi 0, %s105
    %s106 = sphi 0, %s103
    %s107 = sphi 0, %s106
    %s123 = sphi 0, %s107
    %s131 = sphi 0, %s133
    %s134 = sphi 0, %s131
    %s135 = sphi 0, %s134
    %s151 = sphi 0, %s135
  $region4: #{double_conv3d.3} parent=0 // loop_header_branch
    %14 = sbr.rel (%p12) target = $region8
  $region5: #{double_conv3d.3} parent=0 // loop_body
    %s16 = ssub.s32 %s11, 1
    %s17 = ssub.s32 %s11, 2
    %s24 = sadd.s32 1, %s19
    %p25 = scmp.ge.s32.totalorder %s24, 2
    %s26 = scalar_select %p25, 0, %s24
    %s27 = sadd.s32 1, %s18
    %s28 = scalar_select %p25, %s27, %s18
    %p29 = scmp.ge.s32.totalorder %s28, 2
    %s30 = scalar_select %p29, 0, %s28
    %s31 = ssub.s32 %s18, %s30
    %p32 = scmp.eq.s32.totalorder %s31, 0
    %s34 = sadd.s32 %s33, 1
    %s35 = scalar_select %p32, %s33, %s34
    %p38 = pneg %p32
    %p39 = scmp.eq.s32.totalorder %s11, 3
    %p40 = por %p38, %p39
    %p41 = scmp.ne.s32.totalorder %s33, %s36
    %p42 = scmp.eq.s32.totalorder %s11, 0
    %p43 = por %p41, %p42
    %p44 = scmp.ne.s32.totalorder %s33, %s36
    %p45 = scmp.eq.s32.totalorder %s16, 3
    %p46 = por %p44, %p45
    %p47 = scmp.ne.s32.totalorder %s36, %s37
    %p48 = scmp.eq.s32.totalorder %s16, 0
    %p49 = por %p47, %p48
    %p50 = scmp.ne.s32.totalorder %s36, %s37
    %p51 = scmp.eq.s32.totalorder %s17, 3
    %p52 = por %p50, %p51
    %p54 = scmp.ne.s32.totalorder %s37, %s53
    %p55 = scmp.eq.s32.totalorder %s17, 0
    %p56 = por %p54, %p55
    %s58 = sadd.s32 %s57, 1
    %p61 = scmp.eq.s32.totalorder %s11, 3
    %p62 = scmp.ne.s32.totalorder %s57, %s59
    %p63 = scmp.eq.s32.totalorder %s11, 0
    %p64 = por %p62, %p63
    %p65 = scmp.ne.s32.totalorder %s57, %s59
    %p66 = scmp.eq.s32.totalorder %s16, 3
    %p67 = por %p65, %p66
    %p68 = scmp.ne.s32.totalorder %s59, %s60
    %p69 = scmp.eq.s32.totalorder %s16, 0
    %p70 = por %p68, %p69
    %p71 = scmp.ne.s32.totalorder %s59, %s60
    %p72 = scmp.eq.s32.totalorder %s17, 3
    %p73 = por %p71, %p72
    %p75 = scmp.ne.s32.totalorder %s60, %s74
    %p76 = scmp.eq.s32.totalorder %s17, 0
    %p77 = por %p75, %p76
    %s79 = sadd.s32 %s78, 1
    %p82 = scmp.eq.s32.totalorder %s11, 3
    %p83 = scmp.ne.s32.totalorder %s78, %s80
    %p84 = scmp.eq.s32.totalorder %s11, 0
    %p85 = por %p83, %p84
    %p86 = scmp.ne.s32.totalorder %s78, %s80
    %p87 = scmp.eq.s32.totalorder %s16, 3
    %p88 = por %p86, %p87
    %p89 = scmp.ne.s32.totalorder %s80, %s81
    %p90 = scmp.eq.s32.totalorder %s16, 0
    %p91 = por %p89, %p90
    %p92 = scmp.ne.s32.totalorder %s80, %s81
    %p93 = scmp.eq.s32.totalorder %s17, 3
    %p94 = por %p92, %p93
    %p96 = scmp.ne.s32.totalorder %s81, %s95
    %p97 = scmp.eq.s32.totalorder %s17, 0
    %p98 = por %p96, %p97
    %s99 = ssub.s32 %s18, %s30
    %s100 = ssub.s32 %s19, %s26
    %s101 = sor.u32 %s99, %s100
    %p102 = scmp.eq.s32.totalorder %s101, 0
    %s104 = sadd.s32 %s103, 1
    %s105 = scalar_select %p102, %s103, %s104
    %p108 = pneg %p102
    %p109 = scmp.eq.s32.totalorder %s11, 3
    %p110 = por %p108, %p109
    %p111 = scmp.ne.s32.totalorder %s103, %s106
    %p112 = scmp.eq.s32.totalorder %s11, 0
    %p113 = por %p111, %p112
    %p114 = scmp.ne.s32.totalorder %s103, %s106
    %p115 = scmp.eq.s32.totalorder %s16, 3
    %p116 = por %p114, %p115
    %p117 = scmp.ne.s32.totalorder %s106, %s107
    %p118 = scmp.eq.s32.totalorder %s16, 0
    %p119 = por %p117, %p118
    %p120 = scmp.ne.s32.totalorder %s106, %s107
    %p121 = scmp.eq.s32.totalorder %s17, 3
    %p122 = por %p120, %p121
    %p124 = scmp.ne.s32.totalorder %s107, %s123
    %p125 = scmp.eq.s32.totalorder %s17, 0
    %p126 = por %p124, %p125
    %s127 = ssub.s32 %s18, %s30
    %s128 = ssub.s32 %s19, %s26
    %s129 = sor.u32 %s127, %s128
    %p130 = scmp.eq.s32.totalorder %s129, 0
    %s132 = sadd.s32 %s131, 1
    %s133 = scalar_select %p130, %s131, %s132
    %p136 = pneg %p130
    %p137 = scmp.eq.s32.totalorder %s11, 3
    %p138 = por %p136, %p137
    %p139 = scmp.ne.s32.totalorder %s131, %s134
    %p140 = scmp.eq.s32.totalorder %s11, 0
    %p141 = por %p139, %p140
    %p142 = scmp.ne.s32.totalorder %s131, %s134
    %p143 = scmp.eq.s32.totalorder %s16, 3
    %p144 = por %p142, %p143
    %p145 = scmp.ne.s32.totalorder %s134, %s135
    %p146 = scmp.eq.s32.totalorder %s16, 0
    %p147 = por %p145, %p146
    %p148 = scmp.ne.s32.totalorder %s134, %s135
    %p149 = scmp.eq.s32.totalorder %s17, 3
    %p150 = por %p148, %p149
    %p152 = scmp.ne.s32.totalorder %s135, %s151
    %p153 = scmp.eq.s32.totalorder %s17, 0
    %p154 = por %p152, %p153
    %p155 = scmp.le.s32.totalorder 1, %s11
    %p156 = scmp.lt.s32.totalorder %s11, 5
    %p157 = pnand %p155, %p156
    %p158 = pneg %p157
    // Predicated region
    $region9: #{double_conv3d.3} parent=5 // pred_check
      _
    $region10: #{double_conv3d.3} parent=5 // pred_check_branch
      %160 = sbr.rel (%p157) target = $region12
    $region11: #{double_conv3d.3} parent=5 // pred_region
      %s161 = ssub.s32 %s11, 1
      // Predicated region
      $region13: #{double_conv3d.3} parent=11 // pred_check
        %p162 = pneg %p70
      $region14: #{double_conv3d.3} parent=11 // pred_check_branch
        %164 = sbr.rel (%p162) target = $region16
      $region15: #{double_conv3d.3} parent=11 // pred_region
        _
      $region16: #{double_conv3d.3} parent=11 // pred_fallthru
        _
      // Predicated region
      $region17: #{double_conv3d.3} parent=11 // pred_check
        %p165 = pneg %p91
      $region18: #{double_conv3d.3} parent=11 // pred_check_branch
        %167 = sbr.rel (%p165) target = $region20
      $region19: #{double_conv3d.3} parent=11 // pred_region
        _
      $region20: #{double_conv3d.3} parent=11 // pred_fallthru
        _
    $region12: #{double_conv3d.3} parent=5 // pred_fallthru
      _
    %p168 = scmp.lt.s32.totalorder %s11, 4
    // Predicated region
    $region21: #{double_conv3d.3} parent=5 // pred_check
      %p169 = pneg %p168
    $region22: #{double_conv3d.3} parent=5 // pred_check_branch
      %171 = sbr.rel (%p169) target = $region24
    $region23: #{double_conv3d.3} parent=5 // pred_region
      // Predicated region
      $region25: #{double_conv3d.3} parent=23 // pred_check
        %p172 = pneg %p43
      $region26: #{double_conv3d.3} parent=23 // pred_check_branch
        %174 = sbr.rel (%p172) target = $region28
      $region27: #{double_conv3d.3} parent=23 // pred_region
        %p175 = scmp.lt.s32.totalorder %s18, 1
        %s176 = scalar_select %p175, %s18, 1
        %s177 = smul.addr %s176, 6
        %s178 = smul.addr %s177, 8
        %s179 = scalar_lea.vmem %s0, %s178
      $region28: #{double_conv3d.3} parent=23 // pred_fallthru
        _
    $region24: #{double_conv3d.3} parent=5 // pred_fallthru
      _
    %p180 = scmp.le.s32.totalorder 1, %s11
    %p181 = scmp.lt.s32.totalorder %s11, 5
    %p182 = pnand %p180, %p181
    %p183 = pneg %p182
    // Predicated region
    $region29: #{double_conv3d.3} parent=5 // pred_check
      _
    $region30: #{double_conv3d.3} parent=5 // pred_check_branch
      %185 = sbr.rel (%p182) target = $region32
    $region31: #{double_conv3d.3} parent=5 // pred_region
      %s186 = ssub.s32 %s11, 1
      %p187 = scmp.lt.s32.totalorder %s20, 1
      %s188 = scalar_select %p187, %s20, 1
      %s189 = smul.addr %s188, 6
      %s190 = smul.addr %s189, 8
      %s191 = scalar_lea.vmem %s0, %s190
      %p192 = pneg %p49
      %p193 = pneg %p46
      %p194 = pneg %p70
      %p195 = pneg %p67
      %p196 = pneg %p91
      %p197 = pneg %p88
      %p198 = pneg %p119
      %p199 = pneg %p116
      %s200 = smul.u32 2, %s21
      %p201 = scmp.lt.s32.totalorder %s20, 1
      %s202 = scalar_select %p201, %s20, 1
      %p203 = scmp.lt.s32.totalorder %s200, 3
      %s204 = scalar_select %p203, %s200, 3
      %s205 = smul.addr %s202, 4
      %s206 = sadd.s32 %s204, %s205
      %s207 = smul.addr %s206, 4
      %s208 = scalar_lea.vmem %s3, %s207
      %p209 = pneg %p147
      %p210 = pneg %p144
      %p211 = scmp.lt.s32.totalorder %s20, 1
      %s212 = scalar_select %p211, %s20, 1
      %p213 = scmp.lt.s32.totalorder %s21, 1
      %s214 = scalar_select %p213, %s21, 1
      %s215 = smul.addr %s212, 2
      %s216 = sadd.s32 %s214, %s215
      %s217 = smul.addr %s216, 8
      %s218 = scalar_lea.vmem %s4, %s217
      %p219 = scmp.lt.s32.totalorder %s20, 1
      %s220 = scalar_select %p219, %s20, 1
      %s221 = smul.addr %s220, 6
      %s222 = smul.addr %s221, 8
      %s223 = scalar_lea.vmem %s0, %s222
      %s224 = smul.u32 2, %s21
      %p225 = scmp.lt.s32.totalorder %s20, 1
      %s226 = scalar_select %p225, %s20, 1
      %p227 = scmp.lt.s32.totalorder %s224, 3
      %s228 = scalar_select %p227, %s224, 3
      %s229 = smul.addr %s226, 4
      %s230 = sadd.s32 %s228, %s229
      %s231 = smul.addr %s230, 4
      %s232 = scalar_lea.vmem %s3, %s231
      %s233 = smul.u32 2, %s21
      %p234 = scmp.lt.s32.totalorder %s20, 1
      %s235 = scalar_select %p234, %s20, 1
      %p236 = scmp.lt.s32.totalorder %s21, 1
      %s237 = scalar_select %p236, %s21, 1
      %s238 = smul.addr %s235, 2
      %s239 = sadd.s32 %s237, %s238
      %s240 = smul.addr %s239, 8
      %s241 = scalar_lea.vmem %s4, %s240
      %s243 = smul.u32 %s21, 256
      %s244 = sshra.s32 %s243, 7
      %s245 = sand.u32 %s243, 127
      %s246 = smul.addr %s244, 8
      %s247 = scalar_lea.vmem %s223, %s246
      %v248 = vld [vmem:[%s247] sm:$0xff]
      %v249 = vld [vmem:[%s247 + $0x8] sm:$0xff]
      %v250 = vld [vmem:[%s247 + $0x10] sm:$0xff]
      %v251 = vld [vmem:[%s247 + $0x18] sm:$0xff]
      %s252 = smul.u32 %s21, 4
      %v253 = vld [vmem:[%s2] ss:$4 sm:$0x3]
      %s254 = scalar_lea.vmem %s2, 1
      %v255 = vld [vmem:[%s254] ss:$4 sm:$0x3]
      %s256 = scalar_lea.vmem %s2, 2
      %v257 = vld [vmem:[%s256] ss:$4 sm:$0x3]
      %v258 = vstv %s252
      %v259 = vadd.s32 %v253, %v258
      %vm260 = vcmp.ge.s32.totalorder %v259, 1
      %vm261 = vcmp.ge.s32.totalorder %v255, 1
      %vm262 = vcmp.ge.s32.totalorder %v257, 1
      %vm263 = vmand %vm260, %vm261
      %vm264 = vmand %vm263, %vm262
      %v265 = vsel %vm264, 1, 0
      %v266 = vperm.slane %v265, 0
      %v267 = vperm.slane %v265, 1
      %vm268 = vcmp.eq.s32.totalorder %v266, 1
      %vm269 = vcmp.eq.s32.totalorder %v267, 1
      %273 = vrot.lane.b32.xlu0 %v248, 73
      %v274 = vpop.permute.xlu0 %273
      %275 = vrot.lane.b32.xlu0 %v249, 73
      %v276 = vpop.permute.xlu0 %275
      %277 = vrot.lane.b32.xlu0 %v250, 73
      %v278 = vpop.permute.xlu0 %277
      %vm279 = vcmask 596992
      %v280 = vsel %vm279, %v274, %v276
      %v281 = vsel %vm279, %v276, %v278
      %v284 = vsel %vm268, %v280, 0.0
      %v285 = vsel %vm269, %v281, 0.0
      %v286 = vpack.c.bf16 %v285, %v284
      %v287 = vsel %vm263, 1, 0
      %v288 = vperm.slane %v287, 0
      %v289 = vperm.slane %v287, 1
      %vm290 = vcmp.eq.s32.totalorder %v288, 1
      %vm291 = vcmp.eq.s32.totalorder %v289, 1
      %292 = vrot.lane.b32.xlu0 %v248, 72
      %v293 = vpop.permute.xlu0 %292
      %294 = vrot.lane.b32.xlu0 %v249, 72
      %v295 = vpop.permute.xlu0 %294
      %296 = vrot.lane.b32.xlu0 %v250, 72
      %v297 = vpop.permute.xlu0 %296
      %vm298 = vcmask 588800
      %v299 = vsel %vm298, %v293, %v295
      %v300 = vsel %vm298, %v295, %v297
      %v303 = vsel %vm290, %v299, 0.0
      %v304 = vsel %vm291, %v300, 0.0
      %v305 = vpack.c.bf16 %v304, %v303
      %vm306 = vcmp.lt.s32.totalorder %v257, 7
      %vm307 = vmand %vm263, %vm306
      %v308 = vsel %vm307, 1, 0
      %v309 = vperm.slane %v308, 0
      %v310 = vperm.slane %v308, 1
      %vm311 = vcmp.eq.s32.totalorder %v309, 1
      %vm312 = vcmp.eq.s32.totalorder %v310, 1
      %313 = vrot.lane.b32.xlu0 %v248, 71
      %v314 = vpop.permute.xlu0 %313
      %315 = vrot.lane.b32.xlu0 %v249, 71
      %v316 = vpop.permute.xlu0 %315
      %317 = vrot.lane.b32.xlu0 %v250, 71
      %v318 = vpop.permute.xlu0 %317
      %vm319 = vcmask 580608
      %v320 = vsel %vm319, %v314, %v316
      %v321 = vsel %vm319, %v316, %v318
      %v324 = vsel %vm311, %v320, 0.0
      %v325 = vsel %vm312, %v321, 0.0
      %v326 = vpack.c.bf16 %v325, %v324
      %vm327 = vmand %vm260, %vm262
      %v328 = vsel %vm327, 1, 0
      %v329 = vperm.slane %v328, 0
      %v330 = vperm.slane %v328, 1
      %vm331 = vcmp.eq.s32.totalorder %v329, 1
      %vm332 = vcmp.eq.s32.totalorder %v330, 1
      %333 = vrot.lane.b32.xlu0 %v248, 65
      %v334 = vpop.permute.xlu0 %333
      %335 = vrot.lane.b32.xlu0 %v249, 65
      %v336 = vpop.permute.xlu0 %335
      %337 = vrot.lane.b32.xlu0 %v250, 65
      %v338 = vpop.permute.xlu0 %337
      %vm339 = vcmask 531456
      %v340 = vsel %vm339, %v334, %v336
      %v341 = vsel %vm339, %v336, %v338
      %v344 = vsel %vm331, %v340, 0.0
      %v345 = vsel %vm332, %v341, 0.0
      %v346 = vpack.c.bf16 %v345, %v344
      %v347 = vsel %vm260, 1, 0
      %v348 = vperm.slane %v347, 0
      %v349 = vperm.slane %v347, 1
      %vm350 = vcmp.eq.s32.totalorder %v348, 1
      %vm351 = vcmp.eq.s32.totalorder %v349, 1
      %352 = vrot.lane.b32.xlu0 %v248, 64
      %v353 = vpop.permute.xlu0 %352
      %354 = vrot.lane.b32.xlu0 %v249, 64
      %v355 = vpop.permute.xlu0 %354
      %356 = vrot.lane.b32.xlu0 %v250, 64
      %v357 = vpop.permute.xlu0 %356
      %vm358 = vcmask 523264
      %v359 = vsel %vm358, %v353, %v355
      %v360 = vsel %vm358, %v355, %v357
      %v363 = vsel %vm350, %v359, 0.0
      %v364 = vsel %vm351, %v360, 0.0
      %v365 = vpack.c.bf16 %v364, %v363
      %vm366 = vmand %vm260, %vm306
      %v367 = vsel %vm366, 1, 0
      %v368 = vperm.slane %v367, 0
      %v369 = vperm.slane %v367, 1
      %vm370 = vcmp.eq.s32.totalorder %v368, 1
      %vm371 = vcmp.eq.s32.totalorder %v369, 1
      %372 = vrot.lane.b32.xlu0 %v248, 63
      %v373 = vpop.permute.xlu0 %372
      %374 = vrot.lane.b32.xlu0 %v249, 63
      %v375 = vpop.permute.xlu0 %374
      %376 = vrot.lane.b32.xlu0 %v250, 63
      %v377 = vpop.permute.xlu0 %376
      %vm378 = vcmask 515072
      %v379 = vsel %vm378, %v373, %v375
      %v380 = vsel %vm378, %v375, %v377
      %v383 = vsel %vm370, %v379, 0.0
      %v384 = vsel %vm371, %v380, 0.0
      %v385 = vpack.c.bf16 %v384, %v383
      %vm386 = vcmp.lt.s32.totalorder %v255, 7
      %vm387 = vmand %vm260, %vm386
      %vm388 = vmand %vm387, %vm262
      %v389 = vsel %vm388, 1, 0
      %v390 = vperm.slane %v389, 0
      %v391 = vperm.slane %v389, 1
      %vm392 = vcmp.eq.s32.totalorder %v390, 1
      %vm393 = vcmp.eq.s32.totalorder %v391, 1
      %394 = vrot.lane.b32.xlu0 %v248, 57
      %v395 = vpop.permute.xlu0 %394
      %396 = vrot.lane.b32.xlu0 %v249, 57
      %v397 = vpop.permute.xlu0 %396
      %398 = vrot.lane.b32.xlu0 %v250, 57
      %v399 = vpop.permute.xlu0 %398
      %vm400 = vcmask 465920
      %v401 = vsel %vm400, %v395, %v397
      %v402 = vsel %vm400, %v397, %v399
      %v405 = vsel %vm392, %v401, 0.0
      %v406 = vsel %vm393, %v402, 0.0
      %v407 = vpack.c.bf16 %v406, %v405
      %v408 = vsel %vm387, 1, 0
      %v409 = vperm.slane %v408, 0
      %v410 = vperm.slane %v408, 1
      %vm411 = vcmp.eq.s32.totalorder %v409, 1
      %vm412 = vcmp.eq.s32.totalorder %v410, 1
      %413 = vrot.lane.b32.xlu0 %v248, 56
      %v414 = vpop.permute.xlu0 %413
      %415 = vrot.lane.b32.xlu0 %v249, 56
      %v416 = vpop.permute.xlu0 %415
      %417 = vrot.lane.b32.xlu0 %v250, 56
      %v418 = vpop.permute.xlu0 %417
      %vm419 = vcmask 457728
      %v420 = vsel %vm419, %v414, %v416
      %v421 = vsel %vm419, %v416, %v418
      %v424 = vsel %vm411, %v420, 0.0
      %v425 = vsel %vm412, %v421, 0.0
      %v426 = vpack.c.bf16 %v425, %v424
      %vm427 = vmand %vm387, %vm306
      %v428 = vsel %vm427, 1, 0
      %v429 = vperm.slane %v428, 0
      %v430 = vperm.slane %v428, 1
      %vm431 = vcmp.eq.s32.totalorder %v429, 1
      %vm432 = vcmp.eq.s32.totalorder %v430, 1
      %433 = vrot.lane.b32.xlu0 %v248, 55
      %v434 = vpop.permute.xlu0 %433
      %435 = vrot.lane.b32.xlu0 %v249, 55
      %v436 = vpop.permute.xlu0 %435
      %437 = vrot.lane.b32.xlu0 %v250, 55
      %v438 = vpop.permute.xlu0 %437
      %vm439 = vcmask 449536
      %v440 = vsel %vm439, %v434, %v436
      %v441 = vsel %vm439, %v436, %v438
      %v444 = vsel %vm431, %v440, 0.0
      %v445 = vsel %vm432, %v441, 0.0
      %v446 = vpack.c.bf16 %v445, %v444
      %v448 = vunpack.c.l.b16 %v286
      %v449 = vunpack.c.h.b16 %v286
      %v450 = vpack.c.b16 %v448, %v448
      %v451 = vpack.c.b16 %v449, %v449
      %v453 = vunpack.c.l.b16 %v305
      %v454 = vunpack.c.h.b16 %v305
      %v455 = vpack.c.b16 %v453, %v453
      %v456 = vpack.c.b16 %v454, %v454
      %v458 = vunpack.c.l.b16 %v326
      %v459 = vunpack.c.h.b16 %v326
      %v460 = vpack.c.b16 %v458, %v458
      %v461 = vpack.c.b16 %v459, %v459
      %v463 = vunpack.c.l.b16 %v346
      %v464 = vunpack.c.h.b16 %v346
      %v465 = vpack.c.b16 %v463, %v463
      %v466 = vpack.c.b16 %v464, %v464
      %v468 = vunpack.c.l.b16 %v365
      %v469 = vunpack.c.h.b16 %v365
      %v470 = vpack.c.b16 %v468, %v468
      %v471 = vpack.c.b16 %v469, %v469
      %v473 = vunpack.c.l.b16 %v385
      %v474 = vunpack.c.h.b16 %v385
      %v475 = vpack.c.b16 %v473, %v473
      %v476 = vpack.c.b16 %v474, %v474
      %v478 = vunpack.c.l.b16 %v407
      %v479 = vunpack.c.h.b16 %v407
      %v480 = vpack.c.b16 %v478, %v478
      %v481 = vpack.c.b16 %v479, %v479
      %v483 = vunpack.c.l.b16 %v426
      %v484 = vunpack.c.h.b16 %v426
      %v485 = vpack.c.b16 %v483, %v483
      %v486 = vpack.c.b16 %v484, %v484
      %v488 = vunpack.c.l.b16 %v446
      %v489 = vunpack.c.h.b16 %v446
      %v490 = vpack.c.b16 %v488, %v488
      %v491 = vpack.c.b16 %v489, %v489
      %vm492 = vcmask 1043456
      %v495 = vsel %vm492, %v450, %v455
      %v499 = vsel %vm492, %v451, %v456
      %v503 = vsel %vm492, %v460, %v465
      %v507 = vsel %vm492, %v461, %v466
      %v511 = vsel %vm492, %v470, %v475
      %v515 = vsel %vm492, %v471, %v476
      %v519 = vsel %vm492, %v480, %v485
      %v523 = vsel %vm492, %v481, %v486
      %v525 = vld [vmem:[%s1] sm:$0xf]
      %vm526 = vmand %vm261, %vm262
      %v527 = vsel %vm526, 1, 0
      %v528 = vperm.slane %v527, 0
      %v529 = vperm.slane %v527, 1
      %vm530 = vcmp.eq.s32.totalorder %v528, 1
      %vm531 = vcmp.eq.s32.totalorder %v529, 1
      %532 = vrot.lane.b32.xlu0 %v248, 9
      %v533 = vpop.permute.xlu0 %532
      %534 = vrot.lane.b32.xlu0 %v249, 9
      %v535 = vpop.permute.xlu0 %534
      %536 = vrot.lane.b32.xlu0 %v250, 9
      %v537 = vpop.permute.xlu0 %536
      %vm538 = vcmask 72704
      %v539 = vsel %vm538, %v533, %v535
      %v540 = vsel %vm538, %v535, %v537
      %v543 = vsel %vm530, %v539, 0.0
      %v544 = vsel %vm531, %v540, 0.0
      %v545 = vpack.c.bf16 %v544, %v543
      %v546 = vsel %vm261, 1, 0
      %v547 = vperm.slane %v546, 0
      %v548 = vperm.slane %v546, 1
      %vm549 = vcmp.eq.s32.totalorder %v547, 1
      %vm550 = vcmp.eq.s32.totalorder %v548, 1
      %551 = vrot.lane.b32.xlu0 %v248, 8
      %v552 = vpop.permute.xlu0 %551
      %553 = vrot.lane.b32.xlu0 %v249, 8
      %v554 = vpop.permute.xlu0 %553
      %555 = vrot.lane.b32.xlu0 %v250, 8
      %v556 = vpop.permute.xlu0 %555
      %vm557 = vcmask 64512
      %v558 = vsel %vm557, %v552, %v554
      %v559 = vsel %vm557, %v554, %v556
      %v562 = vsel %vm549, %v558, 0.0
      %v563 = vsel %vm550, %v559, 0.0
      %v564 = vpack.c.bf16 %v563, %v562
      %vm565 = vmand %vm261, %vm306
      %v566 = vsel %vm565, 1, 0
      %v567 = vperm.slane %v566, 0
      %v568 = vperm.slane %v566, 1
      %vm569 = vcmp.eq.s32.totalorder %v567, 1
      %vm570 = vcmp.eq.s32.totalorder %v568, 1
      %571 = vrot.lane.b32.xlu0 %v248, 7
      %v572 = vpop.permute.xlu0 %571
      %573 = vrot.lane.b32.xlu0 %v249, 7
      %v574 = vpop.permute.xlu0 %573
      %575 = vrot.lane.b32.xlu0 %v250, 7
      %v576 = vpop.permute.xlu0 %575
      %vm577 = vcmask 56320
      %v578 = vsel %vm577, %v572, %v574
      %v579 = vsel %vm577, %v574, %v576
      %v582 = vsel %vm569, %v578, 0.0
      %v583 = vsel %vm570, %v579, 0.0
      %v584 = vpack.c.bf16 %v583, %v582
      %v585 = vsel %vm262, 1, 0
      %v586 = vperm.slane %v585, 0
      %v587 = vperm.slane %v585, 1
      %vm588 = vcmp.eq.s32.totalorder %v586, 1
      %vm589 = vcmp.eq.s32.totalorder %v587, 1
      %590 = vrot.lane.b32.xlu0 %v248, 1
      %v591 = vpop.permute.xlu0 %590
      %592 = vrot.lane.b32.xlu0 %v249, 1
      %v593 = vpop.permute.xlu0 %592
      %594 = vrot.lane.b32.xlu0 %v250, 1
      %v595 = vpop.permute.xlu0 %594
      %vm596 = vcmask 7168
      %v597 = vsel %vm596, %v591, %v593
      %v598 = vsel %vm596, %v593, %v595
      %v601 = vsel %vm588, %v597, 0.0
      %v602 = vsel %vm589, %v598, 0.0
      %v603 = vpack.c.bf16 %v602, %v601
      %v604 = vpack.c.bf16 %v250, %v249
      %v605 = vsel %vm306, 1, 0
      %v606 = vperm.slane %v605, 0
      %v607 = vperm.slane %v605, 1
      %vm608 = vcmp.eq.s32.totalorder %v606, 1
      %vm609 = vcmp.eq.s32.totalorder %v607, 1
      %611 = vrot.lane.b32.xlu0 %v249, 127
      %v612 = vpop.permute.xlu0 %611
      %613 = vrot.lane.b32.xlu0 %v250, 127
      %v614 = vpop.permute.xlu0 %613
      %615 = vrot.lane.b32.xlu0 %v251, 127
      %v616 = vpop.permute.xlu0 %615
      %vm617 = vcmask 1039360
      %v618 = vsel %vm617, %v612, %v614
      %v619 = vsel %vm617, %v614, %v616
      %v622 = vsel %vm608, %v618, 0.0
      %v623 = vsel %vm609, %v619, 0.0
      %v624 = vpack.c.bf16 %v623, %v622
      %vm625 = vmand %vm386, %vm262
      %v626 = vsel %vm625, 1, 0
      %v627 = vperm.slane %v626, 0
      %v628 = vperm.slane %v626, 1
      %vm629 = vcmp.eq.s32.totalorder %v627, 1
      %vm630 = vcmp.eq.s32.totalorder %v628, 1
      %631 = vrot.lane.b32.xlu0 %v249, 121
      %v632 = vpop.permute.xlu0 %631
      %633 = vrot.lane.b32.xlu0 %v250, 121
      %v634 = vpop.permute.xlu0 %633
      %635 = vrot.lane.b32.xlu0 %v251, 121
      %v636 = vpop.permute.xlu0 %635
      %vm637 = vcmask 990208
      %v638 = vsel %vm637, %v632, %v634
      %v639 = vsel %vm637, %v634, %v636
      %v642 = vsel %vm629, %v638, 0.0
      %v643 = vsel %vm630, %v639, 0.0
      %v644 = vpack.c.bf16 %v643, %v642
      %v645 = vsel %vm386, 1, 0
      %v646 = vperm.slane %v645, 0
      %v647 = vperm.slane %v645, 1
      %vm648 = vcmp.eq.s32.totalorder %v646, 1
      %vm649 = vcmp.eq.s32.totalorder %v647, 1
      %650 = vrot.lane.b32.xlu0 %v249, 120
      %v651 = vpop.permute.xlu0 %650
      %652 = vrot.lane.b32.xlu0 %v250, 120
      %v653 = vpop.permute.xlu0 %652
      %654 = vrot.lane.b32.xlu0 %v251, 120
      %v655 = vpop.permute.xlu0 %654
      %vm656 = vcmask 982016
      %v657 = vsel %vm656, %v651, %v653
      %v658 = vsel %vm656, %v653, %v655
      %v661 = vsel %vm648, %v657, 0.0
      %v662 = vsel %vm649, %v658, 0.0
      %v663 = vpack.c.bf16 %v662, %v661
      %vm664 = vmand %vm386, %vm306
      %v665 = vsel %vm664, 1, 0
      %v666 = vperm.slane %v665, 0
      %v667 = vperm.slane %v665, 1
      %vm668 = vcmp.eq.s32.totalorder %v666, 1
      %vm669 = vcmp.eq.s32.totalorder %v667, 1
      %670 = vrot.lane.b32.xlu0 %v249, 119
      %v671 = vpop.permute.xlu0 %670
      %672 = vrot.lane.b32.xlu0 %v250, 119
      %v673 = vpop.permute.xlu0 %672
      %674 = vrot.lane.b32.xlu0 %v251, 119
      %v675 = vpop.permute.xlu0 %674
      %vm676 = vcmask 973824
      %v677 = vsel %vm676, %v671, %v673
      %v678 = vsel %vm676, %v673, %v675
      %v681 = vsel %vm668, %v677, 0.0
      %v682 = vsel %vm669, %v678, 0.0
      %v683 = vpack.c.bf16 %v682, %v681
      %v685 = vunpack.c.l.b16 %v545
      %v686 = vunpack.c.h.b16 %v545
      %v687 = vpack.c.b16 %v685, %v685
      %v688 = vpack.c.b16 %v686, %v686
      %v690 = vunpack.c.l.b16 %v564
      %v691 = vunpack.c.h.b16 %v564
      %v692 = vpack.c.b16 %v690, %v690
      %v693 = vpack.c.b16 %v691, %v691
      %v695 = vunpack.c.l.b16 %v584
      %v696 = vunpack.c.h.b16 %v584
      %v697 = vpack.c.b16 %v695, %v695
      %v698 = vpack.c.b16 %v696, %v696
      %v700 = vunpack.c.l.b16 %v603
      %v701 = vunpack.c.h.b16 %v603
      %v702 = vpack.c.b16 %v700, %v700
      %v703 = vpack.c.b16 %v701, %v701
      %v705 = vunpack.c.l.b16 %v604
      %v706 = vunpack.c.h.b16 %v604
      %v707 = vpack.c.b16 %v705, %v705
      %v708 = vpack.c.b16 %v706, %v706
      %v710 = vunpack.c.l.b16 %v624
      %v711 = vunpack.c.h.b16 %v624
      %v712 = vpack.c.b16 %v710, %v710
      %v713 = vpack.c.b16 %v711, %v711
      %v715 = vunpack.c.l.b16 %v644
      %v716 = vunpack.c.h.b16 %v644
      %v717 = vpack.c.b16 %v715, %v715
      %v718 = vpack.c.b16 %v716, %v716
      %v720 = vunpack.c.l.b16 %v663
      %v721 = vunpack.c.h.b16 %v663
      %v722 = vpack.c.b16 %v720, %v720
      %v723 = vpack.c.b16 %v721, %v721
      %v725 = vunpack.c.l.b16 %v683
      %v726 = vunpack.c.h.b16 %v683
      %v727 = vpack.c.b16 %v725, %v725
      %v728 = vpack.c.b16 %v726, %v726
      %v731 = vsel %vm492, %v687, %v692
      %v735 = vsel %vm492, %v688, %v693
      %v739 = vsel %vm492, %v697, %v702
      %v743 = vsel %vm492, %v698, %v703
      %v747 = vsel %vm492, %v707, %v712
      %v751 = vsel %vm492, %v708, %v713
      %v755 = vsel %vm492, %v717, %v722
      %v759 = vsel %vm492, %v718, %v723
      %s761 = scalar_lea.vmem %s1, 4
      %v762 = vld [vmem:[%s761] sm:$0xf]
      %v764 = vsel %vm298, %v762, 0
      %v767 = vsel %vm492, %v727, 0
      %v770 = vsel %vm492, %v728, 0
      %772 = vmatpush.bf16.msra.mxu0 0
      %773 = vmatpush.bf16.msra.mxu0 0
      %774 = vmatpush.bf16.msra.mxu0 0
      %775 = vmatpush.bf16.msra.mxu0 %v767
      %776 = vmatpush.bf16.msra.mxu0 %v755
      %777 = vmatpush.bf16.msra.mxu0 %v747
      %778 = vmatpush.bf16.msra.mxu0 %v739
      %779 = vmatpush.bf16.msra.mxu0 %v731
      %780 = vmatmul.bf16.gmra.mxu0 %v764
      %v781 = vpop.f32.mrf.mxu0
      %v782 = vadd.f32 0.0, %v781
      %v783 = vpop.f32.mrf.mxu0
      %784 = vdwg.mxu0
      %785 = vmatpush.bf16.msra.mxu0 0
      %786 = vmatpush.bf16.msra.mxu0 0
      %787 = vmatpush.bf16.msra.mxu0 0
      %788 = vmatpush.bf16.msra.mxu0 %v770
      %789 = vmatpush.bf16.msra.mxu0 %v759
      %790 = vmatpush.bf16.msra.mxu0 %v751
      %791 = vmatpush.bf16.msra.mxu0 %v743
      %792 = vmatpush.bf16.msra.mxu0 %v735
      %793 = vmatmul.bf16.gmra.mxu0 %v764
      %v794 = vpop.f32.mrf.mxu0
      %v795 = vadd.f32 0.0, %v794
      %v796 = vpop.f32.mrf.mxu0
      %797 = vdwg.mxu0
      %v799 = vsel %vm298, %v525, 0
      %v802 = vsel %vm492, %v490, 0
      %v805 = vsel %vm492, %v491, 0
      %807 = vmatpush.bf16.msra.mxu0 0
      %808 = vmatpush.bf16.msra.mxu0 0
      %809 = vmatpush.bf16.msra.mxu0 0
      %810 = vmatpush.bf16.msra.mxu0 %v802
      %811 = vmatpush.bf16.msra.mxu0 %v519
      %812 = vmatpush.bf16.msra.mxu0 %v511
      %813 = vmatpush.bf16.msra.mxu0 %v503
      %814 = vmatpush.bf16.msra.mxu0 %v495
      %815 = vmatmul.bf16.gmra.mxu0 %v799
      %v816 = vpop.f32.mrf.mxu0
      %v817 = vadd.f32 %v782, %v816
      %v818 = vpop.f32.mrf.mxu0
      %819 = vdwg.mxu0
      %820 = vmatpush.bf16.msra.mxu0 0
      %821 = vmatpush.bf16.msra.mxu0 0
      %822 = vmatpush.bf16.msra.mxu0 0
      %823 = vmatpush.bf16.msra.mxu0 %v805
      %824 = vmatpush.bf16.msra.mxu0 %v523
      %825 = vmatpush.bf16.msra.mxu0 %v515
      %826 = vmatpush.bf16.msra.mxu0 %v507
      %827 = vmatpush.bf16.msra.mxu0 %v499
      %828 = vmatmul.bf16.gmra.mxu0 %v799
      %v829 = vpop.f32.mrf.mxu0
      %v830 = vadd.f32 %v795, %v829
      %v831 = vpop.f32.mrf.mxu0
      %832 = vdwg.mxu0
      %vm833 = vcmp.lt.s32.totalorder %v259, 7
      %vm834 = vmand %vm833, %vm261
      %vm835 = vmand %vm834, %vm262
      %v836 = vsel %vm835, 1, 0
      %v837 = vperm.slane %v836, 0
      %v838 = vperm.slane %v836, 1
      %vm839 = vcmp.eq.s32.totalorder %v837, 1
      %vm840 = vcmp.eq.s32.totalorder %v838, 1
      %841 = vrot.lane.b32.xlu0 %v251, 73
      %v842 = vpop.permute.xlu0 %841
      %v843 = vsel %vm279, %v278, %v842
      %v845 = vsel %vm839, %v281, 0.0
      %v846 = vsel %vm840, %v843, 0.0
      %v847 = vpack.c.bf16 %v846, %v845
      %v848 = vsel %vm834, 1, 0
      %v849 = vperm.slane %v848, 0
      %v850 = vperm.slane %v848, 1
      %vm851 = vcmp.eq.s32.totalorder %v849, 1
      %vm852 = vcmp.eq.s32.totalorder %v850, 1
      %853 = vrot.lane.b32.xlu0 %v251, 72
      %v854 = vpop.permute.xlu0 %853
      %v855 = vsel %vm298, %v297, %v854
      %v857 = vsel %vm851, %v300, 0.0
      %v858 = vsel %vm852, %v855, 0.0
      %v859 = vpack.c.bf16 %v858, %v857
      %vm860 = vmand %vm834, %vm306
      %v861 = vsel %vm860, 1, 0
      %v862 = vperm.slane %v861, 0
      %v863 = vperm.slane %v861, 1
      %vm864 = vcmp.eq.s32.totalorder %v862, 1
      %vm865 = vcmp.eq.s32.totalorder %v863, 1
      %866 = vrot.lane.b32.xlu0 %v251, 71
      %v867 = vpop.permute.xlu0 %866
      %v868 = vsel %vm319, %v318, %v867
      %v870 = vsel %vm864, %v321, 0.0
      %v871 = vsel %vm865, %v868, 0.0
      %v872 = vpack.c.bf16 %v871, %v870
      %vm873 = vmand %vm833, %vm262
      %v874 = vsel %vm873, 1, 0
      %v875 = vperm.slane %v874, 0
      %v876 = vperm.slane %v874, 1
      %vm877 = vcmp.eq.s32.totalorder %v875, 1
      %vm878 = vcmp.eq.s32.totalorder %v876, 1
      %879 = vrot.lane.b32.xlu0 %v251, 65
      %v880 = vpop.permute.xlu0 %879
      %v881 = vsel %vm339, %v338, %v880
      %v883 = vsel %vm877, %v341, 0.0
      %v884 = vsel %vm878, %v881, 0.0
      %v885 = vpack.c.bf16 %v884, %v883
      %v886 = vsel %vm833, 1, 0
      %v887 = vperm.slane %v886, 0
      %v888 = vperm.slane %v886, 1
      %vm889 = vcmp.eq.s32.totalorder %v887, 1
      %vm890 = vcmp.eq.s32.totalorder %v888, 1
      %891 = vrot.lane.b32.xlu0 %v251, 64
      %v892 = vpop.permute.xlu0 %891
      %v893 = vsel %vm358, %v357, %v892
      %v895 = vsel %vm889, %v360, 0.0
      %v896 = vsel %vm890, %v893, 0.0
      %v897 = vpack.c.bf16 %v896, %v895
      %vm898 = vmand %vm833, %vm306
      %v899 = vsel %vm898, 1, 0
      %v900 = vperm.slane %v899, 0
      %v901 = vperm.slane %v899, 1
      %vm902 = vcmp.eq.s32.totalorder %v900, 1
      %vm903 = vcmp.eq.s32.totalorder %v901, 1
      %904 = vrot.lane.b32.xlu0 %v251, 63
      %v905 = vpop.permute.xlu0 %904
      %v906 = vsel %vm378, %v377, %v905
      %v908 = vsel %vm902, %v380, 0.0
      %v909 = vsel %vm903, %v906, 0.0
      %v910 = vpack.c.bf16 %v909, %v908
      %vm911 = vmand %vm833, %vm386
      %vm912 = vmand %vm911, %vm262
      %v913 = vsel %vm912, 1, 0
      %v914 = vperm.slane %v913, 0
      %v915 = vperm.slane %v913, 1
      %vm916 = vcmp.eq.s32.totalorder %v914, 1
      %vm917 = vcmp.eq.s32.totalorder %v915, 1
      %918 = vrot.lane.b32.xlu0 %v251, 57
      %v919 = vpop.permute.xlu0 %918
      %v920 = vsel %vm400, %v399, %v919
      %v922 = vsel %vm916, %v402, 0.0
      %v923 = vsel %vm917, %v920, 0.0
      %v924 = vpack.c.bf16 %v923, %v922
      %v925 = vsel %vm911, 1, 0
      %v926 = vperm.slane %v925, 0
      %v927 = vperm.slane %v925, 1
      %vm928 = vcmp.eq.s32.totalorder %v926, 1
      %vm929 = vcmp.eq.s32.totalorder %v927, 1
      %930 = vrot.lane.b32.xlu0 %v251, 56
      %v931 = vpop.permute.xlu0 %930
      %v932 = vsel %vm419, %v418, %v931
      %v934 = vsel %vm928, %v421, 0.0
      %v935 = vsel %vm929, %v932, 0.0
      %v936 = vpack.c.bf16 %v935, %v934
      %vm937 = vmand %vm911, %vm306
      %v938 = vsel %vm937, 1, 0
      %v939 = vperm.slane %v938, 0
      %v940 = vperm.slane %v938, 1
      %vm941 = vcmp.eq.s32.totalorder %v939, 1
      %vm942 = vcmp.eq.s32.totalorder %v940, 1
      %943 = vrot.lane.b32.xlu0 %v251, 55
      %v944 = vpop.permute.xlu0 %943
      %v945 = vsel %vm439, %v438, %v944
      %v947 = vsel %vm941, %v441, 0.0
      %v948 = vsel %vm942, %v945, 0.0
      %v949 = vpack.c.bf16 %v948, %v947
      %v951 = vunpack.c.l.b16 %v847
      %v952 = vunpack.c.h.b16 %v847
      %v953 = vpack.c.b16 %v951, %v951
      %v954 = vpack.c.b16 %v952, %v952
      %v956 = vunpack.c.l.b16 %v859
      %v957 = vunpack.c.h.b16 %v859
      %v958 = vpack.c.b16 %v956, %v956
      %v959 = vpack.c.b16 %v957, %v957
      %v961 = vunpack.c.l.b16 %v872
      %v962 = vunpack.c.h.b16 %v872
      %v963 = vpack.c.b16 %v961, %v961
      %v964 = vpack.c.b16 %v962, %v962
      %v966 = vunpack.c.l.b16 %v885
      %v967 = vunpack.c.h.b16 %v885
      %v968 = vpack.c.b16 %v966, %v966
      %v969 = vpack.c.b16 %v967, %v967
      %v971 = vunpack.c.l.b16 %v897
      %v972 = vunpack.c.h.b16 %v897
      %v973 = vpack.c.b16 %v971, %v971
      %v974 = vpack.c.b16 %v972, %v972
      %v976 = vunpack.c.l.b16 %v910
      %v977 = vunpack.c.h.b16 %v910
      %v978 = vpack.c.b16 %v976, %v976
      %v979 = vpack.c.b16 %v977, %v977
      %v981 = vunpack.c.l.b16 %v924
      %v982 = vunpack.c.h.b16 %v924
      %v983 = vpack.c.b16 %v981, %v981
      %v984 = vpack.c.b16 %v982, %v982
      %v986 = vunpack.c.l.b16 %v936
      %v987 = vunpack.c.h.b16 %v936
      %v988 = vpack.c.b16 %v986, %v986
      %v989 = vpack.c.b16 %v987, %v987
      %v991 = vunpack.c.l.b16 %v949
      %v992 = vunpack.c.h.b16 %v949
      %v993 = vpack.c.b16 %v991, %v991
      %v994 = vpack.c.b16 %v992, %v992
      %v997 = vsel %vm492, %v953, %v958
      %v1001 = vsel %vm492, %v954, %v959
      %v1005 = vsel %vm492, %v963, %v968
      %v1009 = vsel %vm492, %v964, %v969
      %v1013 = vsel %vm492, %v973, %v978
      %v1017 = vsel %vm492, %v974, %v979
      %v1021 = vsel %vm492, %v983, %v988
      %v1025 = vsel %vm492, %v984, %v989
      %s1027 = scalar_lea.vmem %s1, 8
      %v1028 = vld [vmem:[%s1027] sm:$0xf]
      %v1030 = vsel %vm298, %v1028, 0
      %v1033 = vsel %vm492, %v993, 0
      %v1036 = vsel %vm492, %v994, 0
      %1038 = vmatpush.bf16.msra.mxu0 0
      %1039 = vmatpush.bf16.msra.mxu0 0
      %1040 = vmatpush.bf16.msra.mxu0 0
      %1041 = vmatpush.bf16.msra.mxu0 %v1033
      %1042 = vmatpush.bf16.msra.mxu0 %v1021
      %1043 = vmatpush.bf16.msra.mxu0 %v1013
      %1044 = vmatpush.bf16.msra.mxu0 %v1005
      %1045 = vmatpush.bf16.msra.mxu0 %v997
      %1046 = vmatmul.bf16.gmra.mxu0 %v1030
      %v1047 = vpop.f32.mrf.mxu0
      %v1048 = vadd.f32 0.0, %v1047
      %v1049 = vpop.f32.mrf.mxu0
      %1050 = vdwg.mxu0
      %1051 = vmatpush.bf16.msra.mxu0 0
      %1052 = vmatpush.bf16.msra.mxu0 0
      %1053 = vmatpush.bf16.msra.mxu0 0
      %1054 = vmatpush.bf16.msra.mxu0 %v1036
      %1055 = vmatpush.bf16.msra.mxu0 %v1025
      %1056 = vmatpush.bf16.msra.mxu0 %v1017
      %1057 = vmatpush.bf16.msra.mxu0 %v1009
      %1058 = vmatpush.bf16.msra.mxu0 %v1001
      %1059 = vmatmul.bf16.gmra.mxu0 %v1030
      %v1060 = vpop.f32.mrf.mxu0
      %v1061 = vadd.f32 0.0, %v1060
      %v1062 = vpop.f32.mrf.mxu0
      %1063 = vdwg.mxu0
      %v1064 = vadd.f32 %v817, %v1048
      %v1065 = vadd.f32 %v830, %v1061
      %v1066 = vpack.c.bf16 %v1065, %v1064
      %1067 = vst [vmem:[%s232] sm:$0xff] %v1066
      %v1068 = vadd.f32 %v1064, %v1065
      %1069 = vadd.xlane.f32.xlu0 %v1068
      %v1070 = vpop.xlane.xlu0 %1069
      %1071 = vst.msk [vmem:[%s241] sm:$0xff] %vm596, %v1070
      %v1072 = vmul.f32 %v1064, %v1064
      %v1073 = vmul.f32 %v1065, %v1065
      %v1074 = vadd.f32 %v1072, %v1073
      %1075 = vadd.xlane.f32.xlu0 %v1074
      %v1076 = vpop.xlane.xlu0 %1075
      %vm1077 = vcmask 15368
      %1078 = vst.msk [vmem:[%s241] sm:$0xff] %vm1077, %v1076
      %s1079 = smul.u32 2, %s21
      %p1080 = scmp.lt.s32.totalorder %s20, 1
      %s1081 = scalar_select %p1080, %s20, 1
      %p1082 = scmp.lt.s32.totalorder %s1079, 3
      %s1083 = scalar_select %p1082, %s1079, 3
      %s1084 = smul.addr %s1081, 4
      %s1085 = sadd.s32 %s1083, %s1084
      %s1086 = smul.addr %s1085, 4
      %s1087 = scalar_lea.vmem %s3, %s1086
      %p1088 = scmp.lt.s32.totalorder %s20, 1
      %s1089 = scalar_select %p1088, %s20, 1
      %p1090 = scmp.lt.s32.totalorder %s21, 1
      %s1091 = scalar_select %p1090, %s21, 1
      %s1092 = smul.addr %s1089, 2
      %s1093 = sadd.s32 %s1091, %s1092
      %s1094 = smul.addr %s1093, 8
      %s1095 = scalar_lea.vmem %s4, %s1094
      // Predicated region
      $region33: #{double_conv3d.3} parent=31 // pred_check
        %p1096 = pneg %p116
      $region34: #{double_conv3d.3} parent=31 // pred_check_branch
        %1098 = sbr.rel (%p1096) target = $region36
      $region35: #{double_conv3d.3} parent=31 // pred_region
        %s1099 = smul.u32 2, %s21
      $region36: #{double_conv3d.3} parent=31 // pred_fallthru
        _
      // Predicated region
      $region37: #{double_conv3d.3} parent=31 // pred_check
        %p1100 = pneg %p144
      $region38: #{double_conv3d.3} parent=31 // pred_check_branch
        %1102 = sbr.rel (%p1100) target = $region40
      $region39: #{double_conv3d.3} parent=31 // pred_region
        _
      $region40: #{double_conv3d.3} parent=31 // pred_fallthru
        _
    $region32: #{double_conv3d.3} parent=5 // pred_fallthru
      _
    %p1103 = scmp.le.s32.totalorder 2, %s11
    // Predicated region
    $region41: #{double_conv3d.3} parent=5 // pred_check
      %p1104 = pneg %p1103
    $region42: #{double_conv3d.3} parent=5 // pred_check_branch
      %1106 = sbr.rel (%p1104) target = $region44
    $region43: #{double_conv3d.3} parent=5 // pred_region
      %s1107 = ssub.s32 %s11, 2
      // Predicated region
      $region45: #{double_conv3d.3} parent=43 // pred_check
        %p1108 = pneg %p122
      $region46: #{double_conv3d.3} parent=43 // pred_check_branch
        %1110 = sbr.rel (%p1108) target = $region48
      $region47: #{double_conv3d.3} parent=43 // pred_region
        %s1111 = smul.u32 2, %s23
        %p1112 = scmp.lt.s32.totalorder %s22, 1
        %s1113 = scalar_select %p1112, %s22, 1
        %p1114 = scmp.lt.s32.totalorder %s1111, 3
        %s1115 = scalar_select %p1114, %s1111, 3
        %s1116 = smul.addr %s1113, 4
        %s1117 = sadd.s32 %s1115, %s1116
        %s1118 = smul.addr %s1117, 4
        %s1119 = scalar_lea.vmem %s3, %s1118
      $region48: #{double_conv3d.3} parent=43 // pred_fallthru
        _
      // Predicated region
      $region49: #{double_conv3d.3} parent=43 // pred_check
        %p1120 = pneg %p150
      $region50: #{double_conv3d.3} parent=43 // pred_check_branch
        %1122 = sbr.rel (%p1120) target = $region52
      $region51: #{double_conv3d.3} parent=43 // pred_region
        %p1123 = scmp.lt.s32.totalorder %s22, 1
        %s1124 = scalar_select %p1123, %s22, 1
        %p1125 = scmp.lt.s32.totalorder %s23, 1
        %s1126 = scalar_select %p1125, %s23, 1
        %s1127 = smul.addr %s1124, 2
        %s1128 = sadd.s32 %s1126, %s1127
        %s1129 = smul.addr %s1128, 8
        %s1130 = scalar_lea.vmem %s4, %s1129
      $region52: #{double_conv3d.3} parent=43 // pred_fallthru
        _
    $region44: #{double_conv3d.3} parent=5 // pred_fallthru
      _
  $region6: #{double_conv3d.3} parent=0 // loop_footer
    %s15 = sadd.s32 1, %s11
  $region7: #{double_conv3d.3} parent=0 // loop_footer_branch
    %10 = sbr.rel target = $region3
  $region8: #{double_conv3d.3} parent=0 // loop_exit
    _

</llo_original>
